<compile_context>
chip_gen: v5e
topology: v5e:2x2
jax: 0.10.0
libtpu: 0.0.40
codegen_flags: <defaults>
</compile_context>

<pallas_src>
import jax
import jax.numpy as jnp
import numpy as np
from jax.experimental import pallas as pl
from jax.experimental.pallas import tpu as pltpu

EPS = 1e-5
LANE = 128


def _round_up(x, m):
    return ((x + m - 1) // m) * m


# --------------------------------------------------------------------------- #
# Kernels
# --------------------------------------------------------------------------- #
def _conv_stats_kernel(xp_ref, w_ref, b_ref, y_ref, st_ref):
    # xp_ref: (H+2, W+2, Ci) bf16 (spatial halo + channel padding already applied)
    # w_ref : (9, Ci, Co) bf16      b_ref: (1, Co) f32
    # y_ref : (H, W, Co) bf16       st_ref: (2, Co) f32  [sum, sumsq over H*W]
    Hp, Wp, Ci = xp_ref.shape
    H, W = Hp - 2, Wp - 2
    Co = y_ref.shape[-1]

    xp = xp_ref[...].astype(jnp.float32)                      # one widening pass
    acc = jnp.zeros((H * W, Co), jnp.float32)
    for dy in range(3):                                        # 9 accumulating
        for dx in range(3):                                    # K=128 MXU matmuls
            patch = xp[dy:dy + H, dx:dx + W, :].reshape(H * W, Ci)
            acc = acc + jnp.dot(patch.astype(jnp.bfloat16), w_ref[3 * dy + dx],
                                preferred_element_type=jnp.float32)
    acc = acc + b_ref[...].astype(jnp.float32)

    st_ref[0:1, :] = jnp.sum(acc, axis=0, keepdims=True)       # one-pass stats
    st_ref[1:2, :] = jnp.sum(acc * acc, axis=0, keepdims=True)
    y_ref[...] = acc.reshape(H, W, Co).astype(y_ref.dtype)


def _bn_relu_conv_stats_kernel(y1_ref, s_ref, t_ref, w_ref, b_ref,
                               y2_ref, st_ref, pad_ref):
    # y1_ref: (H, W, C) bf16 pre-BN conv1 output
    # s_ref/t_ref: (1, C) f32 folded BN scale / bias
    # w_ref: (9, C, C) bf16   b_ref: (1, C) f32
    # y2_ref: (H, W, C) f32   st_ref: (2, C) f32   pad_ref: (H+2, W+2, C) f32 scratch
    H, W, C = y1_ref.shape
    Hp, Wp = H + 2, W + 2

    # BN1 folded into a single multiply-add, fused with ReLU.
    h = jnp.maximum(y1_ref[...].astype(jnp.float32) * s_ref[...] + t_ref[...], 0.0)

    # Zero only the 1-element halo (cheap); interior overwritten every step.
    zrow = jnp.zeros((1, Wp, C), pad_ref.dtype)
    zcol = jnp.zeros((Hp, 1, C), pad_ref.dtype)
    pad_ref[0:1, :, :] = zrow
    pad_ref[Hp - 1:Hp, :, :] = zrow
    pad_ref[:, 0:1, :] = zcol
    pad_ref[:, Wp - 1:Wp, :] = zcol
    pad_ref[1:H + 1, 1:W + 1, :] = h

    acc = jnp.zeros((H * W, C), jnp.float32)
    for dy in range(3):
        for dx in range(3):
            patch = pad_ref[dy:dy + H, dx:dx + W, :].reshape(H * W, C)
            acc = acc + jnp.dot(patch.astype(jnp.bfloat16), w_ref[3 * dy + dx],
                                preferred_element_type=jnp.float32)
    acc = acc + b_ref[...].astype(jnp.float32)

    st_ref[0:1, :] = jnp.sum(acc, axis=0, keepdims=True)
    st_ref[1:2, :] = jnp.sum(acc * acc, axis=0, keepdims=True)
    y2_ref[...] = acc.reshape(H, W, C).astype(y2_ref.dtype)


def _bn_relu_kernel(y_ref, s_ref, t_ref, o_ref):
    o_ref[...] = jnp.maximum(
        y_ref[...].astype(jnp.float32) * s_ref[...] + t_ref[...], 0.0
    ).astype(o_ref.dtype)


# --------------------------------------------------------------------------- #
# Wrapper
# --------------------------------------------------------------------------- #
def double_conv(x_nchw, params):
    w1, b1, g1, be1, w2, b2, g2, be2 = params
    N, Cin, H, W = x_nchw.shape
    Cout = w1.shape[-1]
    Ci = _round_up(Cin, LANE)      # lane-dense / MXU-sized channel padding
    Co = _round_up(Cout, LANE)
    Hp, Wp = H + 2, W + 2
    NHW = N * H * W

    # NCHW -> NHWC, spatial halo pad, channel pad, bf16 in HBM.
    x = jnp.transpose(x_nchw, (0, 2, 3, 1))
    x = jnp.pad(x, ((0, 0), (1, 1), (1, 1), (0, Ci - Cin))).astype(jnp.bfloat16)

    # HWIO weights -> (9, Ci, Co), zero padded, bf16 MXU operands.
    w1p = jnp.pad(w1, ((0, 0), (0, 0), (0, Ci - Cin), (0, Co - Cout)))
    w1p = w1p.reshape(9, Ci, Co).astype(jnp.bfloat16)
    w2p = jnp.pad(w2, ((0, 0), (0, 0), (0, Co - Cout), (0, Co - Cout)))
    w2p = w2p.reshape(9, Co, Co).astype(jnp.bfloat16)
    b1p = jnp.pad(b1, (0, Co - Cout)).reshape(1, Co).astype(jnp.float32)
    b2p = jnp.pad(b2, (0, Co - Cout)).reshape(1, Co).astype(jnp.float32)
    g1p = jnp.pad(g1, (0, Co - Cout)).astype(jnp.float32)
    be1p = jnp.pad(be1, (0, Co - Cout)).astype(jnp.float32)
    g2p = jnp.pad(g2, (0, Co - Cout)).astype(jnp.float32)
    be2p = jnp.pad(be2, (0, Co - Cout)).astype(jnp.float32)

    cparams = pltpu.CompilerParams(
        dimension_semantics=("parallel",),        # v7x: shard batch over 2 TCs
        vmem_limit_bytes=48 * 1024 * 1024,        # explicit; safe on v5e..v7x
    )
    cs = pl.BlockSpec((1, Co), lambda n: (0, 0))  # per-channel params (resident)

    # ---- kernel 1: conv1 + bias, per-image (sum, sumsq) -------------------- #
    y1, st1 = pl.pallas_call(
        _conv_stats_kernel,
        grid=(N,),
        in_specs=[
            pl.BlockSpec((None, Hp, Wp, Ci), lambda n: (n, 0, 0, 0)),
            pl.BlockSpec((9, Ci, Co), lambda n: (0, 0, 0)),
            cs,
        ],
        out_specs=(
            pl.BlockSpec((None, H, W, Co), lambda n: (n, 0, 0, 0)),
            pl.BlockSpec((None, 2, Co), lambda n: (n, 0, 0)),
        ),
        out_shape=(
            jax.ShapeDtypeStruct((N, H, W, Co), jnp.bfloat16),
            jax.ShapeDtypeStruct((N, 2, Co), jnp.float32),
        ),
        compiler_params=cparams,
        cost_estimate=pl.CostEstimate(
            flops=2 * NHW * 9 * Ci * Co,
            transcendentals=0,
            bytes_accessed=(N * Hp * Wp * Ci * 2 + 9 * Ci * Co * 2
                            + NHW * Co * 2 + N * 2 * Co * 4),
        ),
    )(x, w1p, b1p)

    # Tiny per-channel finalize: combine exact per-tile partials, fold affine.
    def _fold(st, gamma, beta):
        s = jnp.sum(st[:, 0, :], axis=0)
        ss = jnp.sum(st[:, 1, :], axis=0)
        mean = s / NHW
        var = jnp.maximum(ss / NHW - mean * mean, 0.0)   # biased batch variance
        scale = gamma * jax.lax.rsqrt(var + EPS)
        bias = beta - mean * scale
        return scale.reshape(1, Co), bias.reshape(1, Co)

    s1, t1 = _fold(st1, g1p, be1p)

    # ---- kernel 2: BN1(folded)+ReLU -> conv2 + bias, per-image stats ------- #
    y2, st2 = pl.pallas_call(
        _bn_relu_conv_stats_kernel,
        grid=(N,),
        in_specs=[
            pl.BlockSpec((None, H, W, Co), lambda n: (n, 0, 0, 0)),
            cs, cs,
            pl.BlockSpec((9, Co, Co), lambda n: (0, 0, 0)),
            cs,
        ],
        out_specs=(
            pl.BlockSpec((None, H, W, Co), lambda n: (n, 0, 0, 0)),
            pl.BlockSpec((None, 2, Co), lambda n: (n, 0, 0)),
        ),
        out_shape=(
            jax.ShapeDtypeStruct((N, H, W, Co), jnp.float32),
            jax.ShapeDtypeStruct((N, 2, Co), jnp.float32),
        ),
        scratch_shapes=[pltpu.VMEM((Hp, Wp, Co), jnp.float32)],
        compiler_params=cparams,
        cost_estimate=pl.CostEstimate(
            flops=2 * NHW * 9 * Co * Co + 4 * NHW * Co,
            transcendentals=0,
            bytes_accessed=(NHW * Co * 2 + 9 * Co * Co * 2
                            + NHW * Co * 4 + N * 2 * Co * 4),
        ),
    )(y1, s1, t1, w2p, b2p)

    s2, t2 = _fold(st2, g2p, be2p)

    # ---- kernel 3: BN2(folded)+ReLU ---------------------------------------- #
    out = pl.pallas_call(
        _bn_relu_kernel,
        grid=(N,),
        in_specs=[
            pl.BlockSpec((None, H, W, Co), lambda n: (n, 0, 0, 0)),
            cs, cs,
        ],
        out_specs=pl.BlockSpec((None, H, W, Co), lambda n: (n, 0, 0, 0)),
        out_shape=jax.ShapeDtypeStruct((N, H, W, Co), jnp.float32),
        compiler_params=cparams,
        cost_estimate=pl.CostEstimate(
            flops=3 * NHW * Co,
            transcendentals=0,
            bytes_accessed=NHW * Co * 8 + 2 * Co * 4,
        ),
    )(y2, s2, t2)

    # Strip channel padding, back to NCHW.
    return jnp.transpose(out[..., :Cout], (0, 3, 1, 2))


# --------------------------------------------------------------------------- #
# Pure-JAX reference (PyTorch training-mode semantics, f32 throughout)
# --------------------------------------------------------------------------- #
def double_conv_ref(x_nchw, params):
    w1, b1, g1, be1, w2, b2, g2, be2 = params
    h = jnp.transpose(x_nchw, (0, 2, 3, 1))

    def block(h, w, b, g, be):
        y = jax.lax.conv_general_dilated(
            h, w, window_strides=(1, 1), padding="SAME",
            dimension_numbers=("NHWC", "HWIO", "NHWC")) + b
        m = jnp.mean(y, axis=(0, 1, 2), keepdims=True)
        v = jnp.mean((y - m) ** 2, axis=(0, 1, 2), keepdims=True)
        return jnp.maximum((y - m) / jnp.sqrt(v + EPS) * g + be, 0.0)

    h = block(h, w1, b1, g1, be1)
    h = block(h, w2, b2, g2, be2)
    return jnp.transpose(h, (0, 3, 1, 2))


if __name__ == "__main__":
    key = jax.random.PRNGKey(0)
    ks = jax.random.split(key, 5)

    N, Cin, Cout, H, W = 2, 4, 8, 16, 16

    x = jax.random.normal(ks[0], (N, Cin, H, W), jnp.float32)

    # Shapes as produced by nn.Conv2d / nn.BatchNorm2d constructors.
    w1 = jax.random.normal(ks[1], (3, 3, Cin, Cout), jnp.float32) * 0.1    # HWIO
    b1 = jax.random.normal(ks[2], (Cout,), jnp.float32) * 0.1
    g1 = jnp.ones((Cout,), jnp.float32)
    be1 = jnp.zeros((Cout,), jnp.float32)
    w2 = jax.random.normal(ks[3], (3, 3, Cout, Cout), jnp.float32) * 0.1
    b2 = jax.random.normal(ks[4], (Cout,), jnp.float32) * 0.1
    g2 = jnp.ones((Cout,), jnp.float32)
    be2 = jnp.zeros((Cout,), jnp.float32)

    params = (w1, b1, g1, be1, w2, b2, g2, be2)

    out = jax.jit(double_conv)(x, params)
    out = jax.block_until_ready(out)

    ref = double_conv_ref(x, params)
    assert out.shape == (N, Cout, H, W), out.shape
    # Tolerance accounts for bf16 MXU operands / bf16 intermediates (reference is f32).
    np.testing.assert_allclose(np.asarray(out), np.asarray(ref), rtol=2e-2, atol=2e-2)

    print("KERNEL_OK")
</pallas_src>

<mosaic_0001>
module attributes {stable_mosaic.version = 11 : i64} {
  func.func @_conv_stats_kernel(%arg0: i32, %arg1: memref<1x18x18x128xbf16, #tpu.memory_space<vmem>>, %arg2: memref<9x128x128xbf16, #tpu.memory_space<vmem>>, %arg3: memref<1x128xf32, #tpu.memory_space<vmem>>, %arg4: memref<1x16x16x128xbf16, #tpu.memory_space<vmem>>, %arg5: memref<1x2x128xf32, #tpu.memory_space<vmem>>) attributes {dimension_semantics = [#tpu.dimension_semantics<parallel>], iteration_bounds = array<i64: 2>, scalar_prefetch = 0 : i64, scratch_operands = 0 : i64, tpu.core_type = #tpu.core_type<tc>, window_params = [{transform_indices = @transform_0, window_bounds = array<i64: 1, 18, 18, 128>}, {pipeline_mode = #tpu.pipeline_mode<synchronous>, transform_indices = @transform_1, window_bounds = array<i64: 9, 128, 128>}, {pipeline_mode = #tpu.pipeline_mode<synchronous>, transform_indices = @transform_2, window_bounds = array<i64: 1, 128>}, {transform_indices = @transform_3, window_bounds = array<i64: 1, 16, 16, 128>}, {transform_indices = @transform_4, window_bounds = array<i64: 1, 2, 128>}]} {
    %c0 = arith.constant 0 : index
    %c0_0 = arith.constant 0 : index
    %c0_1 = arith.constant 0 : index
    %c0_2 = arith.constant 0 : index
    %0 = vector.load %arg1[%c0, %c0_0, %c0_1, %c0_2] : memref<1x18x18x128xbf16, #tpu.memory_space<vmem>>, vector<1x18x18x128xbf16>
    %1 = vector.shape_cast %0 : vector<1x18x18x128xbf16> to vector<18x18x128xbf16>
    %2 = arith.extf %1 : vector<18x18x128xbf16> to vector<18x18x128xf32>
    %cst = arith.constant 0.000000e+00 : f32
    %3 = vector.broadcast %cst : f32 to vector<256x128xf32>
    %4 = vector.extract_strided_slice %2 {offsets = [0, 0, 0], sizes = [16, 16, 128], strides = [1, 1, 1]} : vector<18x18x128xf32> to vector<16x16x128xf32>
    %5 = vector.shape_cast %4 : vector<16x16x128xf32> to vector<256x128xf32>
    %6 = arith.truncf %5 : vector<256x128xf32> to vector<256x128xbf16>
    %c0_3 = arith.constant 0 : index
    %c0_4 = arith.constant 0 : index
    %c0_5 = arith.constant 0 : index
    %7 = vector.load %arg2[%c0_3, %c0_4, %c0_5] : memref<9x128x128xbf16, #tpu.memory_space<vmem>>, vector<1x128x128xbf16>
    %8 = vector.shape_cast %7 : vector<1x128x128xbf16> to vector<128x128xbf16>
    %cst_6 = arith.constant dense<0.000000e+00> : vector<256x128xf32>
    %9 = tpu.matmul %6, %8, %cst_6 {dimension_numbers = #tpu.dot_dimension_numbers<[1], [0], [0], [1], [0, 0, 1, 1], [], []>} : vector<256x128xbf16>, vector<128x128xbf16>, vector<256x128xf32> -> vector<256x128xf32>
    %10 = arith.addf %3, %9 : vector<256x128xf32>
    %11 = vector.extract_strided_slice %2 {offsets = [0, 1, 0], sizes = [16, 16, 128], strides = [1, 1, 1]} : vector<18x18x128xf32> to vector<16x16x128xf32>
    %12 = vector.shape_cast %11 : vector<16x16x128xf32> to vector<256x128xf32>
    %13 = arith.truncf %12 : vector<256x128xf32> to vector<256x128xbf16>
    %c1 = arith.constant 1 : index
    %c0_7 = arith.constant 0 : index
    %c0_8 = arith.constant 0 : index
    %14 = vector.load %arg2[%c1, %c0_7, %c0_8] : memref<9x128x128xbf16, #tpu.memory_space<vmem>>, vector<1x128x128xbf16>
    %15 = vector.shape_cast %14 : vector<1x128x128xbf16> to vector<128x128xbf16>
    %cst_9 = arith.constant dense<0.000000e+00> : vector<256x128xf32>
    %16 = tpu.matmul %13, %15, %cst_9 {dimension_numbers = #tpu.dot_dimension_numbers<[1], [0], [0], [1], [0, 0, 1, 1], [], []>} : vector<256x128xbf16>, vector<128x128xbf16>, vector<256x128xf32> -> vector<256x128xf32>
    %17 = arith.addf %10, %16 : vector<256x128xf32>
    %18 = vector.extract_strided_slice %2 {offsets = [0, 2, 0], sizes = [16, 16, 128], strides = [1, 1, 1]} : vector<18x18x128xf32> to vector<16x16x128xf32>
    %19 = vector.shape_cast %18 : vector<16x16x128xf32> to vector<256x128xf32>
    %20 = arith.truncf %19 : vector<256x128xf32> to vector<256x128xbf16>
    %c2 = arith.constant 2 : index
    %c0_10 = arith.constant 0 : index
    %c0_11 = arith.constant 0 : index
    %21 = vector.load %arg2[%c2, %c0_10, %c0_11] : memref<9x128x128xbf16, #tpu.memory_space<vmem>>, vector<1x128x128xbf16>
    %22 = vector.shape_cast %21 : vector<1x128x128xbf16> to vector<128x128xbf16>
    %cst_12 = arith.constant dense<0.000000e+00> : vector<256x128xf32>
    %23 = tpu.matmul %20, %22, %cst_12 {dimension_numbers = #tpu.dot_dimension_numbers<[1], [0], [0], [1], [0, 0, 1, 1], [], []>} : vector<256x128xbf16>, vector<128x128xbf16>, vector<256x128xf32> -> vector<256x128xf32>
    %24 = arith.addf %17, %23 : vector<256x128xf32>
    %25 = vector.extract_strided_slice %2 {offsets = [1, 0, 0], sizes = [16, 16, 128], strides = [1, 1, 1]} : vector<18x18x128xf32> to vector<16x16x128xf32>
    %26 = vector.shape_cast %25 : vector<16x16x128xf32> to vector<256x128xf32>
    %27 = arith.truncf %26 : vector<256x128xf32> to vector<256x128xbf16>
    %c3 = arith.constant 3 : index
    %c0_13 = arith.constant 0 : index
    %c0_14 = arith.constant 0 : index
    %28 = vector.load %arg2[%c3, %c0_13, %c0_14] : memref<9x128x128xbf16, #tpu.memory_space<vmem>>, vector<1x128x128xbf16>
    %29 = vector.shape_cast %28 : vector<1x128x128xbf16> to vector<128x128xbf16>
    %cst_15 = arith.constant dense<0.000000e+00> : vector<256x128xf32>
    %30 = tpu.matmul %27, %29, %cst_15 {dimension_numbers = #tpu.dot_dimension_numbers<[1], [0], [0], [1], [0, 0, 1, 1], [], []>} : vector<256x128xbf16>, vector<128x128xbf16>, vector<256x128xf32> -> vector<256x128xf32>
    %31 = arith.addf %24, %30 : vector<256x128xf32>
    %32 = vector.extract_strided_slice %2 {offsets = [1, 1, 0], sizes = [16, 16, 128], strides = [1, 1, 1]} : vector<18x18x128xf32> to vector<16x16x128xf32>
    %33 = vector.shape_cast %32 : vector<16x16x128xf32> to vector<256x128xf32>
    %34 = arith.truncf %33 : vector<256x128xf32> to vector<256x128xbf16>
    %c4 = arith.constant 4 : index
    %c0_16 = arith.constant 0 : index
    %c0_17 = arith.constant 0 : index
    %35 = vector.load %arg2[%c4, %c0_16, %c0_17] : memref<9x128x128xbf16, #tpu.memory_space<vmem>>, vector<1x128x128xbf16>
    %36 = vector.shape_cast %35 : vector<1x128x128xbf16> to vector<128x128xbf16>
    %cst_18 = arith.constant dense<0.000000e+00> : vector<256x128xf32>
    %37 = tpu.matmul %34, %36, %cst_18 {dimension_numbers = #tpu.dot_dimension_numbers<[1], [0], [0], [1], [0, 0, 1, 1], [], []>} : vector<256x128xbf16>, vector<128x128xbf16>, vector<256x128xf32> -> vector<256x128xf32>
    %38 = arith.addf %31, %37 : vector<256x128xf32>
    %39 = vector.extract_strided_slice %2 {offsets = [1, 2, 0], sizes = [16, 16, 128], strides = [1, 1, 1]} : vector<18x18x128xf32> to vector<16x16x128xf32>
    %40 = vector.shape_cast %39 : vector<16x16x128xf32> to vector<256x128xf32>
    %41 = arith.truncf %40 : vector<256x128xf32> to vector<256x128xbf16>
    %c5 = arith.constant 5 : index
    %c0_19 = arith.constant 0 : index
    %c0_20 = arith.constant 0 : index
    %42 = vector.load %arg2[%c5, %c0_19, %c0_20] : memref<9x128x128xbf16, #tpu.memory_space<vmem>>, vector<1x128x128xbf16>
    %43 = vector.shape_cast %42 : vector<1x128x128xbf16> to vector<128x128xbf16>
    %cst_21 = arith.constant dense<0.000000e+00> : vector<256x128xf32>
    %44 = tpu.matmul %41, %43, %cst_21 {dimension_numbers = #tpu.dot_dimension_numbers<[1], [0], [0], [1], [0, 0, 1, 1], [], []>} : vector<256x128xbf16>, vector<128x128xbf16>, vector<256x128xf32> -> vector<256x128xf32>
    %45 = arith.addf %38, %44 : vector<256x128xf32>
    %46 = vector.extract_strided_slice %2 {offsets = [2, 0, 0], sizes = [16, 16, 128], strides = [1, 1, 1]} : vector<18x18x128xf32> to vector<16x16x128xf32>
    %47 = vector.shape_cast %46 : vector<16x16x128xf32> to vector<256x128xf32>
    %48 = arith.truncf %47 : vector<256x128xf32> to vector<256x128xbf16>
    %c6 = arith.constant 6 : index
    %c0_22 = arith.constant 0 : index
    %c0_23 = arith.constant 0 : index
    %49 = vector.load %arg2[%c6, %c0_22, %c0_23] : memref<9x128x128xbf16, #tpu.memory_space<vmem>>, vector<1x128x128xbf16>
    %50 = vector.shape_cast %49 : vector<1x128x128xbf16> to vector<128x128xbf16>
    %cst_24 = arith.constant dense<0.000000e+00> : vector<256x128xf32>
    %51 = tpu.matmul %48, %50, %cst_24 {dimension_numbers = #tpu.dot_dimension_numbers<[1], [0], [0], [1], [0, 0, 1, 1], [], []>} : vector<256x128xbf16>, vector<128x128xbf16>, vector<256x128xf32> -> vector<256x128xf32>
    %52 = arith.addf %45, %51 : vector<256x128xf32>
    %53 = vector.extract_strided_slice %2 {offsets = [2, 1, 0], sizes = [16, 16, 128], strides = [1, 1, 1]} : vector<18x18x128xf32> to vector<16x16x128xf32>
    %54 = vector.shape_cast %53 : vector<16x16x128xf32> to vector<256x128xf32>
    %55 = arith.truncf %54 : vector<256x128xf32> to vector<256x128xbf16>
    %c7 = arith.constant 7 : index
    %c0_25 = arith.constant 0 : index
    %c0_26 = arith.constant 0 : index
    %56 = vector.load %arg2[%c7, %c0_25, %c0_26] : memref<9x128x128xbf16, #tpu.memory_space<vmem>>, vector<1x128x128xbf16>
    %57 = vector.shape_cast %56 : vector<1x128x128xbf16> to vector<128x128xbf16>
    %cst_27 = arith.constant dense<0.000000e+00> : vector<256x128xf32>
    %58 = tpu.matmul %55, %57, %cst_27 {dimension_numbers = #tpu.dot_dimension_numbers<[1], [0], [0], [1], [0, 0, 1, 1], [], []>} : vector<256x128xbf16>, vector<128x128xbf16>, vector<256x128xf32> -> vector<256x128xf32>
    %59 = arith.addf %52, %58 : vector<256x128xf32>
    %60 = vector.extract_strided_slice %2 {offsets = [2, 2, 0], sizes = [16, 16, 128], strides = [1, 1, 1]} : vector<18x18x128xf32> to vector<16x16x128xf32>
    %61 = vector.shape_cast %60 : vector<16x16x128xf32> to vector<256x128xf32>
    %62 = arith.truncf %61 : vector<256x128xf32> to vector<256x128xbf16>
    %c8 = arith.constant 8 : index
    %c0_28 = arith.constant 0 : index
    %c0_29 = arith.constant 0 : index
    %63 = vector.load %arg2[%c8, %c0_28, %c0_29] : memref<9x128x128xbf16, #tpu.memory_space<vmem>>, vector<1x128x128xbf16>
    %64 = vector.shape_cast %63 : vector<1x128x128xbf16> to vector<128x128xbf16>
    %cst_30 = arith.constant dense<0.000000e+00> : vector<256x128xf32>
    %65 = tpu.matmul %62, %64, %cst_30 {dimension_numbers = #tpu.dot_dimension_numbers<[1], [0], [0], [1], [0, 0, 1, 1], [], []>} : vector<256x128xbf16>, vector<128x128xbf16>, vector<256x128xf32> -> vector<256x128xf32>
    %66 = arith.addf %59, %65 : vector<256x128xf32>
    %c0_31 = arith.constant 0 : index
    %c0_32 = arith.constant 0 : index
    %67 = vector.load %arg3[%c0_31, %c0_32] : memref<1x128xf32, #tpu.memory_space<vmem>>, vector<1x128xf32>
    %68 = vector.broadcast %67 : vector<1x128xf32> to vector<256x128xf32>
    %69 = arith.addf %66, %68 : vector<256x128xf32>
    %cst_33 = arith.constant dense<0.000000e+00> : vector<128xf32>
    %70 = vector.multi_reduction <add>, %69, %cst_33 [0] : vector<256x128xf32> to vector<128xf32>
    %71 = vector.shape_cast %70 : vector<128xf32> to vector<1x128xf32>
    %c0_34 = arith.constant 0 : index
    %c0_35 = arith.constant 0 : index
    %c0_36 = arith.constant 0 : index
    %72 = vector.load %arg5[%c0_34, %c0_35, %c0_36] : memref<1x2x128xf32, #tpu.memory_space<vmem>>, vector<1x1x128xf32>
    %73 = vector.shape_cast %72 : vector<1x1x128xf32> to vector<1x128xf32>
    %74 = vector.shape_cast %71 : vector<1x128xf32> to vector<1x1x128xf32>
    tpu.vector_store %arg5[%c0_34, %c0_35, %c0_36], %74 {strides = array<i32>} : memref<1x2x128xf32, #tpu.memory_space<vmem>>, vector<1x1x128xf32>,
    %75 = arith.mulf %69, %69 : vector<256x128xf32>
    %cst_37 = arith.constant dense<0.000000e+00> : vector<128xf32>
    %76 = vector.multi_reduction <add>, %75, %cst_37 [0] : vector<256x128xf32> to vector<128xf32>
    %77 = vector.shape_cast %76 : vector<128xf32> to vector<1x128xf32>
    %c0_38 = arith.constant 0 : index
    %c1_39 = arith.constant 1 : index
    %c0_40 = arith.constant 0 : index
    %78 = vector.load %arg5[%c0_38, %c1_39, %c0_40] : memref<1x2x128xf32, #tpu.memory_space<vmem>>, vector<1x1x128xf32>
    %79 = vector.shape_cast %78 : vector<1x1x128xf32> to vector<1x128xf32>
    %80 = vector.shape_cast %77 : vector<1x128xf32> to vector<1x1x128xf32>
    tpu.vector_store %arg5[%c0_38, %c1_39, %c0_40], %80 {strides = array<i32>} : memref<1x2x128xf32, #tpu.memory_space<vmem>>, vector<1x1x128xf32>,
    %81 = vector.shape_cast %69 : vector<256x128xf32> to vector<16x16x128xf32>
    %82 = arith.truncf %81 : vector<16x16x128xf32> to vector<16x16x128xbf16>
    %c0_41 = arith.constant 0 : index
    %c0_42 = arith.constant 0 : index
    %c0_43 = arith.constant 0 : index
    %c0_44 = arith.constant 0 : index
    %83 = vector.load %arg4[%c0_41, %c0_42, %c0_43, %c0_44] : memref<1x16x16x128xbf16, #tpu.memory_space<vmem>>, vector<1x16x16x128xbf16>
    %84 = vector.shape_cast %83 : vector<1x16x16x128xbf16> to vector<16x16x128xbf16>
    %85 = vector.shape_cast %82 : vector<16x16x128xbf16> to vector<1x16x16x128xbf16>
    tpu.vector_store %arg4[%c0_41, %c0_42, %c0_43, %c0_44], %85 {strides = array<i32>} : memref<1x16x16x128xbf16, #tpu.memory_space<vmem>>, vector<1x16x16x128xbf16>,
    return
  }
  func.func @transform_0(%arg0: i32) -> (i32, i32, i32, i32) {
    %c0_i32 = arith.constant 0 : i32
    %c0_i32_0 = arith.constant 0 : i32
    %c0_i32_1 = arith.constant 0 : i32
    %c0_i32_2 = arith.constant 0 : i32
    return %arg0, %c0_i32, %c0_i32_0, %c0_i32_1 : i32, i32, i32, i32
  }
  func.func @transform_1(%arg0: i32) -> (i32, i32, i32) {
    %c0_i32 = arith.constant 0 : i32
    %c0_i32_0 = arith.constant 0 : i32
    %c0_i32_1 = arith.constant 0 : i32
    %c0_i32_2 = arith.constant 0 : i32
    return %c0_i32, %c0_i32_0, %c0_i32_1 : i32, i32, i32
  }
  func.func @transform_2(%arg0: i32) -> (i32, i32) {
    %c0_i32 = arith.constant 0 : i32
    %c0_i32_0 = arith.constant 0 : i32
    %c0_i32_1 = arith.constant 0 : i32
    return %c0_i32, %c0_i32_0 : i32, i32
  }
  func.func @transform_3(%arg0: i32) -> (i32, i32, i32, i32) {
    %c0_i32 = arith.constant 0 : i32
    %c0_i32_0 = arith.constant 0 : i32
    %c0_i32_1 = arith.constant 0 : i32
    %c0_i32_2 = arith.constant 0 : i32
    return %arg0, %c0_i32, %c0_i32_0, %c0_i32_1 : i32, i32, i32, i32
  }
  func.func @transform_4(%arg0: i32) -> (i32, i32, i32) {
    %c0_i32 = arith.constant 0 : i32
    %c0_i32_0 = arith.constant 0 : i32
    %c0_i32_1 = arith.constant 0 : i32
    return %arg0, %c0_i32, %c0_i32_0 : i32, i32, i32
  }
}

module attributes {stable_mosaic.version = 11 : i64} {
  func.func @_bn_relu_conv_stats_kernel(%arg0: i32, %arg1: memref<1x16x16x128xbf16, #tpu.memory_space<vmem>>, %arg2: memref<1x128xf32, #tpu.memory_space<vmem>>, %arg3: memref<1x128xf32, #tpu.memory_space<vmem>>, %arg4: memref<9x128x128xbf16, #tpu.memory_space<vmem>>, %arg5: memref<1x128xf32, #tpu.memory_space<vmem>>, %arg6: memref<1x16x16x128xf32, #tpu.memory_space<vmem>>, %arg7: memref<1x2x128xf32, #tpu.memory_space<vmem>>, %arg8: memref<18x18x128xf32, #tpu.memory_space<vmem>>) attributes {dimension_semantics = [#tpu.dimension_semantics<parallel>], iteration_bounds = array<i64: 2>, scalar_prefetch = 0 : i64, scratch_operands = 1 : i64, tpu.core_type = #tpu.core_type<tc>, window_params = [{transform_indices = @transform_0, window_bounds = array<i64: 1, 16, 16, 128>}, {pipeline_mode = #tpu.pipeline_mode<synchronous>, transform_indices = @transform_1, window_bounds = array<i64: 1, 128>}, {pipeline_mode = #tpu.pipeline_mode<synchronous>, transform_indices = @transform_2, window_bounds = array<i64: 1, 128>}, {pipeline_mode = #tpu.pipeline_mode<synchronous>, transform_indices = @transform_3, window_bounds = array<i64: 9, 128, 128>}, {pipeline_mode = #tpu.pipeline_mode<synchronous>, transform_indices = @transform_4, window_bounds = array<i64: 1, 128>}, {transform_indices = @transform_5, window_bounds = array<i64: 1, 16, 16, 128>}, {transform_indices = @transform_6, window_bounds = array<i64: 1, 2, 128>}]} {
    %c0 = arith.constant 0 : index
    %c0_0 = arith.constant 0 : index
    %c0_1 = arith.constant 0 : index
    %c0_2 = arith.constant 0 : index
    %0 = vector.load %arg1[%c0, %c0_0, %c0_1, %c0_2] : memref<1x16x16x128xbf16, #tpu.memory_space<vmem>>, vector<1x16x16x128xbf16>
    %1 = vector.shape_cast %0 : vector<1x16x16x128xbf16> to vector<16x16x128xbf16>
    %2 = arith.extf %1 : vector<16x16x128xbf16> to vector<16x16x128xf32>
    %c0_3 = arith.constant 0 : index
    %c0_4 = arith.constant 0 : index
    %3 = vector.load %arg2[%c0_3, %c0_4] : memref<1x128xf32, #tpu.memory_space<vmem>>, vector<1x128xf32>
    %4 = vector.shape_cast %3 : vector<1x128xf32> to vector<1x1x128xf32>
    %5 = vector.broadcast %4 : vector<1x1x128xf32> to vector<16x16x128xf32>
    %6 = arith.mulf %2, %5 : vector<16x16x128xf32>
    %c0_5 = arith.constant 0 : index
    %c0_6 = arith.constant 0 : index
    %7 = vector.load %arg3[%c0_5, %c0_6] : memref<1x128xf32, #tpu.memory_space<vmem>>, vector<1x128xf32>
    %8 = vector.shape_cast %7 : vector<1x128xf32> to vector<1x1x128xf32>
    %9 = vector.broadcast %8 : vector<1x1x128xf32> to vector<16x16x128xf32>
    %10 = arith.addf %6, %9 : vector<16x16x128xf32>
    %cst = arith.constant 0.000000e+00 : f32
    %11 = vector.broadcast %cst : f32 to vector<16x16x128xf32>
    %12 = arith.maximumf %10, %11 : vector<16x16x128xf32>
    %cst_7 = arith.constant 0.000000e+00 : f32
    %13 = vector.broadcast %cst_7 : f32 to vector<1x18x128xf32>
    %cst_8 = arith.constant 0.000000e+00 : f32
    %14 = vector.broadcast %cst_8 : f32 to vector<18x1x128xf32>
    %c0_9 = arith.constant 0 : index
    %c0_10 = arith.constant 0 : index
    %c0_11 = arith.constant 0 : index
    %15 = vector.load %arg8[%c0_9, %c0_10, %c0_11] : memref<18x18x128xf32, #tpu.memory_space<vmem>>, vector<1x18x128xf32>
    tpu.vector_store %arg8[%c0_9, %c0_10, %c0_11], %13 {strides = array<i32>} : memref<18x18x128xf32, #tpu.memory_space<vmem>>, vector<1x18x128xf32>,
    %c17 = arith.constant 17 : index
    %c0_12 = arith.constant 0 : index
    %c0_13 = arith.constant 0 : index
    %16 = vector.load %arg8[%c17, %c0_12, %c0_13] : memref<18x18x128xf32, #tpu.memory_space<vmem>>, vector<1x18x128xf32>
    tpu.vector_store %arg8[%c17, %c0_12, %c0_13], %13 {strides = array<i32>} : memref<18x18x128xf32, #tpu.memory_space<vmem>>, vector<1x18x128xf32>,
    %c0_14 = arith.constant 0 : index
    %c0_15 = arith.constant 0 : index
    %c0_16 = arith.constant 0 : index
    %17 = vector.load %arg8[%c0_14, %c0_15, %c0_16] : memref<18x18x128xf32, #tpu.memory_space<vmem>>, vector<18x1x128xf32>
    tpu.vector_store %arg8[%c0_14, %c0_15, %c0_16], %14 {strides = array<i32>} : memref<18x18x128xf32, #tpu.memory_space<vmem>>, vector<18x1x128xf32>,
    %c0_17 = arith.constant 0 : index
    %c17_18 = arith.constant 17 : index
    %c0_19 = arith.constant 0 : index
    %18 = vector.load %arg8[%c0_17, %c17_18, %c0_19] : memref<18x18x128xf32, #tpu.memory_space<vmem>>, vector<18x1x128xf32>
    tpu.vector_store %arg8[%c0_17, %c17_18, %c0_19], %14 {strides = array<i32>} : memref<18x18x128xf32, #tpu.memory_space<vmem>>, vector<18x1x128xf32>,
    %c1 = arith.constant 1 : index
    %c1_20 = arith.constant 1 : index
    %c0_21 = arith.constant 0 : index
    %19 = vector.load %arg8[%c1, %c1_20, %c0_21] : memref<18x18x128xf32, #tpu.memory_space<vmem>>, vector<16x16x128xf32>
    tpu.vector_store %arg8[%c1, %c1_20, %c0_21], %12 {strides = array<i32>} : memref<18x18x128xf32, #tpu.memory_space<vmem>>, vector<16x16x128xf32>,
    %cst_22 = arith.constant 0.000000e+00 : f32
    %20 = vector.broadcast %cst_22 : f32 to vector<256x128xf32>
    %c0_23 = arith.constant 0 : index
    %c0_24 = arith.constant 0 : index
    %c0_25 = arith.constant 0 : index
    %21 = vector.load %arg8[%c0_23, %c0_24, %c0_25] : memref<18x18x128xf32, #tpu.memory_space<vmem>>, vector<16x16x128xf32>
    %22 = vector.shape_cast %21 : vector<16x16x128xf32> to vector<256x128xf32>
    %23 = arith.truncf %22 : vector<256x128xf32> to vector<256x128xbf16>
    %c0_26 = arith.constant 0 : index
    %c0_27 = arith.constant 0 : index
    %c0_28 = arith.constant 0 : index
    %24 = vector.load %arg4[%c0_26, %c0_27, %c0_28] : memref<9x128x128xbf16, #tpu.memory_space<vmem>>, vector<1x128x128xbf16>
    %25 = vector.shape_cast %24 : vector<1x128x128xbf16> to vector<128x128xbf16>
    %cst_29 = arith.constant dense<0.000000e+00> : vector<256x128xf32>
    %26 = tpu.matmul %23, %25, %cst_29 {dimension_numbers = #tpu.dot_dimension_numbers<[1], [0], [0], [1], [0, 0, 1, 1], [], []>} : vector<256x128xbf16>, vector<128x128xbf16>, vector<256x128xf32> -> vector<256x128xf32>
    %27 = arith.addf %20, %26 : vector<256x128xf32>
    %c0_30 = arith.constant 0 : index
    %c1_31 = arith.constant 1 : index
    %c0_32 = arith.constant 0 : index
    %28 = vector.load %arg8[%c0_30, %c1_31, %c0_32] : memref<18x18x128xf32, #tpu.memory_space<vmem>>, vector<16x16x128xf32>
    %29 = vector.shape_cast %28 : vector<16x16x128xf32> to vector<256x128xf32>
    %30 = arith.truncf %29 : vector<256x128xf32> to vector<256x128xbf16>
    %c1_33 = arith.constant 1 : index
    %c0_34 = arith.constant 0 : index
    %c0_35 = arith.constant 0 : index
    %31 = vector.load %arg4[%c1_33, %c0_34, %c0_35] : memref<9x128x128xbf16, #tpu.memory_space<vmem>>, vector<1x128x128xbf16>
    %32 = vector.shape_cast %31 : vector<1x128x128xbf16> to vector<128x128xbf16>
    %cst_36 = arith.constant dense<0.000000e+00> : vector<256x128xf32>
    %33 = tpu.matmul %30, %32, %cst_36 {dimension_numbers = #tpu.dot_dimension_numbers<[1], [0], [0], [1], [0, 0, 1, 1], [], []>} : vector<256x128xbf16>, vector<128x128xbf16>, vector<256x128xf32> -> vector<256x128xf32>
    %34 = arith.addf %27, %33 : vector<256x128xf32>
    %c0_37 = arith.constant 0 : index
    %c2 = arith.constant 2 : index
    %c0_38 = arith.constant 0 : index
    %35 = vector.load %arg8[%c0_37, %c2, %c0_38] : memref<18x18x128xf32, #tpu.memory_space<vmem>>, vector<16x16x128xf32>
    %36 = vector.shape_cast %35 : vector<16x16x128xf32> to vector<256x128xf32>
    %37 = arith.truncf %36 : vector<256x128xf32> to vector<256x128xbf16>
    %c2_39 = arith.constant 2 : index
    %c0_40 = arith.constant 0 : index
    %c0_41 = arith.constant 0 : index
    %38 = vector.load %arg4[%c2_39, %c0_40, %c0_41] : memref<9x128x128xbf16, #tpu.memory_space<vmem>>, vector<1x128x128xbf16>
    %39 = vector.shape_cast %38 : vector<1x128x128xbf16> to vector<128x128xbf16>
    %cst_42 = arith.constant dense<0.000000e+00> : vector<256x128xf32>
    %40 = tpu.matmul %37, %39, %cst_42 {dimension_numbers = #tpu.dot_dimension_numbers<[1], [0], [0], [1], [0, 0, 1, 1], [], []>} : vector<256x128xbf16>, vector<128x128xbf16>, vector<256x128xf32> -> vector<256x128xf32>
    %41 = arith.addf %34, %40 : vector<256x128xf32>
    %c1_43 = arith.constant 1 : index
    %c0_44 = arith.constant 0 : index
    %c0_45 = arith.constant 0 : index
    %42 = vector.load %arg8[%c1_43, %c0_44, %c0_45] : memref<18x18x128xf32, #tpu.memory_space<vmem>>, vector<16x16x128xf32>
    %43 = vector.shape_cast %42 : vector<16x16x128xf32> to vector<256x128xf32>
    %44 = arith.truncf %43 : vector<256x128xf32> to vector<256x128xbf16>
    %c3 = arith.constant 3 : index
    %c0_46 = arith.constant 0 : index
    %c0_47 = arith.constant 0 : index
    %45 = vector.load %arg4[%c3, %c0_46, %c0_47] : memref<9x128x128xbf16, #tpu.memory_space<vmem>>, vector<1x128x128xbf16>
    %46 = vector.shape_cast %45 : vector<1x128x128xbf16> to vector<128x128xbf16>
    %cst_48 = arith.constant dense<0.000000e+00> : vector<256x128xf32>
    %47 = tpu.matmul %44, %46, %cst_48 {dimension_numbers = #tpu.dot_dimension_numbers<[1], [0], [0], [1], [0, 0, 1, 1], [], []>} : vector<256x128xbf16>, vector<128x128xbf16>, vector<256x128xf32> -> vector<256x128xf32>
    %48 = arith.addf %41, %47 : vector<256x128xf32>
    %c1_49 = arith.constant 1 : index
    %c1_50 = arith.constant 1 : index
    %c0_51 = arith.constant 0 : index
    %49 = vector.load %arg8[%c1_49, %c1_50, %c0_51] : memref<18x18x128xf32, #tpu.memory_space<vmem>>, vector<16x16x128xf32>
    %50 = vector.shape_cast %49 : vector<16x16x128xf32> to vector<256x128xf32>
    %51 = arith.truncf %50 : vector<256x128xf32> to vector<256x128xbf16>
    %c4 = arith.constant 4 : index
    %c0_52 = arith.constant 0 : index
    %c0_53 = arith.constant 0 : index
    %52 = vector.load %arg4[%c4, %c0_52, %c0_53] : memref<9x128x128xbf16, #tpu.memory_space<vmem>>, vector<1x128x128xbf16>
    %53 = vector.shape_cast %52 : vector<1x128x128xbf16> to vector<128x128xbf16>
    %cst_54 = arith.constant dense<0.000000e+00> : vector<256x128xf32>
    %54 = tpu.matmul %51, %53, %cst_54 {dimension_numbers = #tpu.dot_dimension_numbers<[1], [0], [0], [1], [0, 0, 1, 1], [], []>} : vector<256x128xbf16>, vector<128x128xbf16>, vector<256x128xf32> -> vector<256x128xf32>
    %55 = arith.addf %48, %54 : vector<256x128xf32>
    %c1_55 = arith.constant 1 : index
    %c2_56 = arith.constant 2 : index
    %c0_57 = arith.constant 0 : index
    %56 = vector.load %arg8[%c1_55, %c2_56, %c0_57] : memref<18x18x128xf32, #tpu.memory_space<vmem>>, vector<16x16x128xf32>
    %57 = vector.shape_cast %56 : vector<16x16x128xf32> to vector<256x128xf32>
    %58 = arith.truncf %57 : vector<256x128xf32> to vector<256x128xbf16>
    %c5 = arith.constant 5 : index
    %c0_58 = arith.constant 0 : index
    %c0_59 = arith.constant 0 : index
    %59 = vector.load %arg4[%c5, %c0_58, %c0_59] : memref<9x128x128xbf16, #tpu.memory_space<vmem>>, vector<1x128x128xbf16>
    %60 = vector.shape_cast %59 : vector<1x128x128xbf16> to vector<128x128xbf16>
    %cst_60 = arith.constant dense<0.000000e+00> : vector<256x128xf32>
    %61 = tpu.matmul %58, %60, %cst_60 {dimension_numbers = #tpu.dot_dimension_numbers<[1], [0], [0], [1], [0, 0, 1, 1], [], []>} : vector<256x128xbf16>, vector<128x128xbf16>, vector<256x128xf32> -> vector<256x128xf32>
    %62 = arith.addf %55, %61 : vector<256x128xf32>
    %c2_61 = arith.constant 2 : index
    %c0_62 = arith.constant 0 : index
    %c0_63 = arith.constant 0 : index
    %63 = vector.load %arg8[%c2_61, %c0_62, %c0_63] : memref<18x18x128xf32, #tpu.memory_space<vmem>>, vector<16x16x128xf32>
    %64 = vector.shape_cast %63 : vector<16x16x128xf32> to vector<256x128xf32>
    %65 = arith.truncf %64 : vector<256x128xf32> to vector<256x128xbf16>
    %c6 = arith.constant 6 : index
    %c0_64 = arith.constant 0 : index
    %c0_65 = arith.constant 0 : index
    %66 = vector.load %arg4[%c6, %c0_64, %c0_65] : memref<9x128x128xbf16, #tpu.memory_space<vmem>>, vector<1x128x128xbf16>
    %67 = vector.shape_cast %66 : vector<1x128x128xbf16> to vector<128x128xbf16>
    %cst_66 = arith.constant dense<0.000000e+00> : vector<256x128xf32>
    %68 = tpu.matmul %65, %67, %cst_66 {dimension_numbers = #tpu.dot_dimension_numbers<[1], [0], [0], [1], [0, 0, 1, 1], [], []>} : vector<256x128xbf16>, vector<128x128xbf16>, vector<256x128xf32> -> vector<256x128xf32>
    %69 = arith.addf %62, %68 : vector<256x128xf32>
    %c2_67 = arith.constant 2 : index
    %c1_68 = arith.constant 1 : index
    %c0_69 = arith.constant 0 : index
    %70 = vector.load %arg8[%c2_67, %c1_68, %c0_69] : memref<18x18x128xf32, #tpu.memory_space<vmem>>, vector<16x16x128xf32>
    %71 = vector.shape_cast %70 : vector<16x16x128xf32> to vector<256x128xf32>
    %72 = arith.truncf %71 : vector<256x128xf32> to vector<256x128xbf16>
    %c7 = arith.constant 7 : index
    %c0_70 = arith.constant 0 : index
    %c0_71 = arith.constant 0 : index
    %73 = vector.load %arg4[%c7, %c0_70, %c0_71] : memref<9x128x128xbf16, #tpu.memory_space<vmem>>, vector<1x128x128xbf16>
    %74 = vector.shape_cast %73 : vector<1x128x128xbf16> to vector<128x128xbf16>
    %cst_72 = arith.constant dense<0.000000e+00> : vector<256x128xf32>
    %75 = tpu.matmul %72, %74, %cst_72 {dimension_numbers = #tpu.dot_dimension_numbers<[1], [0], [0], [1], [0, 0, 1, 1], [], []>} : vector<256x128xbf16>, vector<128x128xbf16>, vector<256x128xf32> -> vector<256x128xf32>
    %76 = arith.addf %69, %75 : vector<256x128xf32>
    %c2_73 = arith.constant 2 : index
    %c2_74 = arith.constant 2 : index
    %c0_75 = arith.constant 0 : index
    %77 = vector.load %arg8[%c2_73, %c2_74, %c0_75] : memref<18x18x128xf32, #tpu.memory_space<vmem>>, vector<16x16x128xf32>
    %78 = vector.shape_cast %77 : vector<16x16x128xf32> to vector<256x128xf32>
    %79 = arith.truncf %78 : vector<256x128xf32> to vector<256x128xbf16>
    %c8 = arith.constant 8 : index
    %c0_76 = arith.constant 0 : index
    %c0_77 = arith.constant 0 : index
    %80 = vector.load %arg4[%c8, %c0_76, %c0_77] : memref<9x128x128xbf16, #tpu.memory_space<vmem>>, vector<1x128x128xbf16>
    %81 = vector.shape_cast %80 : vector<1x128x128xbf16> to vector<128x128xbf16>
    %cst_78 = arith.constant dense<0.000000e+00> : vector<256x128xf32>
    %82 = tpu.matmul %79, %81, %cst_78 {dimension_numbers = #tpu.dot_dimension_numbers<[1], [0], [0], [1], [0, 0, 1, 1], [], []>} : vector<256x128xbf16>, vector<128x128xbf16>, vector<256x128xf32> -> vector<256x128xf32>
    %83 = arith.addf %76, %82 : vector<256x128xf32>
    %c0_79 = arith.constant 0 : index
    %c0_80 = arith.constant 0 : index
    %84 = vector.load %arg5[%c0_79, %c0_80] : memref<1x128xf32, #tpu.memory_space<vmem>>, vector<1x128xf32>
    %85 = vector.broadcast %84 : vector<1x128xf32> to vector<256x128xf32>
    %86 = arith.addf %83, %85 : vector<256x128xf32>
    %cst_81 = arith.constant dense<0.000000e+00> : vector<128xf32>
    %87 = vector.multi_reduction <add>, %86, %cst_81 [0] : vector<256x128xf32> to vector<128xf32>
    %88 = vector.shape_cast %87 : vector<128xf32> to vector<1x128xf32>
    %c0_82 = arith.constant 0 : index
    %c0_83 = arith.constant 0 : index
    %c0_84 = arith.constant 0 : index
    %89 = vector.load %arg7[%c0_82, %c0_83, %c0_84] : memref<1x2x128xf32, #tpu.memory_space<vmem>>, vector<1x1x128xf32>
    %90 = vector.shape_cast %89 : vector<1x1x128xf32> to vector<1x128xf32>
    %91 = vector.shape_cast %88 : vector<1x128xf32> to vector<1x1x128xf32>
    tpu.vector_store %arg7[%c0_82, %c0_83, %c0_84], %91 {strides = array<i32>} : memref<1x2x128xf32, #tpu.memory_space<vmem>>, vector<1x1x128xf32>,
    %92 = arith.mulf %86, %86 : vector<256x128xf32>
    %cst_85 = arith.constant dense<0.000000e+00> : vector<128xf32>
    %93 = vector.multi_reduction <add>, %92, %cst_85 [0] : vector<256x128xf32> to vector<128xf32>
    %94 = vector.shape_cast %93 : vector<128xf32> to vector<1x128xf32>
    %c0_86 = arith.constant 0 : index
    %c1_87 = arith.constant 1 : index
    %c0_88 = arith.constant 0 : index
    %95 = vector.load %arg7[%c0_86, %c1_87, %c0_88] : memref<1x2x128xf32, #tpu.memory_space<vmem>>, vector<1x1x128xf32>
    %96 = vector.shape_cast %95 : vector<1x1x128xf32> to vector<1x128xf32>
    %97 = vector.shape_cast %94 : vector<1x128xf32> to vector<1x1x128xf32>
    tpu.vector_store %arg7[%c0_86, %c1_87, %c0_88], %97 {strides = array<i32>} : memref<1x2x128xf32, #tpu.memory_space<vmem>>, vector<1x1x128xf32>,
    %98 = vector.shape_cast %86 : vector<256x128xf32> to vector<16x16x128xf32>
    %c0_89 = arith.constant 0 : index
    %c0_90 = arith.constant 0 : index
    %c0_91 = arith.constant 0 : index
    %c0_92 = arith.constant 0 : index
    %99 = vector.load %arg6[%c0_89, %c0_90, %c0_91, %c0_92] : memref<1x16x16x128xf32, #tpu.memory_space<vmem>>, vector<1x16x16x128xf32>
    %100 = vector.shape_cast %99 : vector<1x16x16x128xf32> to vector<16x16x128xf32>
    %101 = vector.shape_cast %98 : vector<16x16x128xf32> to vector<1x16x16x128xf32>
    tpu.vector_store %arg6[%c0_89, %c0_90, %c0_91, %c0_92], %101 {strides = array<i32>} : memref<1x16x16x128xf32, #tpu.memory_space<vmem>>, vector<1x16x16x128xf32>,
    return
  }
  func.func @transform_0(%arg0: i32) -> (i32, i32, i32, i32) {
    %c0_i32 = arith.constant 0 : i32
    %c0_i32_0 = arith.constant 0 : i32
    %c0_i32_1 = arith.constant 0 : i32
    %c0_i32_2 = arith.constant 0 : i32
    return %arg0, %c0_i32, %c0_i32_0, %c0_i32_1 : i32, i32, i32, i32
  }
  func.func @transform_1(%arg0: i32) -> (i32, i32) {
    %c0_i32 = arith.constant 0 : i32
    %c0_i32_0 = arith.constant 0 : i32
    %c0_i32_1 = arith.constant 0 : i32
    return %c0_i32, %c0_i32_0 : i32, i32
  }
  func.func @transform_2(%arg0: i32) -> (i32, i32) {
    %c0_i32 = arith.constant 0 : i32
    %c0_i32_0 = arith.constant 0 : i32
    %c0_i32_1 = arith.constant 0 : i32
    return %c0_i32, %c0_i32_0 : i32, i32
  }
  func.func @transform_3(%arg0: i32) -> (i32, i32, i32) {
    %c0_i32 = arith.constant 0 : i32
    %c0_i32_0 = arith.constant 0 : i32
    %c0_i32_1 = arith.constant 0 : i32
    %c0_i32_2 = arith.constant 0 : i32
    return %c0_i32, %c0_i32_0, %c0_i32_1 : i32, i32, i32
  }
  func.func @transform_4(%arg0: i32) -> (i32, i32) {
    %c0_i32 = arith.constant 0 : i32
    %c0_i32_0 = arith.constant 0 : i32
    %c0_i32_1 = arith.constant 0 : i32
    return %c0_i32, %c0_i32_0 : i32, i32
  }
  func.func @transform_5(%arg0: i32) -> (i32, i32, i32, i32) {
    %c0_i32 = arith.constant 0 : i32
    %c0_i32_0 = arith.constant 0 : i32
    %c0_i32_1 = arith.constant 0 : i32
    %c0_i32_2 = arith.constant 0 : i32
    return %arg0, %c0_i32, %c0_i32_0, %c0_i32_1 : i32, i32, i32, i32
  }
  func.func @transform_6(%arg0: i32) -> (i32, i32, i32) {
    %c0_i32 = arith.constant 0 : i32
    %c0_i32_0 = arith.constant 0 : i32
    %c0_i32_1 = arith.constant 0 : i32
    return %arg0, %c0_i32, %c0_i32_0 : i32, i32, i32
  }
}

module attributes {stable_mosaic.version = 11 : i64} {
  func.func @_bn_relu_kernel(%arg0: i32, %arg1: memref<1x16x16x128xf32, #tpu.memory_space<vmem>>, %arg2: memref<1x128xf32, #tpu.memory_space<vmem>>, %arg3: memref<1x128xf32, #tpu.memory_space<vmem>>, %arg4: memref<1x16x16x128xf32, #tpu.memory_space<vmem>>) attributes {dimension_semantics = [#tpu.dimension_semantics<parallel>], iteration_bounds = array<i64: 2>, scalar_prefetch = 0 : i64, scratch_operands = 0 : i64, tpu.core_type = #tpu.core_type<tc>, window_params = [{transform_indices = @transform_0, window_bounds = array<i64: 1, 16, 16, 128>}, {pipeline_mode = #tpu.pipeline_mode<synchronous>, transform_indices = @transform_1, window_bounds = array<i64: 1, 128>}, {pipeline_mode = #tpu.pipeline_mode<synchronous>, transform_indices = @transform_2, window_bounds = array<i64: 1, 128>}, {transform_indices = @transform_3, window_bounds = array<i64: 1, 16, 16, 128>}]} {
    %c0 = arith.constant 0 : index
    %c0_0 = arith.constant 0 : index
    %c0_1 = arith.constant 0 : index
    %c0_2 = arith.constant 0 : index
    %0 = vector.load %arg1[%c0, %c0_0, %c0_1, %c0_2] : memref<1x16x16x128xf32, #tpu.memory_space<vmem>>, vector<1x16x16x128xf32>
    %1 = vector.shape_cast %0 : vector<1x16x16x128xf32> to vector<16x16x128xf32>
    %c0_3 = arith.constant 0 : index
    %c0_4 = arith.constant 0 : index
    %2 = vector.load %arg2[%c0_3, %c0_4] : memref<1x128xf32, #tpu.memory_space<vmem>>, vector<1x128xf32>
    %3 = vector.shape_cast %2 : vector<1x128xf32> to vector<1x1x128xf32>
    %4 = vector.broadcast %3 : vector<1x1x128xf32> to vector<16x16x128xf32>
    %5 = arith.mulf %1, %4 : vector<16x16x128xf32>
    %c0_5 = arith.constant 0 : index
    %c0_6 = arith.constant 0 : index
    %6 = vector.load %arg3[%c0_5, %c0_6] : memref<1x128xf32, #tpu.memory_space<vmem>>, vector<1x128xf32>
    %7 = vector.shape_cast %6 : vector<1x128xf32> to vector<1x1x128xf32>
    %8 = vector.broadcast %7 : vector<1x1x128xf32> to vector<16x16x128xf32>
    %9 = arith.addf %5, %8 : vector<16x16x128xf32>
    %cst = arith.constant 0.000000e+00 : f32
    %10 = vector.broadcast %cst : f32 to vector<16x16x128xf32>
    %11 = arith.maximumf %9, %10 : vector<16x16x128xf32>
    %c0_7 = arith.constant 0 : index
    %c0_8 = arith.constant 0 : index
    %c0_9 = arith.constant 0 : index
    %c0_10 = arith.constant 0 : index
    %12 = vector.load %arg4[%c0_7, %c0_8, %c0_9, %c0_10] : memref<1x16x16x128xf32, #tpu.memory_space<vmem>>, vector<1x16x16x128xf32>
    %13 = vector.shape_cast %12 : vector<1x16x16x128xf32> to vector<16x16x128xf32>
    %14 = vector.shape_cast %11 : vector<16x16x128xf32> to vector<1x16x16x128xf32>
    tpu.vector_store %arg4[%c0_7, %c0_8, %c0_9, %c0_10], %14 {strides = array<i32>} : memref<1x16x16x128xf32, #tpu.memory_space<vmem>>, vector<1x16x16x128xf32>,
    return
  }
  func.func @transform_0(%arg0: i32) -> (i32, i32, i32, i32) {
    %c0_i32 = arith.constant 0 : i32
    %c0_i32_0 = arith.constant 0 : i32
    %c0_i32_1 = arith.constant 0 : i32
    %c0_i32_2 = arith.constant 0 : i32
    return %arg0, %c0_i32, %c0_i32_0, %c0_i32_1 : i32, i32, i32, i32
  }
  func.func @transform_1(%arg0: i32) -> (i32, i32) {
    %c0_i32 = arith.constant 0 : i32
    %c0_i32_0 = arith.constant 0 : i32
    %c0_i32_1 = arith.constant 0 : i32
    return %c0_i32, %c0_i32_0 : i32, i32
  }
  func.func @transform_2(%arg0: i32) -> (i32, i32) {
    %c0_i32 = arith.constant 0 : i32
    %c0_i32_0 = arith.constant 0 : i32
    %c0_i32_1 = arith.constant 0 : i32
    return %c0_i32, %c0_i32_0 : i32, i32
  }
  func.func @transform_3(%arg0: i32) -> (i32, i32, i32, i32) {
    %c0_i32 = arith.constant 0 : i32
    %c0_i32_0 = arith.constant 0 : i32
    %c0_i32_1 = arith.constant 0 : i32
    %c0_i32_2 = arith.constant 0 : i32
    return %arg0, %c0_i32, %c0_i32_0, %c0_i32_1 : i32, i32, i32, i32
  }
}

</mosaic_0001>

<llo_original>
// kernel: double_conv.5
$region0: #{double_conv.5}
  #allocation0 [shape = 'u32[]', space=smem, size = 0x4, offset = 0x4, fixed_abs, tag = 'smem constant byte address 0x4 - core index']
  #allocation1 [shape = 'u32[72,128]{1,0:T(1,128)}', space=vmem, size = 0x9000, scoped, tag = 'internal scratch']
  %s0 = inlined_call_operand.vmem [shape: f32[2,16,16,128], index: 0, kind: input, shape index: {}]
  %s1 = inlined_call_operand.vmem [shape: f32[1,128], index: 1, kind: input, shape index: {}]
  %s2 = inlined_call_operand.vmem [shape: f32[1,128], index: 2, kind: input, shape index: {}]
  %s3 = inlined_call_operand.vmem [shape: f32[2,16,16,128], index: 3, kind: output, shape index: {}]
  %s4 = sld [smem:[#allocation0]]
  $region45: #{double_conv.5} parent=0
    _
  %s6 = ssub.s32 1, %s4
  %s7 = scalar_select 0, %s6, %s4
  loop: start=0, step=1, limit=4
  $region2: #{double_conv.5} parent=0 // loop_pre_header
    _
  $region3: #{double_conv.5} parent=0 // loop_header
    %s9 = sphi 0, %s13
    %p10 = scmp.ge.s32.totalorder %s9, 4
    %s19 = sphi 0, %s21
    %s22 = sphi 0, %s19
    %s23 = sphi 0, %s22
    %s39 = sphi 0, %s23
    %s43 = sphi 0, %s43
    %s45 = sphi 0, %s43
    %s46 = sphi 0, %s45
    %s60 = sphi 0, %s46
    %s64 = sphi 0, %s64
    %s66 = sphi 0, %s64
    %s67 = sphi 0, %s66
    %s81 = sphi 0, %s67
    %s87 = sphi 0, %s89
    %s90 = sphi 0, %s87
    %s91 = sphi 0, %s90
    %s107 = sphi 0, %s91
  $region4: #{double_conv.5} parent=0 // loop_header_branch
    %12 = sbr.rel (%p10) target = $region8
  $region5: #{double_conv.5} parent=0 // loop_body
    %s14 = ssub.s32 %s9, 1
    %s15 = ssub.s32 %s9, 2
    %s16 = sadd.s32 %s9, 1
    %s17 = ssub.s32 %s9, %s16
    %p18 = scmp.eq.s32.totalorder %s17, 0
    %s20 = sadd.s32 %s19, 1
    %s21 = scalar_select %p18, %s19, %s20
    %p24 = pneg %p18
    %p25 = scmp.eq.s32.totalorder %s9, 1
    %p26 = por %p24, %p25
    %p27 = scmp.ne.s32.totalorder %s19, %s22
    %p28 = scmp.eq.s32.totalorder %s9, 0
    %p29 = por %p27, %p28
    %p30 = scmp.ne.s32.totalorder %s19, %s22
    %p31 = scmp.eq.s32.totalorder %s14, 1
    %p32 = por %p30, %p31
    %p33 = scmp.ne.s32.totalorder %s22, %s23
    %p34 = scmp.eq.s32.totalorder %s14, 0
    %p35 = por %p33, %p34
    %p36 = scmp.ne.s32.totalorder %s22, %s23
    %p37 = scmp.eq.s32.totalorder %s15, 1
    %p38 = por %p36, %p37
    %p40 = scmp.ne.s32.totalorder %s23, %s39
    %p41 = scmp.eq.s32.totalorder %s15, 0
    %p42 = por %p40, %p41
    %s44 = sadd.s32 %s43, 1
    %p47 = scmp.eq.s32.totalorder %s9, 1
    %p48 = scmp.ne.s32.totalorder %s43, %s45
    %p49 = scmp.eq.s32.totalorder %s9, 0
    %p50 = por %p48, %p49
    %p51 = scmp.ne.s32.totalorder %s43, %s45
    %p52 = scmp.eq.s32.totalorder %s14, 1
    %p53 = por %p51, %p52
    %p54 = scmp.ne.s32.totalorder %s45, %s46
    %p55 = scmp.eq.s32.totalorder %s14, 0
    %p56 = por %p54, %p55
    %p57 = scmp.ne.s32.totalorder %s45, %s46
    %p58 = scmp.eq.s32.totalorder %s15, 1
    %p59 = por %p57, %p58
    %p61 = scmp.ne.s32.totalorder %s46, %s60
    %p62 = scmp.eq.s32.totalorder %s15, 0
    %p63 = por %p61, %p62
    %s65 = sadd.s32 %s64, 1
    %p68 = scmp.eq.s32.totalorder %s9, 1
    %p69 = scmp.ne.s32.totalorder %s64, %s66
    %p70 = scmp.eq.s32.totalorder %s9, 0
    %p71 = por %p69, %p70
    %p72 = scmp.ne.s32.totalorder %s64, %s66
    %p73 = scmp.eq.s32.totalorder %s14, 1
    %p74 = por %p72, %p73
    %p75 = scmp.ne.s32.totalorder %s66, %s67
    %p76 = scmp.eq.s32.totalorder %s14, 0
    %p77 = por %p75, %p76
    %p78 = scmp.ne.s32.totalorder %s66, %s67
    %p79 = scmp.eq.s32.totalorder %s15, 1
    %p80 = por %p78, %p79
    %p82 = scmp.ne.s32.totalorder %s67, %s81
    %p83 = scmp.eq.s32.totalorder %s15, 0
    %p84 = por %p82, %p83
    %s85 = ssub.s32 %s9, %s16
    %p86 = scmp.eq.s32.totalorder %s85, 0
    %s88 = sadd.s32 %s87, 1
    %s89 = scalar_select %p86, %s87, %s88
    %p92 = pneg %p86
    %p93 = scmp.eq.s32.totalorder %s9, 1
    %p94 = por %p92, %p93
    %p95 = scmp.ne.s32.totalorder %s87, %s90
    %p96 = scmp.eq.s32.totalorder %s9, 0
    %p97 = por %p95, %p96
    %p98 = scmp.ne.s32.totalorder %s87, %s90
    %p99 = scmp.eq.s32.totalorder %s14, 1
    %p100 = por %p98, %p99
    %p101 = scmp.ne.s32.totalorder %s90, %s91
    %p102 = scmp.eq.s32.totalorder %s14, 0
    %p103 = por %p101, %p102
    %p104 = scmp.ne.s32.totalorder %s90, %s91
    %p105 = scmp.eq.s32.totalorder %s15, 1
    %p106 = por %p104, %p105
    %p108 = scmp.ne.s32.totalorder %s91, %s107
    %p109 = scmp.eq.s32.totalorder %s15, 0
    %p110 = por %p108, %p109
    %p111 = scmp.le.s32.totalorder 1, %s9
    %p112 = scmp.lt.s32.totalorder %s9, 3
    %p113 = pnand %p111, %p112
    %p114 = pneg %p113
    // Predicated region
    $region9: #{double_conv.5} parent=5 // pred_check
      _
    $region10: #{double_conv.5} parent=5 // pred_check_branch
      %116 = sbr.rel (%p113) target = $region12
    $region11: #{double_conv.5} parent=5 // pred_region
      %s117 = ssub.s32 %s9, 1
      // Predicated region
      $region13: #{double_conv.5} parent=11 // pred_check
        %p118 = pneg %p56
      $region14: #{double_conv.5} parent=11 // pred_check_branch
        %120 = sbr.rel (%p118) target = $region16
      $region15: #{double_conv.5} parent=11 // pred_region
        _
      $region16: #{double_conv.5} parent=11 // pred_fallthru
        _
      // Predicated region
      $region17: #{double_conv.5} parent=11 // pred_check
        %p121 = pneg %p77
      $region18: #{double_conv.5} parent=11 // pred_check_branch
        %123 = sbr.rel (%p121) target = $region20
      $region19: #{double_conv.5} parent=11 // pred_region
        _
      $region20: #{double_conv.5} parent=11 // pred_fallthru
        _
    $region12: #{double_conv.5} parent=5 // pred_fallthru
      _
    %p124 = scmp.lt.s32.totalorder %s9, 2
    // Predicated region
    $region21: #{double_conv.5} parent=5 // pred_check
      %p125 = pneg %p124
    $region22: #{double_conv.5} parent=5 // pred_check_branch
      %127 = sbr.rel (%p125) target = $region24
    $region23: #{double_conv.5} parent=5 // pred_region
      // Predicated region
      $region25: #{double_conv.5} parent=23 // pred_check
        %p128 = pneg %p29
      $region26: #{double_conv.5} parent=23 // pred_check_branch
        %130 = sbr.rel (%p128) target = $region28
      $region27: #{double_conv.5} parent=23 // pred_region
        %p131 = scmp.lt.s32.totalorder %s9, 1
        %s132 = scalar_select %p131, %s9, 1
        %s133 = smul.addr %s132, 32
        %s134 = smul.addr %s133, 8
        %s135 = scalar_lea.vmem %s0, %s134
      $region28: #{double_conv.5} parent=23 // pred_fallthru
        _
    $region24: #{double_conv.5} parent=5 // pred_fallthru
      _
    %p136 = scmp.le.s32.totalorder 1, %s9
    %p137 = scmp.lt.s32.totalorder %s9, 3
    %p138 = pnand %p136, %p137
    %p139 = pneg %p138
    // Predicated region
    $region29: #{double_conv.5} parent=5 // pred_check
      _
    $region30: #{double_conv.5} parent=5 // pred_check_branch
      %141 = sbr.rel (%p138) target = $region32
    $region31: #{double_conv.5} parent=5 // pred_region
      %s142 = ssub.s32 %s9, 1
      %p143 = scmp.lt.s32.totalorder %s14, 1
      %s144 = scalar_select %p143, %s14, 1
      %s145 = smul.addr %s144, 32
      %s146 = smul.addr %s145, 8
      %s147 = scalar_lea.vmem %s0, %s146
      %p148 = pneg %p35
      %p149 = pneg %p32
      %p150 = pneg %p56
      %p151 = pneg %p53
      %p152 = pneg %p77
      %p153 = pneg %p74
      %p154 = pneg %p103
      %p155 = pneg %p100
      %p156 = scmp.lt.s32.totalorder %s14, 1
      %s157 = scalar_select %p156, %s14, 1
      %s158 = smul.addr %s157, 32
      %s159 = smul.addr %s158, 8
      %s160 = scalar_lea.vmem %s3, %s159
      %p161 = scmp.lt.s32.totalorder %s14, 1
      %s162 = scalar_select %p161, %s14, 1
      %s163 = smul.addr %s162, 32
      %s164 = smul.addr %s163, 8
      %s165 = scalar_lea.vmem %s0, %s164
      %p166 = scmp.lt.s32.totalorder %s14, 1
      %s167 = scalar_select %p166, %s14, 1
      %s168 = smul.addr %s167, 32
      %s169 = smul.addr %s168, 8
      %s170 = scalar_lea.vmem %s3, %s169
      %v171 = vld [vmem:[%s165] sm:$0xff]
      %v172 = vld [vmem:[%s165 + $0x8] sm:$0xff]
      %v173 = vld [vmem:[%s165 + $0x10] sm:$0xff]
      %v174 = vld [vmem:[%s165 + $0x18] sm:$0xff]
      %v175 = vld [vmem:[%s165 + $0x20] sm:$0xff]
      %v176 = vld [vmem:[%s165 + $0x28] sm:$0xff]
      %v177 = vld [vmem:[%s165 + $0x30] sm:$0xff]
      %v178 = vld [vmem:[%s165 + $0x38] sm:$0xff]
      %v179 = vld [vmem:[%s165 + $0x40] sm:$0xff]
      %v180 = vld [vmem:[%s165 + $0x48] sm:$0xff]
      %v181 = vld [vmem:[%s165 + $0x50] sm:$0xff]
      %v182 = vld [vmem:[%s165 + $0x58] sm:$0xff]
      %v183 = vld [vmem:[%s165 + $0x60] sm:$0xff]
      %v184 = vld [vmem:[%s165 + $0x68] sm:$0xff]
      %v185 = vld [vmem:[%s165 + $0x70] sm:$0xff]
      %v186 = vld [vmem:[%s165 + $0x78] sm:$0xff]
      %v187 = vld [vmem:[%s165 + $0x80] sm:$0xff]
      %v188 = vld [vmem:[%s165 + $0x88] sm:$0xff]
      %v189 = vld [vmem:[%s165 + $0x90] sm:$0xff]
      %v190 = vld [vmem:[%s165 + $0x98] sm:$0xff]
      %v191 = vld [vmem:[%s165 + $0xa0] sm:$0xff]
      %v192 = vld [vmem:[%s165 + $0xa8] sm:$0xff]
      %v193 = vld [vmem:[%s165 + $0xb0] sm:$0xff]
      %v194 = vld [vmem:[%s165 + $0xb8] sm:$0xff]
      %v195 = vld [vmem:[%s165 + $0xc0] sm:$0xff]
      %v196 = vld [vmem:[%s165 + $0xc8] sm:$0xff]
      %v197 = vld [vmem:[%s165 + $0xd0] sm:$0xff]
      %v198 = vld [vmem:[%s165 + $0xd8] sm:$0xff]
      %v199 = vld [vmem:[%s165 + $0xe0] sm:$0xff]
      %v200 = vld [vmem:[%s165 + $0xe8] sm:$0xff]
      %v201 = vld [vmem:[%s165 + $0xf0] sm:$0xff]
      %v202 = vld [vmem:[%s165 + $0xf8] sm:$0xff]
      %v203 = vld [vmem:[%s1] sm:$0x1]
      %v205 = vperm.slane %v203, 0
      %v207 = vmul.f32 %v171, %v205
      %v208 = vmul.f32 %v172, %v205
      %v209 = vmul.f32 %v173, %v205
      %v210 = vmul.f32 %v174, %v205
      %v211 = vmul.f32 %v175, %v205
      %v212 = vmul.f32 %v176, %v205
      %v213 = vmul.f32 %v177, %v205
      %v214 = vmul.f32 %v178, %v205
      %v215 = vmul.f32 %v179, %v205
      %v216 = vmul.f32 %v180, %v205
      %v217 = vmul.f32 %v181, %v205
      %v218 = vmul.f32 %v182, %v205
      %v219 = vmul.f32 %v183, %v205
      %v220 = vmul.f32 %v184, %v205
      %v221 = vmul.f32 %v185, %v205
      %v222 = vmul.f32 %v186, %v205
      %v223 = vmul.f32 %v187, %v205
      %v224 = vmul.f32 %v188, %v205
      %v225 = vmul.f32 %v189, %v205
      %v226 = vmul.f32 %v190, %v205
      %v227 = vmul.f32 %v191, %v205
      %v228 = vmul.f32 %v192, %v205
      %v229 = vmul.f32 %v193, %v205
      %v230 = vmul.f32 %v194, %v205
      %v231 = vmul.f32 %v195, %v205
      %v232 = vmul.f32 %v196, %v205
      %v233 = vmul.f32 %v197, %v205
      %v234 = vmul.f32 %v198, %v205
      %v235 = vmul.f32 %v199, %v205
      %v236 = vmul.f32 %v200, %v205
      %v237 = vmul.f32 %v201, %v205
      %v238 = vmul.f32 %v202, %v205
      %v239 = vld [vmem:[%s2] sm:$0x1]
      %v241 = vperm.slane %v239, 0
      %v243 = vadd.f32 %v207, %v241
      %v244 = vadd.f32 %v208, %v241
      %v245 = vadd.f32 %v209, %v241
      %v246 = vadd.f32 %v210, %v241
      %v247 = vadd.f32 %v211, %v241
      %v248 = vadd.f32 %v212, %v241
      %v249 = vadd.f32 %v213, %v241
      %v250 = vadd.f32 %v214, %v241
      %v251 = vadd.f32 %v215, %v241
      %v252 = vadd.f32 %v216, %v241
      %v253 = vadd.f32 %v217, %v241
      %v254 = vadd.f32 %v218, %v241
      %v255 = vadd.f32 %v219, %v241
      %v256 = vadd.f32 %v220, %v241
      %v257 = vadd.f32 %v221, %v241
      %v258 = vadd.f32 %v222, %v241
      %v259 = vadd.f32 %v223, %v241
      %v260 = vadd.f32 %v224, %v241
      %v261 = vadd.f32 %v225, %v241
      %v262 = vadd.f32 %v226, %v241
      %v263 = vadd.f32 %v227, %v241
      %v264 = vadd.f32 %v228, %v241
      %v265 = vadd.f32 %v229, %v241
      %v266 = vadd.f32 %v230, %v241
      %v267 = vadd.f32 %v231, %v241
      %v268 = vadd.f32 %v232, %v241
      %v269 = vadd.f32 %v233, %v241
      %v270 = vadd.f32 %v234, %v241
      %v271 = vadd.f32 %v235, %v241
      %v272 = vadd.f32 %v236, %v241
      %v273 = vadd.f32 %v237, %v241
      %v274 = vadd.f32 %v238, %v241
      %v275 = vmax.f32 %v243, 0.0
      %v276 = vmax.f32 %v244, 0.0
      %v277 = vmax.f32 %v245, 0.0
      %v278 = vmax.f32 %v246, 0.0
      %v279 = vmax.f32 %v247, 0.0
      %v280 = vmax.f32 %v248, 0.0
      %v281 = vmax.f32 %v249, 0.0
      %v282 = vmax.f32 %v250, 0.0
      %v283 = vmax.f32 %v251, 0.0
      %v284 = vmax.f32 %v252, 0.0
      %v285 = vmax.f32 %v253, 0.0
      %v286 = vmax.f32 %v254, 0.0
      %v287 = vmax.f32 %v255, 0.0
      %v288 = vmax.f32 %v256, 0.0
      %v289 = vmax.f32 %v257, 0.0
      %v290 = vmax.f32 %v258, 0.0
      %v291 = vmax.f32 %v259, 0.0
      %v292 = vmax.f32 %v260, 0.0
      %v293 = vmax.f32 %v261, 0.0
      %v294 = vmax.f32 %v262, 0.0
      %v295 = vmax.f32 %v263, 0.0
      %v296 = vmax.f32 %v264, 0.0
      %v297 = vmax.f32 %v265, 0.0
      %v298 = vmax.f32 %v266, 0.0
      %v299 = vmax.f32 %v267, 0.0
      %v300 = vmax.f32 %v268, 0.0
      %v301 = vmax.f32 %v269, 0.0
      %v302 = vmax.f32 %v270, 0.0
      %v303 = vmax.f32 %v271, 0.0
      %v304 = vmax.f32 %v272, 0.0
      %v305 = vmax.f32 %v273, 0.0
      %v306 = vmax.f32 %v274, 0.0
      %307 = vst [vmem:[%s170] sm:$0xff] %v275
      %308 = vst [vmem:[%s170 + $0x8] sm:$0xff] %v276
      %309 = vst [vmem:[%s170 + $0x10] sm:$0xff] %v277
      %310 = vst [vmem:[%s170 + $0x18] sm:$0xff] %v278
      %311 = vst [vmem:[%s170 + $0x20] sm:$0xff] %v279
      %312 = vst [vmem:[%s170 + $0x28] sm:$0xff] %v280
      %313 = vst [vmem:[%s170 + $0x30] sm:$0xff] %v281
      %314 = vst [vmem:[%s170 + $0x38] sm:$0xff] %v282
      %315 = vst [vmem:[%s170 + $0x40] sm:$0xff] %v283
      %316 = vst [vmem:[%s170 + $0x48] sm:$0xff] %v284
      %317 = vst [vmem:[%s170 + $0x50] sm:$0xff] %v285
      %318 = vst [vmem:[%s170 + $0x58] sm:$0xff] %v286
      %319 = vst [vmem:[%s170 + $0x60] sm:$0xff] %v287
      %320 = vst [vmem:[%s170 + $0x68] sm:$0xff] %v288
      %321 = vst [vmem:[%s170 + $0x70] sm:$0xff] %v289
      %322 = vst [vmem:[%s170 + $0x78] sm:$0xff] %v290
      %323 = vst [vmem:[%s170 + $0x80] sm:$0xff] %v291
      %324 = vst [vmem:[%s170 + $0x88] sm:$0xff] %v292
      %325 = vst [vmem:[%s170 + $0x90] sm:$0xff] %v293
      %326 = vst [vmem:[%s170 + $0x98] sm:$0xff] %v294
      %327 = vst [vmem:[%s170 + $0xa0] sm:$0xff] %v295
      %328 = vst [vmem:[%s170 + $0xa8] sm:$0xff] %v296
      %329 = vst [vmem:[%s170 + $0xb0] sm:$0xff] %v297
      %330 = vst [vmem:[%s170 + $0xb8] sm:$0xff] %v298
      %331 = vst [vmem:[%s170 + $0xc0] sm:$0xff] %v299
      %332 = vst [vmem:[%s170 + $0xc8] sm:$0xff] %v300
      %333 = vst [vmem:[%s170 + $0xd0] sm:$0xff] %v301
      %334 = vst [vmem:[%s170 + $0xd8] sm:$0xff] %v302
      %335 = vst [vmem:[%s170 + $0xe0] sm:$0xff] %v303
      %336 = vst [vmem:[%s170 + $0xe8] sm:$0xff] %v304
      %337 = vst [vmem:[%s170 + $0xf0] sm:$0xff] %v305
      %338 = vst [vmem:[%s170 + $0xf8] sm:$0xff] %v306
      %p339 = scmp.lt.s32.totalorder %s14, 1
      %s340 = scalar_select %p339, %s14, 1
      %s341 = smul.addr %s340, 32
      %s342 = smul.addr %s341, 8
      %s343 = scalar_lea.vmem %s3, %s342
      // Predicated region
      $region33: #{double_conv.5} parent=31 // pred_check
        %p344 = pneg %p100
      $region34: #{double_conv.5} parent=31 // pred_check_branch
        %346 = sbr.rel (%p344) target = $region36
      $region35: #{double_conv.5} parent=31 // pred_region
        _
      $region36: #{double_conv.5} parent=31 // pred_fallthru
        _
    $region32: #{double_conv.5} parent=5 // pred_fallthru
      _
    %p347 = scmp.le.s32.totalorder 2, %s9
    // Predicated region
    $region37: #{double_conv.5} parent=5 // pred_check
      %p348 = pneg %p347
    $region38: #{double_conv.5} parent=5 // pred_check_branch
      %350 = sbr.rel (%p348) target = $region40
    $region39: #{double_conv.5} parent=5 // pred_region
      %s351 = ssub.s32 %s9, 2
      // Predicated region
      $region41: #{double_conv.5} parent=39 // pred_check
        %p352 = pneg %p106
      $region42: #{double_conv.5} parent=39 // pred_check_branch
        %354 = sbr.rel (%p352) target = $region44
      $region43: #{double_conv.5} parent=39 // pred_region
        %p355 = scmp.lt.s32.totalorder %s15, 1
        %s356 = scalar_select %p355, %s15, 1
        %s357 = smul.addr %s356, 32
        %s358 = smul.addr %s357, 8
        %s359 = scalar_lea.vmem %s3, %s358
      $region44: #{double_conv.5} parent=39 // pred_fallthru
        _
    $region40: #{double_conv.5} parent=5 // pred_fallthru
      _
  $region6: #{double_conv.5} parent=0 // loop_footer
    %s13 = sadd.s32 1, %s9
  $region7: #{double_conv.5} parent=0 // loop_footer_branch
    %8 = sbr.rel target = $region3
  $region8: #{double_conv.5} parent=0 // loop_exit
    _

// kernel: double_conv.3
$region0: #{double_conv.3}
  #allocation0 [shape = 'u32[]', space=smem, size = 0x4, offset = 0x4, fixed_abs, tag = 'smem constant byte address 0x4 - core index']
  #allocation1 [shape = 'u32[72,128]{1,0:T(1,128)}', space=vmem, size = 0x9000, scoped, tag = 'internal scratch']
  %s0 = inlined_call_operand.vmem [shape: bf16[2,18,18,128], index: 0, kind: input, shape index: {}]
  %s1 = inlined_call_operand.vmem [shape: bf16[9,128,128], index: 1, kind: input, shape index: {}]
  %s2 = inlined_call_operand.vmem [shape: f32[1,128], index: 2, kind: input, shape index: {}]
  %s3 = inlined_call_operand.vmem [shape: bf16[2,16,16,128], index: 3, kind: output, shape index: {0}]
  %s4 = inlined_call_operand.vmem [shape: f32[2,2,128], index: 4, kind: output, shape index: {1}]
  %5 = xla_tuple %s3, %s4
  %s6 = sld [smem:[#allocation0]]
  $region53: #{double_conv.3} parent=0
    _
  %s8 = ssub.s32 1, %s6
  %s9 = scalar_select 0, %s8, %s6
  loop: start=0, step=1, limit=4
  $region2: #{double_conv.3} parent=0 // loop_pre_header
    _
  $region3: #{double_conv.3} parent=0 // loop_header
    %s11 = sphi 0, %s15
    %p12 = scmp.ge.s32.totalorder %s11, 4
    %s21 = sphi 0, %s23
    %s24 = sphi 0, %s21
    %s25 = sphi 0, %s24
    %s41 = sphi 0, %s25
    %s45 = sphi 0, %s45
    %s47 = sphi 0, %s45
    %s48 = sphi 0, %s47
    %s62 = sphi 0, %s48
    %s66 = sphi 0, %s66
    %s68 = sphi 0, %s66
    %s69 = sphi 0, %s68
    %s83 = sphi 0, %s69
    %s89 = sphi 0, %s91
    %s92 = sphi 0, %s89
    %s93 = sphi 0, %s92
    %s109 = sphi 0, %s93
    %s115 = sphi 0, %s117
    %s118 = sphi 0, %s115
    %s119 = sphi 0, %s118
    %s135 = sphi 0, %s119
  $region4: #{double_conv.3} parent=0 // loop_header_branch
    %14 = sbr.rel (%p12) target = $region8
  $region5: #{double_conv.3} parent=0 // loop_body
    %s16 = ssub.s32 %s11, 1
    %s17 = ssub.s32 %s11, 2
    %s18 = sadd.s32 %s11, 1
    %s19 = ssub.s32 %s11, %s18
    %p20 = scmp.eq.s32.totalorder %s19, 0
    %s22 = sadd.s32 %s21, 1
    %s23 = scalar_select %p20, %s21, %s22
    %p26 = pneg %p20
    %p27 = scmp.eq.s32.totalorder %s11, 1
    %p28 = por %p26, %p27
    %p29 = scmp.ne.s32.totalorder %s21, %s24
    %p30 = scmp.eq.s32.totalorder %s11, 0
    %p31 = por %p29, %p30
    %p32 = scmp.ne.s32.totalorder %s21, %s24
    %p33 = scmp.eq.s32.totalorder %s16, 1
    %p34 = por %p32, %p33
    %p35 = scmp.ne.s32.totalorder %s24, %s25
    %p36 = scmp.eq.s32.totalorder %s16, 0
    %p37 = por %p35, %p36
    %p38 = scmp.ne.s32.totalorder %s24, %s25
    %p39 = scmp.eq.s32.totalorder %s17, 1
    %p40 = por %p38, %p39
    %p42 = scmp.ne.s32.totalorder %s25, %s41
    %p43 = scmp.eq.s32.totalorder %s17, 0
    %p44 = por %p42, %p43
    %s46 = sadd.s32 %s45, 1
    %p49 = scmp.eq.s32.totalorder %s11, 1
    %p50 = scmp.ne.s32.totalorder %s45, %s47
    %p51 = scmp.eq.s32.totalorder %s11, 0
    %p52 = por %p50, %p51
    %p53 = scmp.ne.s32.totalorder %s45, %s47
    %p54 = scmp.eq.s32.totalorder %s16, 1
    %p55 = por %p53, %p54
    %p56 = scmp.ne.s32.totalorder %s47, %s48
    %p57 = scmp.eq.s32.totalorder %s16, 0
    %p58 = por %p56, %p57
    %p59 = scmp.ne.s32.totalorder %s47, %s48
    %p60 = scmp.eq.s32.totalorder %s17, 1
    %p61 = por %p59, %p60
    %p63 = scmp.ne.s32.totalorder %s48, %s62
    %p64 = scmp.eq.s32.totalorder %s17, 0
    %p65 = por %p63, %p64
    %s67 = sadd.s32 %s66, 1
    %p70 = scmp.eq.s32.totalorder %s11, 1
    %p71 = scmp.ne.s32.totalorder %s66, %s68
    %p72 = scmp.eq.s32.totalorder %s11, 0
    %p73 = por %p71, %p72
    %p74 = scmp.ne.s32.totalorder %s66, %s68
    %p75 = scmp.eq.s32.totalorder %s16, 1
    %p76 = por %p74, %p75
    %p77 = scmp.ne.s32.totalorder %s68, %s69
    %p78 = scmp.eq.s32.totalorder %s16, 0
    %p79 = por %p77, %p78
    %p80 = scmp.ne.s32.totalorder %s68, %s69
    %p81 = scmp.eq.s32.totalorder %s17, 1
    %p82 = por %p80, %p81
    %p84 = scmp.ne.s32.totalorder %s69, %s83
    %p85 = scmp.eq.s32.totalorder %s17, 0
    %p86 = por %p84, %p85
    %s87 = ssub.s32 %s11, %s18
    %p88 = scmp.eq.s32.totalorder %s87, 0
    %s90 = sadd.s32 %s89, 1
    %s91 = scalar_select %p88, %s89, %s90
    %p94 = pneg %p88
    %p95 = scmp.eq.s32.totalorder %s11, 1
    %p96 = por %p94, %p95
    %p97 = scmp.ne.s32.totalorder %s89, %s92
    %p98 = scmp.eq.s32.totalorder %s11, 0
    %p99 = por %p97, %p98
    %p100 = scmp.ne.s32.totalorder %s89, %s92
    %p101 = scmp.eq.s32.totalorder %s16, 1
    %p102 = por %p100, %p101
    %p103 = scmp.ne.s32.totalorder %s92, %s93
    %p104 = scmp.eq.s32.totalorder %s16, 0
    %p105 = por %p103, %p104
    %p106 = scmp.ne.s32.totalorder %s92, %s93
    %p107 = scmp.eq.s32.totalorder %s17, 1
    %p108 = por %p106, %p107
    %p110 = scmp.ne.s32.totalorder %s93, %s109
    %p111 = scmp.eq.s32.totalorder %s17, 0
    %p112 = por %p110, %p111
    %s113 = ssub.s32 %s11, %s18
    %p114 = scmp.eq.s32.totalorder %s113, 0
    %s116 = sadd.s32 %s115, 1
    %s117 = scalar_select %p114, %s115, %s116
    %p120 = pneg %p114
    %p121 = scmp.eq.s32.totalorder %s11, 1
    %p122 = por %p120, %p121
    %p123 = scmp.ne.s32.totalorder %s115, %s118
    %p124 = scmp.eq.s32.totalorder %s11, 0
    %p125 = por %p123, %p124
    %p126 = scmp.ne.s32.totalorder %s115, %s118
    %p127 = scmp.eq.s32.totalorder %s16, 1
    %p128 = por %p126, %p127
    %p129 = scmp.ne.s32.totalorder %s118, %s119
    %p130 = scmp.eq.s32.totalorder %s16, 0
    %p131 = por %p129, %p130
    %p132 = scmp.ne.s32.totalorder %s118, %s119
    %p133 = scmp.eq.s32.totalorder %s17, 1
    %p134 = por %p132, %p133
    %p136 = scmp.ne.s32.totalorder %s119, %s135
    %p137 = scmp.eq.s32.totalorder %s17, 0
    %p138 = por %p136, %p137
    %p139 = scmp.le.s32.totalorder 1, %s11
    %p140 = scmp.lt.s32.totalorder %s11, 3
    %p141 = pnand %p139, %p140
    %p142 = pneg %p141
    // Predicated region
    $region9: #{double_conv.3} parent=5 // pred_check
      _
    $region10: #{double_conv.3} parent=5 // pred_check_branch
      %144 = sbr.rel (%p141) target = $region12
    $region11: #{double_conv.3} parent=5 // pred_region
      %s145 = ssub.s32 %s11, 1
      // Predicated region
      $region13: #{double_conv.3} parent=11 // pred_check
        %p146 = pneg %p58
      $region14: #{double_conv.3} parent=11 // pred_check_branch
        %148 = sbr.rel (%p146) target = $region16
      $region15: #{double_conv.3} parent=11 // pred_region
        _
      $region16: #{double_conv.3} parent=11 // pred_fallthru
        _
      // Predicated region
      $region17: #{double_conv.3} parent=11 // pred_check
        %p149 = pneg %p79
      $region18: #{double_conv.3} parent=11 // pred_check_branch
        %151 = sbr.rel (%p149) target = $region20
      $region19: #{double_conv.3} parent=11 // pred_region
        _
      $region20: #{double_conv.3} parent=11 // pred_fallthru
        _
    $region12: #{double_conv.3} parent=5 // pred_fallthru
      _
    %p152 = scmp.lt.s32.totalorder %s11, 2
    // Predicated region
    $region21: #{double_conv.3} parent=5 // pred_check
      %p153 = pneg %p152
    $region22: #{double_conv.3} parent=5 // pred_check_branch
      %155 = sbr.rel (%p153) target = $region24
    $region23: #{double_conv.3} parent=5 // pred_region
      // Predicated region
      $region25: #{double_conv.3} parent=23 // pred_check
        %p156 = pneg %p31
      $region26: #{double_conv.3} parent=23 // pred_check_branch
        %158 = sbr.rel (%p156) target = $region28
      $region27: #{double_conv.3} parent=23 // pred_region
        %p159 = scmp.lt.s32.totalorder %s11, 1
        %s160 = scalar_select %p159, %s11, 1
        %s161 = smul.addr %s160, 54
        %s162 = smul.addr %s161, 4
        %s163 = scalar_lea.vmem %s0, %s162
      $region28: #{double_conv.3} parent=23 // pred_fallthru
        _
    $region24: #{double_conv.3} parent=5 // pred_fallthru
      _
    %p164 = scmp.le.s32.totalorder 1, %s11
    %p165 = scmp.lt.s32.totalorder %s11, 3
    %p166 = pnand %p164, %p165
    %p167 = pneg %p166
    // Predicated region
    $region29: #{double_conv.3} parent=5 // pred_check
      _
    $region30: #{double_conv.3} parent=5 // pred_check_branch
      %169 = sbr.rel (%p166) target = $region32
    $region31: #{double_conv.3} parent=5 // pred_region
      %s170 = ssub.s32 %s11, 1
      %p171 = scmp.lt.s32.totalorder %s16, 1
      %s172 = scalar_select %p171, %s16, 1
      %s173 = smul.addr %s172, 54
      %s174 = smul.addr %s173, 4
      %s175 = scalar_lea.vmem %s0, %s174
      %p176 = pneg %p37
      %p177 = pneg %p34
      %p178 = pneg %p58
      %p179 = pneg %p55
      %p180 = pneg %p79
      %p181 = pneg %p76
      %p182 = pneg %p105
      %p183 = pneg %p102
      %p184 = scmp.lt.s32.totalorder %s16, 1
      %s185 = scalar_select %p184, %s16, 1
      %s186 = smul.addr %s185, 32
      %s187 = smul.addr %s186, 4
      %s188 = scalar_lea.vmem %s3, %s187
      %p189 = pneg %p131
      %p190 = pneg %p128
      %p191 = scmp.lt.s32.totalorder %s16, 1
      %s192 = scalar_select %p191, %s16, 1
      %s193 = smul.addr %s192, 2
      %s194 = scalar_lea.vmem %s4, %s193
      %p195 = scmp.lt.s32.totalorder %s16, 1
      %s196 = scalar_select %p195, %s16, 1
      %s197 = smul.addr %s196, 54
      %s198 = smul.addr %s197, 4
      %s199 = scalar_lea.vmem %s0, %s198
      %p200 = scmp.lt.s32.totalorder %s16, 1
      %s201 = scalar_select %p200, %s16, 1
      %s202 = smul.addr %s201, 32
      %s203 = smul.addr %s202, 4
      %s204 = scalar_lea.vmem %s3, %s203
      %p205 = scmp.lt.s32.totalorder %s16, 1
      %s206 = scalar_select %p205, %s16, 1
      %s207 = smul.addr %s206, 2
      %s208 = scalar_lea.vmem %s4, %s207
      %v209 = vld [vmem:[%s199] sm:$0xf]
      %v210 = vld [vmem:[%s199 + $0x4] sm:$0xf]
      %v211 = vld [vmem:[%s199 + $0x8] sm:$0x1]
      %v212 = vld [vmem:[%s199 + $0xc] sm:$0xf]
      %v213 = vld [vmem:[%s199 + $0x10] sm:$0xf]
      %v214 = vld [vmem:[%s199 + $0x14] sm:$0x1]
      %v215 = vld [vmem:[%s199 + $0x18] sm:$0xf]
      %v216 = vld [vmem:[%s199 + $0x1c] sm:$0xf]
      %v217 = vld [vmem:[%s199 + $0x20] sm:$0x1]
      %v218 = vld [vmem:[%s199 + $0x24] sm:$0xf]
      %v219 = vld [vmem:[%s199 + $0x28] sm:$0xf]
      %v220 = vld [vmem:[%s199 + $0x2c] sm:$0x1]
      %v221 = vld [vmem:[%s199 + $0x30] sm:$0xf]
      %v222 = vld [vmem:[%s199 + $0x34] sm:$0xf]
      %v223 = vld [vmem:[%s199 + $0x38] sm:$0x1]
      %v224 = vld [vmem:[%s199 + $0x3c] sm:$0xf]
      %v225 = vld [vmem:[%s199 + $0x40] sm:$0xf]
      %v226 = vld [vmem:[%s199 + $0x44] sm:$0x1]
      %v227 = vld [vmem:[%s199 + $0x48] sm:$0xf]
      %v228 = vld [vmem:[%s199 + $0x4c] sm:$0xf]
      %v229 = vld [vmem:[%s199 + $0x50] sm:$0x1]
      %v230 = vld [vmem:[%s199 + $0x54] sm:$0xf]
      %v231 = vld [vmem:[%s199 + $0x58] sm:$0xf]
      %v232 = vld [vmem:[%s199 + $0x5c] sm:$0x1]
      %v233 = vld [vmem:[%s199 + $0x60] sm:$0xf]
      %v234 = vld [vmem:[%s199 + $0x64] sm:$0xf]
      %v235 = vld [vmem:[%s199 + $0x68] sm:$0x1]
      %v236 = vld [vmem:[%s199 + $0x6c] sm:$0xf]
      %v237 = vld [vmem:[%s199 + $0x70] sm:$0xf]
      %v238 = vld [vmem:[%s199 + $0x74] sm:$0x1]
      %v239 = vld [vmem:[%s199 + $0x78] sm:$0xf]
      %v240 = vld [vmem:[%s199 + $0x7c] sm:$0xf]
      %v241 = vld [vmem:[%s199 + $0x80] sm:$0x1]
      %v242 = vld [vmem:[%s199 + $0x84] sm:$0xf]
      %v243 = vld [vmem:[%s199 + $0x88] sm:$0xf]
      %v244 = vld [vmem:[%s199 + $0x8c] sm:$0x1]
      %v245 = vld [vmem:[%s199 + $0x90] sm:$0xf]
      %v246 = vld [vmem:[%s199 + $0x94] sm:$0xf]
      %v247 = vld [vmem:[%s199 + $0x98] sm:$0x1]
      %v248 = vld [vmem:[%s199 + $0x9c] sm:$0xf]
      %v249 = vld [vmem:[%s199 + $0xa0] sm:$0xf]
      %v250 = vld [vmem:[%s199 + $0xa4] sm:$0x1]
      %v251 = vld [vmem:[%s199 + $0xa8] sm:$0xf]
      %v252 = vld [vmem:[%s199 + $0xac] sm:$0xf]
      %v253 = vld [vmem:[%s199 + $0xb0] sm:$0x1]
      %v254 = vld [vmem:[%s199 + $0xb4] sm:$0xf]
      %v255 = vld [vmem:[%s199 + $0xb8] sm:$0xf]
      %v256 = vld [vmem:[%s199 + $0xbc] sm:$0x1]
      %v257 = vld [vmem:[%s199 + $0xc0] sm:$0xf]
      %v258 = vld [vmem:[%s199 + $0xc4] sm:$0xf]
      %v259 = vld [vmem:[%s199 + $0xc8] sm:$0x1]
      %v260 = vld [vmem:[%s199 + $0xcc] sm:$0xf]
      %v261 = vld [vmem:[%s199 + $0xd0] sm:$0xf]
      %v262 = vld [vmem:[%s199 + $0xd4] sm:$0x1]
      %v263 = vunpack.c.l.bf16 %v209
      %v264 = vunpack.c.l.bf16 %v210
      %v265 = vunpack.c.l.bf16 %v211
      %v266 = vunpack.c.l.bf16 %v212
      %v267 = vunpack.c.l.bf16 %v213
      %v268 = vunpack.c.l.bf16 %v214
      %v269 = vunpack.c.l.bf16 %v215
      %v270 = vunpack.c.l.bf16 %v216
      %v271 = vunpack.c.l.bf16 %v217
      %v272 = vunpack.c.l.bf16 %v218
      %v273 = vunpack.c.l.bf16 %v219
      %v274 = vunpack.c.l.bf16 %v220
      %v275 = vunpack.c.l.bf16 %v221
      %v276 = vunpack.c.l.bf16 %v222
      %v277 = vunpack.c.l.bf16 %v223
      %v278 = vunpack.c.l.bf16 %v224
      %v279 = vunpack.c.l.bf16 %v225
      %v280 = vunpack.c.l.bf16 %v226
      %v281 = vunpack.c.l.bf16 %v227
      %v282 = vunpack.c.l.bf16 %v228
      %v283 = vunpack.c.l.bf16 %v229
      %v284 = vunpack.c.l.bf16 %v230
      %v285 = vunpack.c.l.bf16 %v231
      %v286 = vunpack.c.l.bf16 %v232
      %v287 = vunpack.c.l.bf16 %v233
      %v288 = vunpack.c.l.bf16 %v234
      %v289 = vunpack.c.l.bf16 %v235
      %v290 = vunpack.c.l.bf16 %v236
      %v291 = vunpack.c.l.bf16 %v237
      %v292 = vunpack.c.l.bf16 %v238
      %v293 = vunpack.c.l.bf16 %v239
      %v294 = vunpack.c.l.bf16 %v240
      %v295 = vunpack.c.l.bf16 %v241
      %v296 = vunpack.c.l.bf16 %v242
      %v297 = vunpack.c.l.bf16 %v243
      %v298 = vunpack.c.l.bf16 %v244
      %v299 = vunpack.c.l.bf16 %v245
      %v300 = vunpack.c.l.bf16 %v246
      %v301 = vunpack.c.l.bf16 %v247
      %v302 = vunpack.c.l.bf16 %v248
      %v303 = vunpack.c.l.bf16 %v249
      %v304 = vunpack.c.l.bf16 %v250
      %v305 = vunpack.c.l.bf16 %v251
      %v306 = vunpack.c.l.bf16 %v252
      %v307 = vunpack.c.l.bf16 %v253
      %v308 = vunpack.c.l.bf16 %v254
      %v309 = vunpack.c.l.bf16 %v255
      %v310 = vunpack.c.l.bf16 %v256
      %v311 = vunpack.c.l.bf16 %v257
      %v312 = vunpack.c.l.bf16 %v258
      %v313 = vunpack.c.l.bf16 %v259
      %v314 = vunpack.c.l.bf16 %v260
      %v315 = vunpack.c.l.bf16 %v261
      %v316 = vunpack.c.l.bf16 %v262
      %v317 = vpack.c.bf16 %v264, %v263
      %v318 = vpack.c.bf16 %v267, %v266
      %v319 = vpack.c.bf16 %v270, %v269
      %v320 = vpack.c.bf16 %v273, %v272
      %v321 = vpack.c.bf16 %v276, %v275
      %v322 = vpack.c.bf16 %v279, %v278
      %v323 = vpack.c.bf16 %v282, %v281
      %v324 = vpack.c.bf16 %v285, %v284
      %v325 = vpack.c.bf16 %v288, %v287
      %v326 = vpack.c.bf16 %v291, %v290
      %v327 = vpack.c.bf16 %v294, %v293
      %v328 = vpack.c.bf16 %v297, %v296
      %v329 = vpack.c.bf16 %v300, %v299
      %v330 = vpack.c.bf16 %v303, %v302
      %v331 = vpack.c.bf16 %v306, %v305
      %v332 = vpack.c.bf16 %v309, %v308
      %v333 = vld [vmem:[%s1] sm:$0xf]
      %v334 = vld [vmem:[%s1 + $0x4] sm:$0xf]
      %v335 = vld [vmem:[%s1 + $0x8] sm:$0xf]
      %v336 = vld [vmem:[%s1 + $0xc] sm:$0xf]
      %v337 = vld [vmem:[%s1 + $0x10] sm:$0xf]
      %v338 = vld [vmem:[%s1 + $0x14] sm:$0xf]
      %v339 = vld [vmem:[%s1 + $0x18] sm:$0xf]
      %v340 = vld [vmem:[%s1 + $0x1c] sm:$0xf]
      %v341 = vld [vmem:[%s1 + $0x20] sm:$0xf]
      %v342 = vld [vmem:[%s1 + $0x24] sm:$0xf]
      %v343 = vld [vmem:[%s1 + $0x28] sm:$0xf]
      %v344 = vld [vmem:[%s1 + $0x2c] sm:$0xf]
      %v345 = vld [vmem:[%s1 + $0x30] sm:$0xf]
      %v346 = vld [vmem:[%s1 + $0x34] sm:$0xf]
      %v347 = vld [vmem:[%s1 + $0x38] sm:$0xf]
      %v348 = vld [vmem:[%s1 + $0x3c] sm:$0xf]
      %vm397 = vcmask 1046528
      %v398 = vrot.slane %v263, 1
      %v399 = vrot.slane %v264, 1
      %v400 = vsel %vm397, %v398, %v399
      %v401 = vrot.slane %v265, 1
      %v402 = vsel %vm397, %v399, %v401
      %v403 = vrot.slane %v266, 1
      %v404 = vrot.slane %v267, 1
      %v405 = vsel %vm397, %v403, %v404
      %v406 = vrot.slane %v268, 1
      %v407 = vsel %vm397, %v404, %v406
      %v408 = vrot.slane %v269, 1
      %v409 = vrot.slane %v270, 1
      %v410 = vsel %vm397, %v408, %v409
      %v411 = vrot.slane %v271, 1
      %v412 = vsel %vm397, %v409, %v411
      %v413 = vrot.slane %v272, 1
      %v414 = vrot.slane %v273, 1
      %v415 = vsel %vm397, %v413, %v414
      %v416 = vrot.slane %v274, 1
      %v417 = vsel %vm397, %v414, %v416
      %v418 = vrot.slane %v275, 1
      %v419 = vrot.slane %v276, 1
      %v420 = vsel %vm397, %v418, %v419
      %v421 = vrot.slane %v277, 1
      %v422 = vsel %vm397, %v419, %v421
      %v423 = vrot.slane %v278, 1
      %v424 = vrot.slane %v279, 1
      %v425 = vsel %vm397, %v423, %v424
      %v426 = vrot.slane %v280, 1
      %v427 = vsel %vm397, %v424, %v426
      %v428 = vrot.slane %v281, 1
      %v429 = vrot.slane %v282, 1
      %v430 = vsel %vm397, %v428, %v429
      %v431 = vrot.slane %v283, 1
      %v432 = vsel %vm397, %v429, %v431
      %v433 = vrot.slane %v284, 1
      %v434 = vrot.slane %v285, 1
      %v435 = vsel %vm397, %v433, %v434
      %v436 = vrot.slane %v286, 1
      %v437 = vsel %vm397, %v434, %v436
      %v438 = vrot.slane %v287, 1
      %v439 = vrot.slane %v288, 1
      %v440 = vsel %vm397, %v438, %v439
      %v441 = vrot.slane %v289, 1
      %v442 = vsel %vm397, %v439, %v441
      %v443 = vrot.slane %v290, 1
      %v444 = vrot.slane %v291, 1
      %v445 = vsel %vm397, %v443, %v444
      %v446 = vrot.slane %v292, 1
      %v447 = vsel %vm397, %v444, %v446
      %v448 = vrot.slane %v293, 1
      %v449 = vrot.slane %v294, 1
      %v450 = vsel %vm397, %v448, %v449
      %v451 = vrot.slane %v295, 1
      %v452 = vsel %vm397, %v449, %v451
      %v453 = vrot.slane %v296, 1
      %v454 = vrot.slane %v297, 1
      %v455 = vsel %vm397, %v453, %v454
      %v456 = vrot.slane %v298, 1
      %v457 = vsel %vm397, %v454, %v456
      %v458 = vrot.slane %v299, 1
      %v459 = vrot.slane %v300, 1
      %v460 = vsel %vm397, %v458, %v459
      %v461 = vrot.slane %v301, 1
      %v462 = vsel %vm397, %v459, %v461
      %v463 = vrot.slane %v302, 1
      %v464 = vrot.slane %v303, 1
      %v465 = vsel %vm397, %v463, %v464
      %v466 = vrot.slane %v304, 1
      %v467 = vsel %vm397, %v464, %v466
      %v468 = vrot.slane %v305, 1
      %v469 = vrot.slane %v306, 1
      %v470 = vsel %vm397, %v468, %v469
      %v471 = vrot.slane %v307, 1
      %v472 = vsel %vm397, %v469, %v471
      %v473 = vrot.slane %v308, 1
      %v474 = vrot.slane %v309, 1
      %v475 = vsel %vm397, %v473, %v474
      %v476 = vrot.slane %v310, 1
      %v477 = vsel %vm397, %v474, %v476
      %v510 = vpack.c.bf16 %v402, %v400
      %v511 = vpack.c.bf16 %v407, %v405
      %v512 = vpack.c.bf16 %v412, %v410
      %v513 = vpack.c.bf16 %v417, %v415
      %v514 = vpack.c.bf16 %v422, %v420
      %v515 = vpack.c.bf16 %v427, %v425
      %v516 = vpack.c.bf16 %v432, %v430
      %v517 = vpack.c.bf16 %v437, %v435
      %v518 = vpack.c.bf16 %v442, %v440
      %v519 = vpack.c.bf16 %v447, %v445
      %v520 = vpack.c.bf16 %v452, %v450
      %v521 = vpack.c.bf16 %v457, %v455
      %v522 = vpack.c.bf16 %v462, %v460
      %v523 = vpack.c.bf16 %v467, %v465
      %v524 = vpack.c.bf16 %v472, %v470
      %v525 = vpack.c.bf16 %v477, %v475
      %s526 = scalar_lea.vmem %s1, 64
      %v527 = vld [vmem:[%s526] sm:$0xf]
      %v528 = vld [vmem:[%s526 + $0x4] sm:$0xf]
      %v529 = vld [vmem:[%s526 + $0x8] sm:$0xf]
      %v530 = vld [vmem:[%s526 + $0xc] sm:$0xf]
      %v531 = vld [vmem:[%s526 + $0x10] sm:$0xf]
      %v532 = vld [vmem:[%s526 + $0x14] sm:$0xf]
      %v533 = vld [vmem:[%s526 + $0x18] sm:$0xf]
      %v534 = vld [vmem:[%s526 + $0x1c] sm:$0xf]
      %v535 = vld [vmem:[%s526 + $0x20] sm:$0xf]
      %v536 = vld [vmem:[%s526 + $0x24] sm:$0xf]
      %v537 = vld [vmem:[%s526 + $0x28] sm:$0xf]
      %v538 = vld [vmem:[%s526 + $0x2c] sm:$0xf]
      %v539 = vld [vmem:[%s526 + $0x30] sm:$0xf]
      %v540 = vld [vmem:[%s526 + $0x34] sm:$0xf]
      %v541 = vld [vmem:[%s526 + $0x38] sm:$0xf]
      %v542 = vld [vmem:[%s526 + $0x3c] sm:$0xf]
      %v559 = vunpack.c.l.b16 %v527
      %v560 = vunpack.c.l.b16 %v528
      %v561 = vunpack.c.l.b16 %v529
      %v562 = vunpack.c.l.b16 %v530
      %v563 = vunpack.c.l.b16 %v531
      %v564 = vunpack.c.l.b16 %v532
      %v565 = vunpack.c.l.b16 %v533
      %v566 = vunpack.c.l.b16 %v534
      %v567 = vunpack.c.l.b16 %v535
      %v568 = vunpack.c.l.b16 %v536
      %v569 = vunpack.c.l.b16 %v537
      %v570 = vunpack.c.l.b16 %v538
      %v571 = vunpack.c.l.b16 %v539
      %v572 = vunpack.c.l.b16 %v540
      %v573 = vunpack.c.l.b16 %v541
      %v574 = vunpack.c.l.b16 %v542
      %v575 = vpack.c.b16 %v560, %v559
      %v576 = vpack.c.b16 %v562, %v561
      %v577 = vpack.c.b16 %v564, %v563
      %v578 = vpack.c.b16 %v566, %v565
      %v579 = vpack.c.b16 %v568, %v567
      %v580 = vpack.c.b16 %v570, %v569
      %v581 = vpack.c.b16 %v572, %v571
      %v582 = vpack.c.b16 %v574, %v573
      %591 = vmatpush.bf16.msra.mxu0 %v582
      %592 = vmatpush.bf16.msra.mxu0 %v581
      %593 = vmatpush.bf16.msra.mxu0 %v580
      %594 = vmatpush.bf16.msra.mxu0 %v579
      %595 = vmatpush.bf16.msra.mxu0 %v578
      %596 = vmatpush.bf16.msra.mxu0 %v577
      %597 = vmatpush.bf16.msra.mxu0 %v576
      %598 = vmatpush.bf16.msra.mxu0 %v575
      %599 = vmatmul.bf16.gmra.mxu0 %v510
      %v600 = vpop.f32.mrf.mxu0
      %v601 = vadd.f32 0.0, %v600
      %v602 = vpop.f32.mrf.mxu0
      %v603 = vadd.f32 0.0, %v602
      %604 = vmatmul.bf16.gmra.mxu0 %v511
      %v605 = vpop.f32.mrf.mxu0
      %v606 = vadd.f32 0.0, %v605
      %v607 = vpop.f32.mrf.mxu0
      %v608 = vadd.f32 0.0, %v607
      %609 = vmatmul.bf16.gmra.mxu0 %v512
      %v610 = vpop.f32.mrf.mxu0
      %v611 = vadd.f32 0.0, %v610
      %v612 = vpop.f32.mrf.mxu0
      %v613 = vadd.f32 0.0, %v612
      %614 = vmatmul.bf16.gmra.mxu0 %v513
      %v615 = vpop.f32.mrf.mxu0
      %v616 = vadd.f32 0.0, %v615
      %v617 = vpop.f32.mrf.mxu0
      %v618 = vadd.f32 0.0, %v617
      %619 = vmatmul.bf16.gmra.mxu0 %v514
      %v620 = vpop.f32.mrf.mxu0
      %v621 = vadd.f32 0.0, %v620
      %v622 = vpop.f32.mrf.mxu0
      %v623 = vadd.f32 0.0, %v622
      %624 = vmatmul.bf16.gmra.mxu0 %v515
      %v625 = vpop.f32.mrf.mxu0
      %v626 = vadd.f32 0.0, %v625
      %v627 = vpop.f32.mrf.mxu0
      %v628 = vadd.f32 0.0, %v627
      %629 = vmatmul.bf16.gmra.mxu0 %v516
      %v630 = vpop.f32.mrf.mxu0
      %v631 = vadd.f32 0.0, %v630
      %v632 = vpop.f32.mrf.mxu0
      %v633 = vadd.f32 0.0, %v632
      %634 = vmatmul.bf16.gmra.mxu0 %v517
      %v635 = vpop.f32.mrf.mxu0
      %v636 = vadd.f32 0.0, %v635
      %v637 = vpop.f32.mrf.mxu0
      %v638 = vadd.f32 0.0, %v637
      %639 = vmatmul.bf16.gmra.mxu0 %v518
      %v640 = vpop.f32.mrf.mxu0
      %v641 = vadd.f32 0.0, %v640
      %v642 = vpop.f32.mrf.mxu0
      %v643 = vadd.f32 0.0, %v642
      %644 = vmatmul.bf16.gmra.mxu0 %v519
      %v645 = vpop.f32.mrf.mxu0
      %v646 = vadd.f32 0.0, %v645
      %v647 = vpop.f32.mrf.mxu0
      %v648 = vadd.f32 0.0, %v647
      %649 = vmatmul.bf16.gmra.mxu0 %v520
      %v650 = vpop.f32.mrf.mxu0
      %v651 = vadd.f32 0.0, %v650
      %v652 = vpop.f32.mrf.mxu0
      %v653 = vadd.f32 0.0, %v652
      %654 = vmatmul.bf16.gmra.mxu0 %v521
      %v655 = vpop.f32.mrf.mxu0
      %v656 = vadd.f32 0.0, %v655
      %v657 = vpop.f32.mrf.mxu0
      %v658 = vadd.f32 0.0, %v657
      %659 = vmatmul.bf16.gmra.mxu0 %v522
      %v660 = vpop.f32.mrf.mxu0
      %v661 = vadd.f32 0.0, %v660
      %v662 = vpop.f32.mrf.mxu0
      %v663 = vadd.f32 0.0, %v662
      %664 = vmatmul.bf16.gmra.mxu0 %v523
      %v665 = vpop.f32.mrf.mxu0
      %v666 = vadd.f32 0.0, %v665
      %v667 = vpop.f32.mrf.mxu0
      %v668 = vadd.f32 0.0, %v667
      %669 = vmatmul.bf16.gmra.mxu0 %v524
      %v670 = vpop.f32.mrf.mxu0
      %v671 = vadd.f32 0.0, %v670
      %v672 = vpop.f32.mrf.mxu0
      %v673 = vadd.f32 0.0, %v672
      %674 = vmatmul.bf16.gmra.mxu0 %v525
      %v675 = vpop.f32.mrf.mxu0
      %v676 = vadd.f32 0.0, %v675
      %v677 = vpop.f32.mrf.mxu0
      %v678 = vadd.f32 0.0, %v677
      %679 = vdwg.mxu0
      %v696 = vunpack.c.l.b16 %v333
      %v697 = vunpack.c.l.b16 %v334
      %v698 = vunpack.c.l.b16 %v335
      %v699 = vunpack.c.l.b16 %v336
      %v700 = vunpack.c.l.b16 %v337
      %v701 = vunpack.c.l.b16 %v338
      %v702 = vunpack.c.l.b16 %v339
      %v703 = vunpack.c.l.b16 %v340
      %v704 = vunpack.c.l.b16 %v341
      %v705 = vunpack.c.l.b16 %v342
      %v706 = vunpack.c.l.b16 %v343
      %v707 = vunpack.c.l.b16 %v344
      %v708 = vunpack.c.l.b16 %v345
      %v709 = vunpack.c.l.b16 %v346
      %v710 = vunpack.c.l.b16 %v347
      %v711 = vunpack.c.l.b16 %v348
      %v712 = vpack.c.b16 %v697, %v696
      %v713 = vpack.c.b16 %v699, %v698
      %v714 = vpack.c.b16 %v701, %v700
      %v715 = vpack.c.b16 %v703, %v702
      %v716 = vpack.c.b16 %v705, %v704
      %v717 = vpack.c.b16 %v707, %v706
      %v718 = vpack.c.b16 %v709, %v708
      %v719 = vpack.c.b16 %v711, %v710
      %728 = vmatpush.bf16.msra.mxu0 %v719
      %729 = vmatpush.bf16.msra.mxu0 %v718
      %730 = vmatpush.bf16.msra.mxu0 %v717
      %731 = vmatpush.bf16.msra.mxu0 %v716
      %732 = vmatpush.bf16.msra.mxu0 %v715
      %733 = vmatpush.bf16.msra.mxu0 %v714
      %734 = vmatpush.bf16.msra.mxu0 %v713
      %735 = vmatpush.bf16.msra.mxu0 %v712
      %736 = vmatmul.bf16.gmra.mxu0 %v317
      %v737 = vpop.f32.mrf.mxu0
      %v738 = vadd.f32 %v601, %v737
      %v739 = vpop.f32.mrf.mxu0
      %v740 = vadd.f32 %v603, %v739
      %741 = vmatmul.bf16.gmra.mxu0 %v318
      %v742 = vpop.f32.mrf.mxu0
      %v743 = vadd.f32 %v606, %v742
      %v744 = vpop.f32.mrf.mxu0
      %v745 = vadd.f32 %v608, %v744
      %746 = vmatmul.bf16.gmra.mxu0 %v319
      %v747 = vpop.f32.mrf.mxu0
      %v748 = vadd.f32 %v611, %v747
      %v749 = vpop.f32.mrf.mxu0
      %v750 = vadd.f32 %v613, %v749
      %751 = vmatmul.bf16.gmra.mxu0 %v320
      %v752 = vpop.f32.mrf.mxu0
      %v753 = vadd.f32 %v616, %v752
      %v754 = vpop.f32.mrf.mxu0
      %v755 = vadd.f32 %v618, %v754
      %756 = vmatmul.bf16.gmra.mxu0 %v321
      %v757 = vpop.f32.mrf.mxu0
      %v758 = vadd.f32 %v621, %v757
      %v759 = vpop.f32.mrf.mxu0
      %v760 = vadd.f32 %v623, %v759
      %761 = vmatmul.bf16.gmra.mxu0 %v322
      %v762 = vpop.f32.mrf.mxu0
      %v763 = vadd.f32 %v626, %v762
      %v764 = vpop.f32.mrf.mxu0
      %v765 = vadd.f32 %v628, %v764
      %766 = vmatmul.bf16.gmra.mxu0 %v323
      %v767 = vpop.f32.mrf.mxu0
      %v768 = vadd.f32 %v631, %v767
      %v769 = vpop.f32.mrf.mxu0
      %v770 = vadd.f32 %v633, %v769
      %771 = vmatmul.bf16.gmra.mxu0 %v324
      %v772 = vpop.f32.mrf.mxu0
      %v773 = vadd.f32 %v636, %v772
      %v774 = vpop.f32.mrf.mxu0
      %v775 = vadd.f32 %v638, %v774
      %776 = vmatmul.bf16.gmra.mxu0 %v325
      %v777 = vpop.f32.mrf.mxu0
      %v778 = vadd.f32 %v641, %v777
      %v779 = vpop.f32.mrf.mxu0
      %v780 = vadd.f32 %v643, %v779
      %781 = vmatmul.bf16.gmra.mxu0 %v326
      %v782 = vpop.f32.mrf.mxu0
      %v783 = vadd.f32 %v646, %v782
      %v784 = vpop.f32.mrf.mxu0
      %v785 = vadd.f32 %v648, %v784
      %786 = vmatmul.bf16.gmra.mxu0 %v327
      %v787 = vpop.f32.mrf.mxu0
      %v788 = vadd.f32 %v651, %v787
      %v789 = vpop.f32.mrf.mxu0
      %v790 = vadd.f32 %v653, %v789
      %791 = vmatmul.bf16.gmra.mxu0 %v328
      %v792 = vpop.f32.mrf.mxu0
      %v793 = vadd.f32 %v656, %v792
      %v794 = vpop.f32.mrf.mxu0
      %v795 = vadd.f32 %v658, %v794
      %796 = vmatmul.bf16.gmra.mxu0 %v329
      %v797 = vpop.f32.mrf.mxu0
      %v798 = vadd.f32 %v661, %v797
      %v799 = vpop.f32.mrf.mxu0
      %v800 = vadd.f32 %v663, %v799
      %801 = vmatmul.bf16.gmra.mxu0 %v330
      %v802 = vpop.f32.mrf.mxu0
      %v803 = vadd.f32 %v666, %v802
      %v804 = vpop.f32.mrf.mxu0
      %v805 = vadd.f32 %v668, %v804
      %806 = vmatmul.bf16.gmra.mxu0 %v331
      %v807 = vpop.f32.mrf.mxu0
      %v808 = vadd.f32 %v671, %v807
      %v809 = vpop.f32.mrf.mxu0
      %v810 = vadd.f32 %v673, %v809
      %811 = vmatmul.bf16.gmra.mxu0 %v332
      %v812 = vpop.f32.mrf.mxu0
      %v813 = vadd.f32 %v676, %v812
      %v814 = vpop.f32.mrf.mxu0
      %v815 = vadd.f32 %v678, %v814
      %816 = vdwg.mxu0
      %vm817 = vcmask 1045504
      %v818 = vrot.slane %v263, 2
      %v819 = vrot.slane %v264, 2
      %v820 = vsel %vm817, %v818, %v819
      %v821 = vrot.slane %v265, 2
      %v822 = vsel %vm817, %v819, %v821
      %v823 = vrot.slane %v266, 2
      %v824 = vrot.slane %v267, 2
      %v825 = vsel %vm817, %v823, %v824
      %v826 = vrot.slane %v268, 2
      %v827 = vsel %vm817, %v824, %v826
      %v828 = vrot.slane %v269, 2
      %v829 = vrot.slane %v270, 2
      %v830 = vsel %vm817, %v828, %v829
      %v831 = vrot.slane %v271, 2
      %v832 = vsel %vm817, %v829, %v831
      %v833 = vrot.slane %v272, 2
      %v834 = vrot.slane %v273, 2
      %v835 = vsel %vm817, %v833, %v834
      %v836 = vrot.slane %v274, 2
      %v837 = vsel %vm817, %v834, %v836
      %v838 = vrot.slane %v275, 2
      %v839 = vrot.slane %v276, 2
      %v840 = vsel %vm817, %v838, %v839
      %v841 = vrot.slane %v277, 2
      %v842 = vsel %vm817, %v839, %v841
      %v843 = vrot.slane %v278, 2
      %v844 = vrot.slane %v279, 2
      %v845 = vsel %vm817, %v843, %v844
      %v846 = vrot.slane %v280, 2
      %v847 = vsel %vm817, %v844, %v846
      %v848 = vrot.slane %v281, 2
      %v849 = vrot.slane %v282, 2
      %v850 = vsel %vm817, %v848, %v849
      %v851 = vrot.slane %v283, 2
      %v852 = vsel %vm817, %v849, %v851
      %v853 = vrot.slane %v284, 2
      %v854 = vrot.slane %v285, 2
      %v855 = vsel %vm817, %v853, %v854
      %v856 = vrot.slane %v286, 2
      %v857 = vsel %vm817, %v854, %v856
      %v858 = vrot.slane %v287, 2
      %v859 = vrot.slane %v288, 2
      %v860 = vsel %vm817, %v858, %v859
      %v861 = vrot.slane %v289, 2
      %v862 = vsel %vm817, %v859, %v861
      %v863 = vrot.slane %v290, 2
      %v864 = vrot.slane %v291, 2
      %v865 = vsel %vm817, %v863, %v864
      %v866 = vrot.slane %v292, 2
      %v867 = vsel %vm817, %v864, %v866
      %v868 = vrot.slane %v293, 2
      %v869 = vrot.slane %v294, 2
      %v870 = vsel %vm817, %v868, %v869
      %v871 = vrot.slane %v295, 2
      %v872 = vsel %vm817, %v869, %v871
      %v873 = vrot.slane %v296, 2
      %v874 = vrot.slane %v297, 2
      %v875 = vsel %vm817, %v873, %v874
      %v876 = vrot.slane %v298, 2
      %v877 = vsel %vm817, %v874, %v876
      %v878 = vrot.slane %v299, 2
      %v879 = vrot.slane %v300, 2
      %v880 = vsel %vm817, %v878, %v879
      %v881 = vrot.slane %v301, 2
      %v882 = vsel %vm817, %v879, %v881
      %v883 = vrot.slane %v302, 2
      %v884 = vrot.slane %v303, 2
      %v885 = vsel %vm817, %v883, %v884
      %v886 = vrot.slane %v304, 2
      %v887 = vsel %vm817, %v884, %v886
      %v888 = vrot.slane %v305, 2
      %v889 = vrot.slane %v306, 2
      %v890 = vsel %vm817, %v888, %v889
      %v891 = vrot.slane %v307, 2
      %v892 = vsel %vm817, %v889, %v891
      %v893 = vrot.slane %v308, 2
      %v894 = vrot.slane %v309, 2
      %v895 = vsel %vm817, %v893, %v894
      %v896 = vrot.slane %v310, 2
      %v897 = vsel %vm817, %v894, %v896
      %v930 = vpack.c.bf16 %v822, %v820
      %v931 = vpack.c.bf16 %v827, %v825
      %v932 = vpack.c.bf16 %v832, %v830
      %v933 = vpack.c.bf16 %v837, %v835
      %v934 = vpack.c.bf16 %v842, %v840
      %v935 = vpack.c.bf16 %v847, %v845
      %v936 = vpack.c.bf16 %v852, %v850
      %v937 = vpack.c.bf16 %v857, %v855
      %v938 = vpack.c.bf16 %v862, %v860
      %v939 = vpack.c.bf16 %v867, %v865
      %v940 = vpack.c.bf16 %v872, %v870
      %v941 = vpack.c.bf16 %v877, %v875
      %v942 = vpack.c.bf16 %v882, %v880
      %v943 = vpack.c.bf16 %v887, %v885
      %v944 = vpack.c.bf16 %v892, %v890
      %v945 = vpack.c.bf16 %v897, %v895
      %s946 = scalar_lea.vmem %s1, 128
      %v947 = vld [vmem:[%s946] sm:$0xf]
      %v948 = vld [vmem:[%s946 + $0x4] sm:$0xf]
      %v949 = vld [vmem:[%s946 + $0x8] sm:$0xf]
      %v950 = vld [vmem:[%s946 + $0xc] sm:$0xf]
      %v951 = vld [vmem:[%s946 + $0x10] sm:$0xf]
      %v952 = vld [vmem:[%s946 + $0x14] sm:$0xf]
      %v953 = vld [vmem:[%s946 + $0x18] sm:$0xf]
      %v954 = vld [vmem:[%s946 + $0x1c] sm:$0xf]
      %v955 = vld [vmem:[%s946 + $0x20] sm:$0xf]
      %v956 = vld [vmem:[%s946 + $0x24] sm:$0xf]
      %v957 = vld [vmem:[%s946 + $0x28] sm:$0xf]
      %v958 = vld [vmem:[%s946 + $0x2c] sm:$0xf]
      %v959 = vld [vmem:[%s946 + $0x30] sm:$0xf]
      %v960 = vld [vmem:[%s946 + $0x34] sm:$0xf]
      %v961 = vld [vmem:[%s946 + $0x38] sm:$0xf]
      %v962 = vld [vmem:[%s946 + $0x3c] sm:$0xf]
      %v979 = vunpack.c.l.b16 %v947
      %v980 = vunpack.c.l.b16 %v948
      %v981 = vunpack.c.l.b16 %v949
      %v982 = vunpack.c.l.b16 %v950
      %v983 = vunpack.c.l.b16 %v951
      %v984 = vunpack.c.l.b16 %v952
      %v985 = vunpack.c.l.b16 %v953
      %v986 = vunpack.c.l.b16 %v954
      %v987 = vunpack.c.l.b16 %v955
      %v988 = vunpack.c.l.b16 %v956
      %v989 = vunpack.c.l.b16 %v957
      %v990 = vunpack.c.l.b16 %v958
      %v991 = vunpack.c.l.b16 %v959
      %v992 = vunpack.c.l.b16 %v960
      %v993 = vunpack.c.l.b16 %v961
      %v994 = vunpack.c.l.b16 %v962
      %v995 = vpack.c.b16 %v980, %v979
      %v996 = vpack.c.b16 %v982, %v981
      %v997 = vpack.c.b16 %v984, %v983
      %v998 = vpack.c.b16 %v986, %v985
      %v999 = vpack.c.b16 %v988, %v987
      %v1000 = vpack.c.b16 %v990, %v989
      %v1001 = vpack.c.b16 %v992, %v991
      %v1002 = vpack.c.b16 %v994, %v993
      %1011 = vmatpush.bf16.msra.mxu0 %v1002
      %1012 = vmatpush.bf16.msra.mxu0 %v1001
      %1013 = vmatpush.bf16.msra.mxu0 %v1000
      %1014 = vmatpush.bf16.msra.mxu0 %v999
      %1015 = vmatpush.bf16.msra.mxu0 %v998
      %1016 = vmatpush.bf16.msra.mxu0 %v997
      %1017 = vmatpush.bf16.msra.mxu0 %v996
      %1018 = vmatpush.bf16.msra.mxu0 %v995
      %1019 = vmatmul.bf16.gmra.mxu0 %v930
      %v1020 = vpop.f32.mrf.mxu0
      %v1021 = vadd.f32 0.0, %v1020
      %v1022 = vpop.f32.mrf.mxu0
      %v1023 = vadd.f32 0.0, %v1022
      %1024 = vmatmul.bf16.gmra.mxu0 %v931
      %v1025 = vpop.f32.mrf.mxu0
      %v1026 = vadd.f32 0.0, %v1025
      %v1027 = vpop.f32.mrf.mxu0
      %v1028 = vadd.f32 0.0, %v1027
      %1029 = vmatmul.bf16.gmra.mxu0 %v932
      %v1030 = vpop.f32.mrf.mxu0
      %v1031 = vadd.f32 0.0, %v1030
      %v1032 = vpop.f32.mrf.mxu0
      %v1033 = vadd.f32 0.0, %v1032
      %1034 = vmatmul.bf16.gmra.mxu0 %v933
      %v1035 = vpop.f32.mrf.mxu0
      %v1036 = vadd.f32 0.0, %v1035
      %v1037 = vpop.f32.mrf.mxu0
      %v1038 = vadd.f32 0.0, %v1037
      %1039 = vmatmul.bf16.gmra.mxu0 %v934
      %v1040 = vpop.f32.mrf.mxu0
      %v1041 = vadd.f32 0.0, %v1040
      %v1042 = vpop.f32.mrf.mxu0
      %v1043 = vadd.f32 0.0, %v1042
      %1044 = vmatmul.bf16.gmra.mxu0 %v935
      %v1045 = vpop.f32.mrf.mxu0
      %v1046 = vadd.f32 0.0, %v1045
      %v1047 = vpop.f32.mrf.mxu0
      %v1048 = vadd.f32 0.0, %v1047
      %1049 = vmatmul.bf16.gmra.mxu0 %v936
      %v1050 = vpop.f32.mrf.mxu0
      %v1051 = vadd.f32 0.0, %v1050
      %v1052 = vpop.f32.mrf.mxu0
      %v1053 = vadd.f32 0.0, %v1052
      %1054 = vmatmul.bf16.gmra.mxu0 %v937
      %v1055 = vpop.f32.mrf.mxu0
      %v1056 = vadd.f32 0.0, %v1055
      %v1057 = vpop.f32.mrf.mxu0
      %v1058 = vadd.f32 0.0, %v1057
      %1059 = vmatmul.bf16.gmra.mxu0 %v938
      %v1060 = vpop.f32.mrf.mxu0
      %v1061 = vadd.f32 0.0, %v1060
      %v1062 = vpop.f32.mrf.mxu0
      %v1063 = vadd.f32 0.0, %v1062
      %1064 = vmatmul.bf16.gmra.mxu0 %v939
      %v1065 = vpop.f32.mrf.mxu0
      %v1066 = vadd.f32 0.0, %v1065
      %v1067 = vpop.f32.mrf.mxu0
      %v1068 = vadd.f32 0.0, %v1067
      %1069 = vmatmul.bf16.gmra.mxu0 %v940
      %v1070 = vpop.f32.mrf.mxu0
      %v1071 = vadd.f32 0.0, %v1070
      %v1072 = vpop.f32.mrf.mxu0
      %v1073 = vadd.f32 0.0, %v1072
      %1074 = vmatmul.bf16.gmra.mxu0 %v941
      %v1075 = vpop.f32.mrf.mxu0
      %v1076 = vadd.f32 0.0, %v1075
      %v1077 = vpop.f32.mrf.mxu0
      %v1078 = vadd.f32 0.0, %v1077
      %1079 = vmatmul.bf16.gmra.mxu0 %v942
      %v1080 = vpop.f32.mrf.mxu0
      %v1081 = vadd.f32 0.0, %v1080
      %v1082 = vpop.f32.mrf.mxu0
      %v1083 = vadd.f32 0.0, %v1082
      %1084 = vmatmul.bf16.gmra.mxu0 %v943
      %v1085 = vpop.f32.mrf.mxu0
      %v1086 = vadd.f32 0.0, %v1085
      %v1087 = vpop.f32.mrf.mxu0
      %v1088 = vadd.f32 0.0, %v1087
      %1089 = vmatmul.bf16.gmra.mxu0 %v944
      %v1090 = vpop.f32.mrf.mxu0
      %v1091 = vadd.f32 0.0, %v1090
      %v1092 = vpop.f32.mrf.mxu0
      %v1093 = vadd.f32 0.0, %v1092
      %1094 = vmatmul.bf16.gmra.mxu0 %v945
      %v1095 = vpop.f32.mrf.mxu0
      %v1096 = vadd.f32 0.0, %v1095
      %v1097 = vpop.f32.mrf.mxu0
      %v1098 = vadd.f32 0.0, %v1097
      %1099 = vdwg.mxu0
      %v1100 = vadd.f32 %v738, %v1021
      %v1101 = vadd.f32 %v740, %v1023
      %v1102 = vadd.f32 %v743, %v1026
      %v1103 = vadd.f32 %v745, %v1028
      %v1104 = vadd.f32 %v748, %v1031
      %v1105 = vadd.f32 %v750, %v1033
      %v1106 = vadd.f32 %v753, %v1036
      %v1107 = vadd.f32 %v755, %v1038
      %v1108 = vadd.f32 %v758, %v1041
      %v1109 = vadd.f32 %v760, %v1043
      %v1110 = vadd.f32 %v763, %v1046
      %v1111 = vadd.f32 %v765, %v1048
      %v1112 = vadd.f32 %v768, %v1051
      %v1113 = vadd.f32 %v770, %v1053
      %v1114 = vadd.f32 %v773, %v1056
      %v1115 = vadd.f32 %v775, %v1058
      %v1116 = vadd.f32 %v778, %v1061
      %v1117 = vadd.f32 %v780, %v1063
      %v1118 = vadd.f32 %v783, %v1066
      %v1119 = vadd.f32 %v785, %v1068
      %v1120 = vadd.f32 %v788, %v1071
      %v1121 = vadd.f32 %v790, %v1073
      %v1122 = vadd.f32 %v793, %v1076
      %v1123 = vadd.f32 %v795, %v1078
      %v1124 = vadd.f32 %v798, %v1081
      %v1125 = vadd.f32 %v800, %v1083
      %v1126 = vadd.f32 %v803, %v1086
      %v1127 = vadd.f32 %v805, %v1088
      %v1128 = vadd.f32 %v808, %v1091
      %v1129 = vadd.f32 %v810, %v1093
      %v1130 = vadd.f32 %v813, %v1096
      %v1131 = vadd.f32 %v815, %v1098
      %v1132 = vpack.c.bf16 %v312, %v311
      %s1133 = scalar_lea.vmem %s1, 192
      %v1134 = vld [vmem:[%s1133] sm:$0xf]
      %v1135 = vld [vmem:[%s1133 + $0x4] sm:$0xf]
      %v1136 = vld [vmem:[%s1133 + $0x8] sm:$0xf]
      %v1137 = vld [vmem:[%s1133 + $0xc] sm:$0xf]
      %v1138 = vld [vmem:[%s1133 + $0x10] sm:$0xf]
      %v1139 = vld [vmem:[%s1133 + $0x14] sm:$0xf]
      %v1140 = vld [vmem:[%s1133 + $0x18] sm:$0xf]
      %v1141 = vld [vmem:[%s1133 + $0x1c] sm:$0xf]
      %v1142 = vld [vmem:[%s1133 + $0x20] sm:$0xf]
      %v1143 = vld [vmem:[%s1133 + $0x24] sm:$0xf]
      %v1144 = vld [vmem:[%s1133 + $0x28] sm:$0xf]
      %v1145 = vld [vmem:[%s1133 + $0x2c] sm:$0xf]
      %v1146 = vld [vmem:[%s1133 + $0x30] sm:$0xf]
      %v1147 = vld [vmem:[%s1133 + $0x34] sm:$0xf]
      %v1148 = vld [vmem:[%s1133 + $0x38] sm:$0xf]
      %v1149 = vld [vmem:[%s1133 + $0x3c] sm:$0xf]
      %v1166 = vunpack.c.l.b16 %v1134
      %v1167 = vunpack.c.l.b16 %v1135
      %v1168 = vunpack.c.l.b16 %v1136
      %v1169 = vunpack.c.l.b16 %v1137
      %v1170 = vunpack.c.l.b16 %v1138
      %v1171 = vunpack.c.l.b16 %v1139
      %v1172 = vunpack.c.l.b16 %v1140
      %v1173 = vunpack.c.l.b16 %v1141
      %v1174 = vunpack.c.l.b16 %v1142
      %v1175 = vunpack.c.l.b16 %v1143
      %v1176 = vunpack.c.l.b16 %v1144
      %v1177 = vunpack.c.l.b16 %v1145
      %v1178 = vunpack.c.l.b16 %v1146
      %v1179 = vunpack.c.l.b16 %v1147
      %v1180 = vunpack.c.l.b16 %v1148
      %v1181 = vunpack.c.l.b16 %v1149
      %v1182 = vpack.c.b16 %v1167, %v1166
      %v1183 = vpack.c.b16 %v1169, %v1168
      %v1184 = vpack.c.b16 %v1171, %v1170
      %v1185 = vpack.c.b16 %v1173, %v1172
      %v1186 = vpack.c.b16 %v1175, %v1174
      %v1187 = vpack.c.b16 %v1177, %v1176
      %v1188 = vpack.c.b16 %v1179, %v1178
      %v1189 = vpack.c.b16 %v1181, %v1180
      %1198 = vmatpush.bf16.msra.mxu0 %v1189
      %1199 = vmatpush.bf16.msra.mxu0 %v1188
      %1200 = vmatpush.bf16.msra.mxu0 %v1187
      %1201 = vmatpush.bf16.msra.mxu0 %v1186
      %1202 = vmatpush.bf16.msra.mxu0 %v1185
      %1203 = vmatpush.bf16.msra.mxu0 %v1184
      %1204 = vmatpush.bf16.msra.mxu0 %v1183
      %1205 = vmatpush.bf16.msra.mxu0 %v1182
      %1206 = vmatmul.bf16.gmra.mxu0 %v318
      %v1207 = vpop.f32.mrf.mxu0
      %v1208 = vadd.f32 0.0, %v1207
      %v1209 = vpop.f32.mrf.mxu0
      %v1210 = vadd.f32 0.0, %v1209
      %1211 = vmatmul.bf16.gmra.mxu0 %v319
      %v1212 = vpop.f32.mrf.mxu0
      %v1213 = vadd.f32 0.0, %v1212
      %v1214 = vpop.f32.mrf.mxu0
      %v1215 = vadd.f32 0.0, %v1214
      %1216 = vmatmul.bf16.gmra.mxu0 %v320
      %v1217 = vpop.f32.mrf.mxu0
      %v1218 = vadd.f32 0.0, %v1217
      %v1219 = vpop.f32.mrf.mxu0
      %v1220 = vadd.f32 0.0, %v1219
      %1221 = vmatmul.bf16.gmra.mxu0 %v321
      %v1222 = vpop.f32.mrf.mxu0
      %v1223 = vadd.f32 0.0, %v1222
      %v1224 = vpop.f32.mrf.mxu0
      %v1225 = vadd.f32 0.0, %v1224
      %1226 = vmatmul.bf16.gmra.mxu0 %v322
      %v1227 = vpop.f32.mrf.mxu0
      %v1228 = vadd.f32 0.0, %v1227
      %v1229 = vpop.f32.mrf.mxu0
      %v1230 = vadd.f32 0.0, %v1229
      %1231 = vmatmul.bf16.gmra.mxu0 %v323
      %v1232 = vpop.f32.mrf.mxu0
      %v1233 = vadd.f32 0.0, %v1232
      %v1234 = vpop.f32.mrf.mxu0
      %v1235 = vadd.f32 0.0, %v1234
      %1236 = vmatmul.bf16.gmra.mxu0 %v324
      %v1237 = vpop.f32.mrf.mxu0
      %v1238 = vadd.f32 0.0, %v1237
      %v1239 = vpop.f32.mrf.mxu0
      %v1240 = vadd.f32 0.0, %v1239
      %1241 = vmatmul.bf16.gmra.mxu0 %v325
      %v1242 = vpop.f32.mrf.mxu0
      %v1243 = vadd.f32 0.0, %v1242
      %v1244 = vpop.f32.mrf.mxu0
      %v1245 = vadd.f32 0.0, %v1244
      %1246 = vmatmul.bf16.gmra.mxu0 %v326
      %v1247 = vpop.f32.mrf.mxu0
      %v1248 = vadd.f32 0.0, %v1247
      %v1249 = vpop.f32.mrf.mxu0
      %v1250 = vadd.f32 0.0, %v1249
      %1251 = vmatmul.bf16.gmra.mxu0 %v327
      %v1252 = vpop.f32.mrf.mxu0
      %v1253 = vadd.f32 0.0, %v1252
      %v1254 = vpop.f32.mrf.mxu0
      %v1255 = vadd.f32 0.0, %v1254
      %1256 = vmatmul.bf16.gmra.mxu0 %v328
      %v1257 = vpop.f32.mrf.mxu0
      %v1258 = vadd.f32 0.0, %v1257
      %v1259 = vpop.f32.mrf.mxu0
      %v1260 = vadd.f32 0.0, %v1259
      %1261 = vmatmul.bf16.gmra.mxu0 %v329
      %v1262 = vpop.f32.mrf.mxu0
      %v1263 = vadd.f32 0.0, %v1262
      %v1264 = vpop.f32.mrf.mxu0
      %v1265 = vadd.f32 0.0, %v1264
      %1266 = vmatmul.bf16.gmra.mxu0 %v330
      %v1267 = vpop.f32.mrf.mxu0
      %v1268 = vadd.f32 0.0, %v1267
      %v1269 = vpop.f32.mrf.mxu0
      %v1270 = vadd.f32 0.0, %v1269
      %1271 = vmatmul.bf16.gmra.mxu0 %v331
      %v1272 = vpop.f32.mrf.mxu0
      %v1273 = vadd.f32 0.0, %v1272
      %v1274 = vpop.f32.mrf.mxu0
      %v1275 = vadd.f32 0.0, %v1274
      %1276 = vmatmul.bf16.gmra.mxu0 %v332
      %v1277 = vpop.f32.mrf.mxu0
      %v1278 = vadd.f32 0.0, %v1277
      %v1279 = vpop.f32.mrf.mxu0
      %v1280 = vadd.f32 0.0, %v1279
      %1281 = vmatmul.bf16.gmra.mxu0 %v1132
      %v1282 = vpop.f32.mrf.mxu0
      %v1283 = vadd.f32 0.0, %v1282
      %v1284 = vpop.f32.mrf.mxu0
      %v1285 = vadd.f32 0.0, %v1284
      %1286 = vdwg.mxu0
      %v1287 = vadd.f32 %v1100, %v1208
      %v1288 = vadd.f32 %v1101, %v1210
      %v1289 = vadd.f32 %v1102, %v1213
      %v1290 = vadd.f32 %v1103, %v1215
      %v1291 = vadd.f32 %v1104, %v1218
      %v1292 = vadd.f32 %v1105, %v1220
      %v1293 = vadd.f32 %v1106, %v1223
      %v1294 = vadd.f32 %v1107, %v1225
      %v1295 = vadd.f32 %v1108, %v1228
      %v1296 = vadd.f32 %v1109, %v1230
      %v1297 = vadd.f32 %v1110, %v1233
      %v1298 = vadd.f32 %v1111, %v1235
      %v1299 = vadd.f32 %v1112, %v1238
      %v1300 = vadd.f32 %v1113, %v1240
      %v1301 = vadd.f32 %v1114, %v1243
      %v1302 = vadd.f32 %v1115, %v1245
      %v1303 = vadd.f32 %v1116, %v1248
      %v1304 = vadd.f32 %v1117, %v1250
      %v1305 = vadd.f32 %v1118, %v1253
      %v1306 = vadd.f32 %v1119, %v1255
      %v1307 = vadd.f32 %v1120, %v1258
      %v1308 = vadd.f32 %v1121, %v1260
      %v1309 = vadd.f32 %v1122, %v1263
      %v1310 = vadd.f32 %v1123, %v1265
      %v1311 = vadd.f32 %v1124, %v1268
      %v1312 = vadd.f32 %v1125, %v1270
      %v1313 = vadd.f32 %v1126, %v1273
      %v1314 = vadd.f32 %v1127, %v1275
      %v1315 = vadd.f32 %v1128, %v1278
      %v1316 = vadd.f32 %v1129, %v1280
      %v1317 = vadd.f32 %v1130, %v1283
      %v1318 = vadd.f32 %v1131, %v1285
      %v1322 = vrot.slane %v311, 1
      %v1323 = vrot.slane %v312, 1
      %v1324 = vsel %vm397, %v1322, %v1323
      %v1325 = vrot.slane %v313, 1
      %v1326 = vsel %vm397, %v1323, %v1325
      %v1329 = vpack.c.bf16 %v1326, %v1324
      %s1330 = scalar_lea.vmem %s1, 256
      %v1331 = vld [vmem:[%s1330] sm:$0xf]
      %v1332 = vld [vmem:[%s1330 + $0x4] sm:$0xf]
      %v1333 = vld [vmem:[%s1330 + $0x8] sm:$0xf]
      %v1334 = vld [vmem:[%s1330 + $0xc] sm:$0xf]
      %v1335 = vld [vmem:[%s1330 + $0x10] sm:$0xf]
      %v1336 = vld [vmem:[%s1330 + $0x14] sm:$0xf]
      %v1337 = vld [vmem:[%s1330 + $0x18] sm:$0xf]
      %v1338 = vld [vmem:[%s1330 + $0x1c] sm:$0xf]
      %v1339 = vld [vmem:[%s1330 + $0x20] sm:$0xf]
      %v1340 = vld [vmem:[%s1330 + $0x24] sm:$0xf]
      %v1341 = vld [vmem:[%s1330 + $0x28] sm:$0xf]
      %v1342 = vld [vmem:[%s1330 + $0x2c] sm:$0xf]
      %v1343 = vld [vmem:[%s1330 + $0x30] sm:$0xf]
      %v1344 = vld [vmem:[%s1330 + $0x34] sm:$0xf]
      %v1345 = vld [vmem:[%s1330 + $0x38] sm:$0xf]
      %v1346 = vld [vmem:[%s1330 + $0x3c] sm:$0xf]
      %v1363 = vunpack.c.l.b16 %v1331
      %v1364 = vunpack.c.l.b16 %v1332
      %v1365 = vunpack.c.l.b16 %v1333
      %v1366 = vunpack.c.l.b16 %v1334
      %v1367 = vunpack.c.l.b16 %v1335
      %v1368 = vunpack.c.l.b16 %v1336
      %v1369 = vunpack.c.l.b16 %v1337
      %v1370 = vunpack.c.l.b16 %v1338
      %v1371 = vunpack.c.l.b16 %v1339
      %v1372 = vunpack.c.l.b16 %v1340
      %v1373 = vunpack.c.l.b16 %v1341
      %v1374 = vunpack.c.l.b16 %v1342
      %v1375 = vunpack.c.l.b16 %v1343
      %v1376 = vunpack.c.l.b16 %v1344
      %v1377 = vunpack.c.l.b16 %v1345
      %v1378 = vunpack.c.l.b16 %v1346
      %v1379 = vpack.c.b16 %v1364, %v1363
      %v1380 = vpack.c.b16 %v1366, %v1365
      %v1381 = vpack.c.b16 %v1368, %v1367
      %v1382 = vpack.c.b16 %v1370, %v1369
      %v1383 = vpack.c.b16 %v1372, %v1371
      %v1384 = vpack.c.b16 %v1374, %v1373
      %v1385 = vpack.c.b16 %v1376, %v1375
      %v1386 = vpack.c.b16 %v1378, %v1377
      %1395 = vmatpush.bf16.msra.mxu0 %v1386
      %1396 = vmatpush.bf16.msra.mxu0 %v1385
      %1397 = vmatpush.bf16.msra.mxu0 %v1384
      %1398 = vmatpush.bf16.msra.mxu0 %v1383
      %1399 = vmatpush.bf16.msra.mxu0 %v1382
      %1400 = vmatpush.bf16.msra.mxu0 %v1381
      %1401 = vmatpush.bf16.msra.mxu0 %v1380
      %1402 = vmatpush.bf16.msra.mxu0 %v1379
      %1403 = vmatmul.bf16.gmra.mxu0 %v511
      %v1404 = vpop.f32.mrf.mxu0
      %v1405 = vadd.f32 0.0, %v1404
      %v1406 = vpop.f32.mrf.mxu0
      %v1407 = vadd.f32 0.0, %v1406
      %1408 = vmatmul.bf16.gmra.mxu0 %v512
      %v1409 = vpop.f32.mrf.mxu0
      %v1410 = vadd.f32 0.0, %v1409
      %v1411 = vpop.f32.mrf.mxu0
      %v1412 = vadd.f32 0.0, %v1411
      %1413 = vmatmul.bf16.gmra.mxu0 %v513
      %v1414 = vpop.f32.mrf.mxu0
      %v1415 = vadd.f32 0.0, %v1414
      %v1416 = vpop.f32.mrf.mxu0
      %v1417 = vadd.f32 0.0, %v1416
      %1418 = vmatmul.bf16.gmra.mxu0 %v514
      %v1419 = vpop.f32.mrf.mxu0
      %v1420 = vadd.f32 0.0, %v1419
      %v1421 = vpop.f32.mrf.mxu0
      %v1422 = vadd.f32 0.0, %v1421
      %1423 = vmatmul.bf16.gmra.mxu0 %v515
      %v1424 = vpop.f32.mrf.mxu0
      %v1425 = vadd.f32 0.0, %v1424
      %v1426 = vpop.f32.mrf.mxu0
      %v1427 = vadd.f32 0.0, %v1426
      %1428 = vmatmul.bf16.gmra.mxu0 %v516
      %v1429 = vpop.f32.mrf.mxu0
      %v1430 = vadd.f32 0.0, %v1429
      %v1431 = vpop.f32.mrf.mxu0
      %v1432 = vadd.f32 0.0, %v1431
      %1433 = vmatmul.bf16.gmra.mxu0 %v517
      %v1434 = vpop.f32.mrf.mxu0
      %v1435 = vadd.f32 0.0, %v1434
      %v1436 = vpop.f32.mrf.mxu0
      %v1437 = vadd.f32 0.0, %v1436
      %1438 = vmatmul.bf16.gmra.mxu0 %v518
      %v1439 = vpop.f32.mrf.mxu0
      %v1440 = vadd.f32 0.0, %v1439
      %v1441 = vpop.f32.mrf.mxu0
      %v1442 = vadd.f32 0.0, %v1441
      %1443 = vmatmul.bf16.gmra.mxu0 %v519
      %v1444 = vpop.f32.mrf.mxu0
      %v1445 = vadd.f32 0.0, %v1444
      %v1446 = vpop.f32.mrf.mxu0
      %v1447 = vadd.f32 0.0, %v1446
      %1448 = vmatmul.bf16.gmra.mxu0 %v520
      %v1449 = vpop.f32.mrf.mxu0
      %v1450 = vadd.f32 0.0, %v1449
      %v1451 = vpop.f32.mrf.mxu0
      %v1452 = vadd.f32 0.0, %v1451
      %1453 = vmatmul.bf16.gmra.mxu0 %v521
      %v1454 = vpop.f32.mrf.mxu0
      %v1455 = vadd.f32 0.0, %v1454
      %v1456 = vpop.f32.mrf.mxu0
      %v1457 = vadd.f32 0.0, %v1456
      %1458 = vmatmul.bf16.gmra.mxu0 %v522
      %v1459 = vpop.f32.mrf.mxu0
      %v1460 = vadd.f32 0.0, %v1459
      %v1461 = vpop.f32.mrf.mxu0
      %v1462 = vadd.f32 0.0, %v1461
      %1463 = vmatmul.bf16.gmra.mxu0 %v523
      %v1464 = vpop.f32.mrf.mxu0
      %v1465 = vadd.f32 0.0, %v1464
      %v1466 = vpop.f32.mrf.mxu0
      %v1467 = vadd.f32 0.0, %v1466
      %1468 = vmatmul.bf16.gmra.mxu0 %v524
      %v1469 = vpop.f32.mrf.mxu0
      %v1470 = vadd.f32 0.0, %v1469
      %v1471 = vpop.f32.mrf.mxu0
      %v1472 = vadd.f32 0.0, %v1471
      %1473 = vmatmul.bf16.gmra.mxu0 %v525
      %v1474 = vpop.f32.mrf.mxu0
      %v1475 = vadd.f32 0.0, %v1474
      %v1476 = vpop.f32.mrf.mxu0
      %v1477 = vadd.f32 0.0, %v1476
      %1478 = vmatmul.bf16.gmra.mxu0 %v1329
      %v1479 = vpop.f32.mrf.mxu0
      %v1480 = vadd.f32 0.0, %v1479
      %v1481 = vpop.f32.mrf.mxu0
      %v1482 = vadd.f32 0.0, %v1481
      %1483 = vdwg.mxu0
      %v1484 = vadd.f32 %v1287, %v1405
      %v1485 = vadd.f32 %v1288, %v1407
      %v1486 = vadd.f32 %v1289, %v1410
      %v1487 = vadd.f32 %v1290, %v1412
      %v1488 = vadd.f32 %v1291, %v1415
      %v1489 = vadd.f32 %v1292, %v1417
      %v1490 = vadd.f32 %v1293, %v1420
      %v1491 = vadd.f32 %v1294, %v1422
      %v1492 = vadd.f32 %v1295, %v1425
      %v1493 = vadd.f32 %v1296, %v1427
      %v1494 = vadd.f32 %v1297, %v1430
      %v1495 = vadd.f32 %v1298, %v1432
      %v1496 = vadd.f32 %v1299, %v1435
      %v1497 = vadd.f32 %v1300, %v1437
      %v1498 = vadd.f32 %v1301, %v1440
      %v1499 = vadd.f32 %v1302, %v1442
      %v1500 = vadd.f32 %v1303, %v1445
      %v1501 = vadd.f32 %v1304, %v1447
      %v1502 = vadd.f32 %v1305, %v1450
      %v1503 = vadd.f32 %v1306, %v1452
      %v1504 = vadd.f32 %v1307, %v1455
      %v1505 = vadd.f32 %v1308, %v1457
      %v1506 = vadd.f32 %v1309, %v1460
      %v1507 = vadd.f32 %v1310, %v1462
      %v1508 = vadd.f32 %v1311, %v1465
      %v1509 = vadd.f32 %v1312, %v1467
      %v1510 = vadd.f32 %v1313, %v1470
      %v1511 = vadd.f32 %v1314, %v1472
      %v1512 = vadd.f32 %v1315, %v1475
      %v1513 = vadd.f32 %v1316, %v1477
      %v1514 = vadd.f32 %v1317, %v1480
      %v1515 = vadd.f32 %v1318, %v1482
      %v1516 = vrot.slane %v311, 2
      %v1517 = vrot.slane %v312, 2
      %v1518 = vsel %vm817, %v1516, %v1517
      %v1519 = vrot.slane %v313, 2
      %v1520 = vsel %vm817, %v1517, %v1519
      %v1523 = vpack.c.bf16 %v1520, %v1518
      %s1524 = scalar_lea.vmem %s1, 320
      %v1525 = vld [vmem:[%s1524] sm:$0xf]
      %v1526 = vld [vmem:[%s1524 + $0x4] sm:$0xf]
      %v1527 = vld [vmem:[%s1524 + $0x8] sm:$0xf]
      %v1528 = vld [vmem:[%s1524 + $0xc] sm:$0xf]
      %v1529 = vld [vmem:[%s1524 + $0x10] sm:$0xf]
      %v1530 = vld [vmem:[%s1524 + $0x14] sm:$0xf]
      %v1531 = vld [vmem:[%s1524 + $0x18] sm:$0xf]
      %v1532 = vld [vmem:[%s1524 + $0x1c] sm:$0xf]
      %v1533 = vld [vmem:[%s1524 + $0x20] sm:$0xf]
      %v1534 = vld [vmem:[%s1524 + $0x24] sm:$0xf]
      %v1535 = vld [vmem:[%s1524 + $0x28] sm:$0xf]
      %v1536 = vld [vmem:[%s1524 + $0x2c] sm:$0xf]
      %v1537 = vld [vmem:[%s1524 + $0x30] sm:$0xf]
      %v1538 = vld [vmem:[%s1524 + $0x34] sm:$0xf]
      %v1539 = vld [vmem:[%s1524 + $0x38] sm:$0xf]
      %v1540 = vld [vmem:[%s1524 + $0x3c] sm:$0xf]
      %v1557 = vunpack.c.l.b16 %v1525
      %v1558 = vunpack.c.l.b16 %v1526
      %v1559 = vunpack.c.l.b16 %v1527
      %v1560 = vunpack.c.l.b16 %v1528
      %v1561 = vunpack.c.l.b16 %v1529
      %v1562 = vunpack.c.l.b16 %v1530
      %v1563 = vunpack.c.l.b16 %v1531
      %v1564 = vunpack.c.l.b16 %v1532
      %v1565 = vunpack.c.l.b16 %v1533
      %v1566 = vunpack.c.l.b16 %v1534
      %v1567 = vunpack.c.l.b16 %v1535
      %v1568 = vunpack.c.l.b16 %v1536
      %v1569 = vunpack.c.l.b16 %v1537
      %v1570 = vunpack.c.l.b16 %v1538
      %v1571 = vunpack.c.l.b16 %v1539
      %v1572 = vunpack.c.l.b16 %v1540
      %v1573 = vpack.c.b16 %v1558, %v1557
      %v1574 = vpack.c.b16 %v1560, %v1559
      %v1575 = vpack.c.b16 %v1562, %v1561
      %v1576 = vpack.c.b16 %v1564, %v1563
      %v1577 = vpack.c.b16 %v1566, %v1565
      %v1578 = vpack.c.b16 %v1568, %v1567
      %v1579 = vpack.c.b16 %v1570, %v1569
      %v1580 = vpack.c.b16 %v1572, %v1571
      %1589 = vmatpush.bf16.msra.mxu0 %v1580
      %1590 = vmatpush.bf16.msra.mxu0 %v1579
      %1591 = vmatpush.bf16.msra.mxu0 %v1578
      %1592 = vmatpush.bf16.msra.mxu0 %v1577
      %1593 = vmatpush.bf16.msra.mxu0 %v1576
      %1594 = vmatpush.bf16.msra.mxu0 %v1575
      %1595 = vmatpush.bf16.msra.mxu0 %v1574
      %1596 = vmatpush.bf16.msra.mxu0 %v1573
      %1597 = vmatmul.bf16.gmra.mxu0 %v931
      %v1598 = vpop.f32.mrf.mxu0
      %v1599 = vadd.f32 0.0, %v1598
      %v1600 = vpop.f32.mrf.mxu0
      %v1601 = vadd.f32 0.0, %v1600
      %1602 = vmatmul.bf16.gmra.mxu0 %v932
      %v1603 = vpop.f32.mrf.mxu0
      %v1604 = vadd.f32 0.0, %v1603
      %v1605 = vpop.f32.mrf.mxu0
      %v1606 = vadd.f32 0.0, %v1605
      %1607 = vmatmul.bf16.gmra.mxu0 %v933
      %v1608 = vpop.f32.mrf.mxu0
      %v1609 = vadd.f32 0.0, %v1608
      %v1610 = vpop.f32.mrf.mxu0
      %v1611 = vadd.f32 0.0, %v1610
      %1612 = vmatmul.bf16.gmra.mxu0 %v934
      %v1613 = vpop.f32.mrf.mxu0
      %v1614 = vadd.f32 0.0, %v1613
      %v1615 = vpop.f32.mrf.mxu0
      %v1616 = vadd.f32 0.0, %v1615
      %1617 = vmatmul.bf16.gmra.mxu0 %v935
      %v1618 = vpop.f32.mrf.mxu0
      %v1619 = vadd.f32 0.0, %v1618
      %v1620 = vpop.f32.mrf.mxu0
      %v1621 = vadd.f32 0.0, %v1620
      %1622 = vmatmul.bf16.gmra.mxu0 %v936
      %v1623 = vpop.f32.mrf.mxu0
      %v1624 = vadd.f32 0.0, %v1623
      %v1625 = vpop.f32.mrf.mxu0
      %v1626 = vadd.f32 0.0, %v1625
      %1627 = vmatmul.bf16.gmra.mxu0 %v937
      %v1628 = vpop.f32.mrf.mxu0
      %v1629 = vadd.f32 0.0, %v1628
      %v1630 = vpop.f32.mrf.mxu0
      %v1631 = vadd.f32 0.0, %v1630
      %1632 = vmatmul.bf16.gmra.mxu0 %v938
      %v1633 = vpop.f32.mrf.mxu0
      %v1634 = vadd.f32 0.0, %v1633
      %v1635 = vpop.f32.mrf.mxu0
      %v1636 = vadd.f32 0.0, %v1635
      %1637 = vmatmul.bf16.gmra.mxu0 %v939
      %v1638 = vpop.f32.mrf.mxu0
      %v1639 = vadd.f32 0.0, %v1638
      %v1640 = vpop.f32.mrf.mxu0
      %v1641 = vadd.f32 0.0, %v1640
      %1642 = vmatmul.bf16.gmra.mxu0 %v940
      %v1643 = vpop.f32.mrf.mxu0
      %v1644 = vadd.f32 0.0, %v1643
      %v1645 = vpop.f32.mrf.mxu0
      %v1646 = vadd.f32 0.0, %v1645
      %1647 = vmatmul.bf16.gmra.mxu0 %v941
      %v1648 = vpop.f32.mrf.mxu0
      %v1649 = vadd.f32 0.0, %v1648
      %v1650 = vpop.f32.mrf.mxu0
      %v1651 = vadd.f32 0.0, %v1650
      %1652 = vmatmul.bf16.gmra.mxu0 %v942
      %v1653 = vpop.f32.mrf.mxu0
      %v1654 = vadd.f32 0.0, %v1653
      %v1655 = vpop.f32.mrf.mxu0
      %v1656 = vadd.f32 0.0, %v1655
      %1657 = vmatmul.bf16.gmra.mxu0 %v943
      %v1658 = vpop.f32.mrf.mxu0
      %v1659 = vadd.f32 0.0, %v1658
      %v1660 = vpop.f32.mrf.mxu0
      %v1661 = vadd.f32 0.0, %v1660
      %1662 = vmatmul.bf16.gmra.mxu0 %v944
      %v1663 = vpop.f32.mrf.mxu0
      %v1664 = vadd.f32 0.0, %v1663
      %v1665 = vpop.f32.mrf.mxu0
      %v1666 = vadd.f32 0.0, %v1665
      %1667 = vmatmul.bf16.gmra.mxu0 %v945
      %v1668 = vpop.f32.mrf.mxu0
      %v1669 = vadd.f32 0.0, %v1668
      %v1670 = vpop.f32.mrf.mxu0
      %v1671 = vadd.f32 0.0, %v1670
      %1672 = vmatmul.bf16.gmra.mxu0 %v1523
      %v1673 = vpop.f32.mrf.mxu0
      %v1674 = vadd.f32 0.0, %v1673
      %v1675 = vpop.f32.mrf.mxu0
      %v1676 = vadd.f32 0.0, %v1675
      %1677 = vdwg.mxu0
      %v1678 = vadd.f32 %v1484, %v1599
      %v1679 = vadd.f32 %v1485, %v1601
      %v1680 = vadd.f32 %v1486, %v1604
      %v1681 = vadd.f32 %v1487, %v1606
      %v1682 = vadd.f32 %v1488, %v1609
      %v1683 = vadd.f32 %v1489, %v1611
      %v1684 = vadd.f32 %v1490, %v1614
      %v1685 = vadd.f32 %v1491, %v1616
      %v1686 = vadd.f32 %v1492, %v1619
      %v1687 = vadd.f32 %v1493, %v1621
      %v1688 = vadd.f32 %v1494, %v1624
      %v1689 = vadd.f32 %v1495, %v1626
      %v1690 = vadd.f32 %v1496, %v1629
      %v1691 = vadd.f32 %v1497, %v1631
      %v1692 = vadd.f32 %v1498, %v1634
      %v1693 = vadd.f32 %v1499, %v1636
      %v1694 = vadd.f32 %v1500, %v1639
      %v1695 = vadd.f32 %v1501, %v1641
      %v1696 = vadd.f32 %v1502, %v1644
      %v1697 = vadd.f32 %v1503, %v1646
      %v1698 = vadd.f32 %v1504, %v1649
      %v1699 = vadd.f32 %v1505, %v1651
      %v1700 = vadd.f32 %v1506, %v1654
      %v1701 = vadd.f32 %v1507, %v1656
      %v1702 = vadd.f32 %v1508, %v1659
      %v1703 = vadd.f32 %v1509, %v1661
      %v1704 = vadd.f32 %v1510, %v1664
      %v1705 = vadd.f32 %v1511, %v1666
      %v1706 = vadd.f32 %v1512, %v1669
      %v1707 = vadd.f32 %v1513, %v1671
      %v1708 = vadd.f32 %v1514, %v1674
      %v1709 = vadd.f32 %v1515, %v1676
      %v1710 = vpack.c.bf16 %v315, %v314
      %s1711 = scalar_lea.vmem %s1, 384
      %v1712 = vld [vmem:[%s1711] sm:$0xf]
      %v1713 = vld [vmem:[%s1711 + $0x4] sm:$0xf]
      %v1714 = vld [vmem:[%s1711 + $0x8] sm:$0xf]
      %v1715 = vld [vmem:[%s1711 + $0xc] sm:$0xf]
      %v1716 = vld [vmem:[%s1711 + $0x10] sm:$0xf]
      %v1717 = vld [vmem:[%s1711 + $0x14] sm:$0xf]
      %v1718 = vld [vmem:[%s1711 + $0x18] sm:$0xf]
      %v1719 = vld [vmem:[%s1711 + $0x1c] sm:$0xf]
      %v1720 = vld [vmem:[%s1711 + $0x20] sm:$0xf]
      %v1721 = vld [vmem:[%s1711 + $0x24] sm:$0xf]
      %v1722 = vld [vmem:[%s1711 + $0x28] sm:$0xf]
      %v1723 = vld [vmem:[%s1711 + $0x2c] sm:$0xf]
      %v1724 = vld [vmem:[%s1711 + $0x30] sm:$0xf]
      %v1725 = vld [vmem:[%s1711 + $0x34] sm:$0xf]
      %v1726 = vld [vmem:[%s1711 + $0x38] sm:$0xf]
      %v1727 = vld [vmem:[%s1711 + $0x3c] sm:$0xf]
      %v1744 = vunpack.c.l.b16 %v1712
      %v1745 = vunpack.c.l.b16 %v1713
      %v1746 = vunpack.c.l.b16 %v1714
      %v1747 = vunpack.c.l.b16 %v1715
      %v1748 = vunpack.c.l.b16 %v1716
      %v1749 = vunpack.c.l.b16 %v1717
      %v1750 = vunpack.c.l.b16 %v1718
      %v1751 = vunpack.c.l.b16 %v1719
      %v1752 = vunpack.c.l.b16 %v1720
      %v1753 = vunpack.c.l.b16 %v1721
      %v1754 = vunpack.c.l.b16 %v1722
      %v1755 = vunpack.c.l.b16 %v1723
      %v1756 = vunpack.c.l.b16 %v1724
      %v1757 = vunpack.c.l.b16 %v1725
      %v1758 = vunpack.c.l.b16 %v1726
      %v1759 = vunpack.c.l.b16 %v1727
      %v1760 = vpack.c.b16 %v1745, %v1744
      %v1761 = vpack.c.b16 %v1747, %v1746
      %v1762 = vpack.c.b16 %v1749, %v1748
      %v1763 = vpack.c.b16 %v1751, %v1750
      %v1764 = vpack.c.b16 %v1753, %v1752
      %v1765 = vpack.c.b16 %v1755, %v1754
      %v1766 = vpack.c.b16 %v1757, %v1756
      %v1767 = vpack.c.b16 %v1759, %v1758
      %1776 = vmatpush.bf16.msra.mxu0 %v1767
      %1777 = vmatpush.bf16.msra.mxu0 %v1766
      %1778 = vmatpush.bf16.msra.mxu0 %v1765
      %1779 = vmatpush.bf16.msra.mxu0 %v1764
      %1780 = vmatpush.bf16.msra.mxu0 %v1763
      %1781 = vmatpush.bf16.msra.mxu0 %v1762
      %1782 = vmatpush.bf16.msra.mxu0 %v1761
      %1783 = vmatpush.bf16.msra.mxu0 %v1760
      %1784 = vmatmul.bf16.gmra.mxu0 %v319
      %v1785 = vpop.f32.mrf.mxu0
      %v1786 = vadd.f32 0.0, %v1785
      %v1787 = vpop.f32.mrf.mxu0
      %v1788 = vadd.f32 0.0, %v1787
      %1789 = vmatmul.bf16.gmra.mxu0 %v320
      %v1790 = vpop.f32.mrf.mxu0
      %v1791 = vadd.f32 0.0, %v1790
      %v1792 = vpop.f32.mrf.mxu0
      %v1793 = vadd.f32 0.0, %v1792
      %1794 = vmatmul.bf16.gmra.mxu0 %v321
      %v1795 = vpop.f32.mrf.mxu0
      %v1796 = vadd.f32 0.0, %v1795
      %v1797 = vpop.f32.mrf.mxu0
      %v1798 = vadd.f32 0.0, %v1797
      %1799 = vmatmul.bf16.gmra.mxu0 %v322
      %v1800 = vpop.f32.mrf.mxu0
      %v1801 = vadd.f32 0.0, %v1800
      %v1802 = vpop.f32.mrf.mxu0
      %v1803 = vadd.f32 0.0, %v1802
      %1804 = vmatmul.bf16.gmra.mxu0 %v323
      %v1805 = vpop.f32.mrf.mxu0
      %v1806 = vadd.f32 0.0, %v1805
      %v1807 = vpop.f32.mrf.mxu0
      %v1808 = vadd.f32 0.0, %v1807
      %1809 = vmatmul.bf16.gmra.mxu0 %v324
      %v1810 = vpop.f32.mrf.mxu0
      %v1811 = vadd.f32 0.0, %v1810
      %v1812 = vpop.f32.mrf.mxu0
      %v1813 = vadd.f32 0.0, %v1812
      %1814 = vmatmul.bf16.gmra.mxu0 %v325
      %v1815 = vpop.f32.mrf.mxu0
      %v1816 = vadd.f32 0.0, %v1815
      %v1817 = vpop.f32.mrf.mxu0
      %v1818 = vadd.f32 0.0, %v1817
      %1819 = vmatmul.bf16.gmra.mxu0 %v326
      %v1820 = vpop.f32.mrf.mxu0
      %v1821 = vadd.f32 0.0, %v1820
      %v1822 = vpop.f32.mrf.mxu0
      %v1823 = vadd.f32 0.0, %v1822
      %1824 = vmatmul.bf16.gmra.mxu0 %v327
      %v1825 = vpop.f32.mrf.mxu0
      %v1826 = vadd.f32 0.0, %v1825
      %v1827 = vpop.f32.mrf.mxu0
      %v1828 = vadd.f32 0.0, %v1827
      %1829 = vmatmul.bf16.gmra.mxu0 %v328
      %v1830 = vpop.f32.mrf.mxu0
      %v1831 = vadd.f32 0.0, %v1830
      %v1832 = vpop.f32.mrf.mxu0
      %v1833 = vadd.f32 0.0, %v1832
      %1834 = vmatmul.bf16.gmra.mxu0 %v329
      %v1835 = vpop.f32.mrf.mxu0
      %v1836 = vadd.f32 0.0, %v1835
      %v1837 = vpop.f32.mrf.mxu0
      %v1838 = vadd.f32 0.0, %v1837
      %1839 = vmatmul.bf16.gmra.mxu0 %v330
      %v1840 = vpop.f32.mrf.mxu0
      %v1841 = vadd.f32 0.0, %v1840
      %v1842 = vpop.f32.mrf.mxu0
      %v1843 = vadd.f32 0.0, %v1842
      %1844 = vmatmul.bf16.gmra.mxu0 %v331
      %v1845 = vpop.f32.mrf.mxu0
      %v1846 = vadd.f32 0.0, %v1845
      %v1847 = vpop.f32.mrf.mxu0
      %v1848 = vadd.f32 0.0, %v1847
      %1849 = vmatmul.bf16.gmra.mxu0 %v332
      %v1850 = vpop.f32.mrf.mxu0
      %v1851 = vadd.f32 0.0, %v1850
      %v1852 = vpop.f32.mrf.mxu0
      %v1853 = vadd.f32 0.0, %v1852
      %1854 = vmatmul.bf16.gmra.mxu0 %v1132
      %v1855 = vpop.f32.mrf.mxu0
      %v1856 = vadd.f32 0.0, %v1855
      %v1857 = vpop.f32.mrf.mxu0
      %v1858 = vadd.f32 0.0, %v1857
      %1859 = vmatmul.bf16.gmra.mxu0 %v1710
      %v1860 = vpop.f32.mrf.mxu0
      %v1861 = vadd.f32 0.0, %v1860
      %v1862 = vpop.f32.mrf.mxu0
      %v1863 = vadd.f32 0.0, %v1862
      %1864 = vdwg.mxu0
      %v1865 = vadd.f32 %v1678, %v1786
      %v1866 = vadd.f32 %v1679, %v1788
      %v1867 = vadd.f32 %v1680, %v1791
      %v1868 = vadd.f32 %v1681, %v1793
      %v1869 = vadd.f32 %v1682, %v1796
      %v1870 = vadd.f32 %v1683, %v1798
      %v1871 = vadd.f32 %v1684, %v1801
      %v1872 = vadd.f32 %v1685, %v1803
      %v1873 = vadd.f32 %v1686, %v1806
      %v1874 = vadd.f32 %v1687, %v1808
      %v1875 = vadd.f32 %v1688, %v1811
      %v1876 = vadd.f32 %v1689, %v1813
      %v1877 = vadd.f32 %v1690, %v1816
      %v1878 = vadd.f32 %v1691, %v1818
      %v1879 = vadd.f32 %v1692, %v1821
      %v1880 = vadd.f32 %v1693, %v1823
      %v1881 = vadd.f32 %v1694, %v1826
      %v1882 = vadd.f32 %v1695, %v1828
      %v1883 = vadd.f32 %v1696, %v1831
      %v1884 = vadd.f32 %v1697, %v1833
      %v1885 = vadd.f32 %v1698, %v1836
      %v1886 = vadd.f32 %v1699, %v1838
      %v1887 = vadd.f32 %v1700, %v1841
      %v1888 = vadd.f32 %v1701, %v1843
      %v1889 = vadd.f32 %v1702, %v1846
      %v1890 = vadd.f32 %v1703, %v1848
      %v1891 = vadd.f32 %v1704, %v1851
      %v1892 = vadd.f32 %v1705, %v1853
      %v1893 = vadd.f32 %v1706, %v1856
      %v1894 = vadd.f32 %v1707, %v1858
      %v1895 = vadd.f32 %v1708, %v1861
      %v1896 = vadd.f32 %v1709, %v1863
      %v1900 = vrot.slane %v314, 1
      %v1901 = vrot.slane %v315, 1
      %v1902 = vsel %vm397, %v1900, %v1901
      %v1903 = vrot.slane %v316, 1
      %v1904 = vsel %vm397, %v1901, %v1903
      %v1907 = vpack.c.bf16 %v1904, %v1902
      %s1908 = scalar_lea.vmem %s1, 448
      %v1909 = vld [vmem:[%s1908] sm:$0xf]
      %v1910 = vld [vmem:[%s1908 + $0x4] sm:$0xf]
      %v1911 = vld [vmem:[%s1908 + $0x8] sm:$0xf]
      %v1912 = vld [vmem:[%s1908 + $0xc] sm:$0xf]
      %v1913 = vld [vmem:[%s1908 + $0x10] sm:$0xf]
      %v1914 = vld [vmem:[%s1908 + $0x14] sm:$0xf]
      %v1915 = vld [vmem:[%s1908 + $0x18] sm:$0xf]
      %v1916 = vld [vmem:[%s1908 + $0x1c] sm:$0xf]
      %v1917 = vld [vmem:[%s1908 + $0x20] sm:$0xf]
      %v1918 = vld [vmem:[%s1908 + $0x24] sm:$0xf]
      %v1919 = vld [vmem:[%s1908 + $0x28] sm:$0xf]
      %v1920 = vld [vmem:[%s1908 + $0x2c] sm:$0xf]
      %v1921 = vld [vmem:[%s1908 + $0x30] sm:$0xf]
      %v1922 = vld [vmem:[%s1908 + $0x34] sm:$0xf]
      %v1923 = vld [vmem:[%s1908 + $0x38] sm:$0xf]
      %v1924 = vld [vmem:[%s1908 + $0x3c] sm:$0xf]
      %v1941 = vunpack.c.l.b16 %v1909
      %v1942 = vunpack.c.l.b16 %v1910
      %v1943 = vunpack.c.l.b16 %v1911
      %v1944 = vunpack.c.l.b16 %v1912
      %v1945 = vunpack.c.l.b16 %v1913
      %v1946 = vunpack.c.l.b16 %v1914
      %v1947 = vunpack.c.l.b16 %v1915
      %v1948 = vunpack.c.l.b16 %v1916
      %v1949 = vunpack.c.l.b16 %v1917
      %v1950 = vunpack.c.l.b16 %v1918
      %v1951 = vunpack.c.l.b16 %v1919
      %v1952 = vunpack.c.l.b16 %v1920
      %v1953 = vunpack.c.l.b16 %v1921
      %v1954 = vunpack.c.l.b16 %v1922
      %v1955 = vunpack.c.l.b16 %v1923
      %v1956 = vunpack.c.l.b16 %v1924
      %v1957 = vpack.c.b16 %v1942, %v1941
      %v1958 = vpack.c.b16 %v1944, %v1943
      %v1959 = vpack.c.b16 %v1946, %v1945
      %v1960 = vpack.c.b16 %v1948, %v1947
      %v1961 = vpack.c.b16 %v1950, %v1949
      %v1962 = vpack.c.b16 %v1952, %v1951
      %v1963 = vpack.c.b16 %v1954, %v1953
      %v1964 = vpack.c.b16 %v1956, %v1955
      %1973 = vmatpush.bf16.msra.mxu0 %v1964
      %1974 = vmatpush.bf16.msra.mxu0 %v1963
      %1975 = vmatpush.bf16.msra.mxu0 %v1962
      %1976 = vmatpush.bf16.msra.mxu0 %v1961
      %1977 = vmatpush.bf16.msra.mxu0 %v1960
      %1978 = vmatpush.bf16.msra.mxu0 %v1959
      %1979 = vmatpush.bf16.msra.mxu0 %v1958
      %1980 = vmatpush.bf16.msra.mxu0 %v1957
      %1981 = vmatmul.bf16.gmra.mxu0 %v512
      %v1982 = vpop.f32.mrf.mxu0
      %v1983 = vadd.f32 0.0, %v1982
      %v1984 = vpop.f32.mrf.mxu0
      %v1985 = vadd.f32 0.0, %v1984
      %1986 = vmatmul.bf16.gmra.mxu0 %v513
      %v1987 = vpop.f32.mrf.mxu0
      %v1988 = vadd.f32 0.0, %v1987
      %v1989 = vpop.f32.mrf.mxu0
      %v1990 = vadd.f32 0.0, %v1989
      %1991 = vmatmul.bf16.gmra.mxu0 %v514
      %v1992 = vpop.f32.mrf.mxu0
      %v1993 = vadd.f32 0.0, %v1992
      %v1994 = vpop.f32.mrf.mxu0
      %v1995 = vadd.f32 0.0, %v1994
      %1996 = vmatmul.bf16.gmra.mxu0 %v515
      %v1997 = vpop.f32.mrf.mxu0
      %v1998 = vadd.f32 0.0, %v1997
      %v1999 = vpop.f32.mrf.mxu0
      %v2000 = vadd.f32 0.0, %v1999
      %2001 = vmatmul.bf16.gmra.mxu0 %v516
      %v2002 = vpop.f32.mrf.mxu0
      %v2003 = vadd.f32 0.0, %v2002
      %v2004 = vpop.f32.mrf.mxu0
      %v2005 = vadd.f32 0.0, %v2004
      %2006 = vmatmul.bf16.gmra.mxu0 %v517
      %v2007 = vpop.f32.mrf.mxu0
      %v2008 = vadd.f32 0.0, %v2007
      %v2009 = vpop.f32.mrf.mxu0
      %v2010 = vadd.f32 0.0, %v2009
      %2011 = vmatmul.bf16.gmra.mxu0 %v518
      %v2012 = vpop.f32.mrf.mxu0
      %v2013 = vadd.f32 0.0, %v2012
      %v2014 = vpop.f32.mrf.mxu0
      %v2015 = vadd.f32 0.0, %v2014
      %2016 = vmatmul.bf16.gmra.mxu0 %v519
      %v2017 = vpop.f32.mrf.mxu0
      %v2018 = vadd.f32 0.0, %v2017
      %v2019 = vpop.f32.mrf.mxu0
      %v2020 = vadd.f32 0.0, %v2019
      %2021 = vmatmul.bf16.gmra.mxu0 %v520
      %v2022 = vpop.f32.mrf.mxu0
      %v2023 = vadd.f32 0.0, %v2022
      %v2024 = vpop.f32.mrf.mxu0
      %v2025 = vadd.f32 0.0, %v2024
      %2026 = vmatmul.bf16.gmra.mxu0 %v521
      %v2027 = vpop.f32.mrf.mxu0
      %v2028 = vadd.f32 0.0, %v2027
      %v2029 = vpop.f32.mrf.mxu0
      %v2030 = vadd.f32 0.0, %v2029
      %2031 = vmatmul.bf16.gmra.mxu0 %v522
      %v2032 = vpop.f32.mrf.mxu0
      %v2033 = vadd.f32 0.0, %v2032
      %v2034 = vpop.f32.mrf.mxu0
      %v2035 = vadd.f32 0.0, %v2034
      %2036 = vmatmul.bf16.gmra.mxu0 %v523
      %v2037 = vpop.f32.mrf.mxu0
      %v2038 = vadd.f32 0.0, %v2037
      %v2039 = vpop.f32.mrf.mxu0
      %v2040 = vadd.f32 0.0, %v2039
      %2041 = vmatmul.bf16.gmra.mxu0 %v524
      %v2042 = vpop.f32.mrf.mxu0
      %v2043 = vadd.f32 0.0, %v2042
      %v2044 = vpop.f32.mrf.mxu0
      %v2045 = vadd.f32 0.0, %v2044
      %2046 = vmatmul.bf16.gmra.mxu0 %v525
      %v2047 = vpop.f32.mrf.mxu0
      %v2048 = vadd.f32 0.0, %v2047
      %v2049 = vpop.f32.mrf.mxu0
      %v2050 = vadd.f32 0.0, %v2049
      %2051 = vmatmul.bf16.gmra.mxu0 %v1329
      %v2052 = vpop.f32.mrf.mxu0
      %v2053 = vadd.f32 0.0, %v2052
      %v2054 = vpop.f32.mrf.mxu0
      %v2055 = vadd.f32 0.0, %v2054
      %2056 = vmatmul.bf16.gmra.mxu0 %v1907
      %v2057 = vpop.f32.mrf.mxu0
      %v2058 = vadd.f32 0.0, %v2057
      %v2059 = vpop.f32.mrf.mxu0
      %v2060 = vadd.f32 0.0, %v2059
      %2061 = vdwg.mxu0
      %v2062 = vadd.f32 %v1865, %v1983
      %v2063 = vadd.f32 %v1866, %v1985
      %v2064 = vadd.f32 %v1867, %v1988
      %v2065 = vadd.f32 %v1868, %v1990
      %v2066 = vadd.f32 %v1869, %v1993
      %v2067 = vadd.f32 %v1870, %v1995
      %v2068 = vadd.f32 %v1871, %v1998
      %v2069 = vadd.f32 %v1872, %v2000
      %v2070 = vadd.f32 %v1873, %v2003
      %v2071 = vadd.f32 %v1874, %v2005
      %v2072 = vadd.f32 %v1875, %v2008
      %v2073 = vadd.f32 %v1876, %v2010
      %v2074 = vadd.f32 %v1877, %v2013
      %v2075 = vadd.f32 %v1878, %v2015
      %v2076 = vadd.f32 %v1879, %v2018
      %v2077 = vadd.f32 %v1880, %v2020
      %v2078 = vadd.f32 %v1881, %v2023
      %v2079 = vadd.f32 %v1882, %v2025
      %v2080 = vadd.f32 %v1883, %v2028
      %v2081 = vadd.f32 %v1884, %v2030
      %v2082 = vadd.f32 %v1885, %v2033
      %v2083 = vadd.f32 %v1886, %v2035
      %v2084 = vadd.f32 %v1887, %v2038
      %v2085 = vadd.f32 %v1888, %v2040
      %v2086 = vadd.f32 %v1889, %v2043
      %v2087 = vadd.f32 %v1890, %v2045
      %v2088 = vadd.f32 %v1891, %v2048
      %v2089 = vadd.f32 %v1892, %v2050
      %v2090 = vadd.f32 %v1893, %v2053
      %v2091 = vadd.f32 %v1894, %v2055
      %v2092 = vadd.f32 %v1895, %v2058
      %v2093 = vadd.f32 %v1896, %v2060
      %v2094 = vrot.slane %v314, 2
      %v2095 = vrot.slane %v315, 2
      %v2096 = vsel %vm817, %v2094, %v2095
      %v2097 = vrot.slane %v316, 2
      %v2098 = vsel %vm817, %v2095, %v2097
      %v2101 = vpack.c.bf16 %v2098, %v2096
      %s2102 = scalar_lea.vmem %s1, 512
      %v2103 = vld [vmem:[%s2102] sm:$0xf]
      %v2104 = vld [vmem:[%s2102 + $0x4] sm:$0xf]
      %v2105 = vld [vmem:[%s2102 + $0x8] sm:$0xf]
      %v2106 = vld [vmem:[%s2102 + $0xc] sm:$0xf]
      %v2107 = vld [vmem:[%s2102 + $0x10] sm:$0xf]
      %v2108 = vld [vmem:[%s2102 + $0x14] sm:$0xf]
      %v2109 = vld [vmem:[%s2102 + $0x18] sm:$0xf]
      %v2110 = vld [vmem:[%s2102 + $0x1c] sm:$0xf]
      %v2111 = vld [vmem:[%s2102 + $0x20] sm:$0xf]
      %v2112 = vld [vmem:[%s2102 + $0x24] sm:$0xf]
      %v2113 = vld [vmem:[%s2102 + $0x28] sm:$0xf]
      %v2114 = vld [vmem:[%s2102 + $0x2c] sm:$0xf]
      %v2115 = vld [vmem:[%s2102 + $0x30] sm:$0xf]
      %v2116 = vld [vmem:[%s2102 + $0x34] sm:$0xf]
      %v2117 = vld [vmem:[%s2102 + $0x38] sm:$0xf]
      %v2118 = vld [vmem:[%s2102 + $0x3c] sm:$0xf]
      %v2135 = vunpack.c.l.b16 %v2103
      %v2136 = vunpack.c.l.b16 %v2104
      %v2137 = vunpack.c.l.b16 %v2105
      %v2138 = vunpack.c.l.b16 %v2106
      %v2139 = vunpack.c.l.b16 %v2107
      %v2140 = vunpack.c.l.b16 %v2108
      %v2141 = vunpack.c.l.b16 %v2109
      %v2142 = vunpack.c.l.b16 %v2110
      %v2143 = vunpack.c.l.b16 %v2111
      %v2144 = vunpack.c.l.b16 %v2112
      %v2145 = vunpack.c.l.b16 %v2113
      %v2146 = vunpack.c.l.b16 %v2114
      %v2147 = vunpack.c.l.b16 %v2115
      %v2148 = vunpack.c.l.b16 %v2116
      %v2149 = vunpack.c.l.b16 %v2117
      %v2150 = vunpack.c.l.b16 %v2118
      %v2151 = vpack.c.b16 %v2136, %v2135
      %v2152 = vpack.c.b16 %v2138, %v2137
      %v2153 = vpack.c.b16 %v2140, %v2139
      %v2154 = vpack.c.b16 %v2142, %v2141
      %v2155 = vpack.c.b16 %v2144, %v2143
      %v2156 = vpack.c.b16 %v2146, %v2145
      %v2157 = vpack.c.b16 %v2148, %v2147
      %v2158 = vpack.c.b16 %v2150, %v2149
      %2167 = vmatpush.bf16.msra.mxu0 %v2158
      %2168 = vmatpush.bf16.msra.mxu0 %v2157
      %2169 = vmatpush.bf16.msra.mxu0 %v2156
      %2170 = vmatpush.bf16.msra.mxu0 %v2155
      %2171 = vmatpush.bf16.msra.mxu0 %v2154
      %2172 = vmatpush.bf16.msra.mxu0 %v2153
      %2173 = vmatpush.bf16.msra.mxu0 %v2152
      %2174 = vmatpush.bf16.msra.mxu0 %v2151
      %2175 = vmatmul.bf16.gmra.mxu0 %v932
      %v2176 = vpop.f32.mrf.mxu0
      %v2177 = vadd.f32 0.0, %v2176
      %v2178 = vpop.f32.mrf.mxu0
      %v2179 = vadd.f32 0.0, %v2178
      %2180 = vmatmul.bf16.gmra.mxu0 %v933
      %v2181 = vpop.f32.mrf.mxu0
      %v2182 = vadd.f32 0.0, %v2181
      %v2183 = vpop.f32.mrf.mxu0
      %v2184 = vadd.f32 0.0, %v2183
      %2185 = vmatmul.bf16.gmra.mxu0 %v934
      %v2186 = vpop.f32.mrf.mxu0
      %v2187 = vadd.f32 0.0, %v2186
      %v2188 = vpop.f32.mrf.mxu0
      %v2189 = vadd.f32 0.0, %v2188
      %2190 = vmatmul.bf16.gmra.mxu0 %v935
      %v2191 = vpop.f32.mrf.mxu0
      %v2192 = vadd.f32 0.0, %v2191
      %v2193 = vpop.f32.mrf.mxu0
      %v2194 = vadd.f32 0.0, %v2193
      %2195 = vmatmul.bf16.gmra.mxu0 %v936
      %v2196 = vpop.f32.mrf.mxu0
      %v2197 = vadd.f32 0.0, %v2196
      %v2198 = vpop.f32.mrf.mxu0
      %v2199 = vadd.f32 0.0, %v2198
      %2200 = vmatmul.bf16.gmra.mxu0 %v937
      %v2201 = vpop.f32.mrf.mxu0
      %v2202 = vadd.f32 0.0, %v2201
      %v2203 = vpop.f32.mrf.mxu0
      %v2204 = vadd.f32 0.0, %v2203
      %2205 = vmatmul.bf16.gmra.mxu0 %v938
      %v2206 = vpop.f32.mrf.mxu0
      %v2207 = vadd.f32 0.0, %v2206
      %v2208 = vpop.f32.mrf.mxu0
      %v2209 = vadd.f32 0.0, %v2208
      %2210 = vmatmul.bf16.gmra.mxu0 %v939
      %v2211 = vpop.f32.mrf.mxu0
      %v2212 = vadd.f32 0.0, %v2211
      %v2213 = vpop.f32.mrf.mxu0
      %v2214 = vadd.f32 0.0, %v2213
      %2215 = vmatmul.bf16.gmra.mxu0 %v940
      %v2216 = vpop.f32.mrf.mxu0
      %v2217 = vadd.f32 0.0, %v2216
      %v2218 = vpop.f32.mrf.mxu0
      %v2219 = vadd.f32 0.0, %v2218
      %2220 = vmatmul.bf16.gmra.mxu0 %v941
      %v2221 = vpop.f32.mrf.mxu0
      %v2222 = vadd.f32 0.0, %v2221
      %v2223 = vpop.f32.mrf.mxu0
      %v2224 = vadd.f32 0.0, %v2223
      %2225 = vmatmul.bf16.gmra.mxu0 %v942
      %v2226 = vpop.f32.mrf.mxu0
      %v2227 = vadd.f32 0.0, %v2226
      %v2228 = vpop.f32.mrf.mxu0
      %v2229 = vadd.f32 0.0, %v2228
      %2230 = vmatmul.bf16.gmra.mxu0 %v943
      %v2231 = vpop.f32.mrf.mxu0
      %v2232 = vadd.f32 0.0, %v2231
      %v2233 = vpop.f32.mrf.mxu0
      %v2234 = vadd.f32 0.0, %v2233
      %2235 = vmatmul.bf16.gmra.mxu0 %v944
      %v2236 = vpop.f32.mrf.mxu0
      %v2237 = vadd.f32 0.0, %v2236
      %v2238 = vpop.f32.mrf.mxu0
      %v2239 = vadd.f32 0.0, %v2238
      %2240 = vmatmul.bf16.gmra.mxu0 %v945
      %v2241 = vpop.f32.mrf.mxu0
      %v2242 = vadd.f32 0.0, %v2241
      %v2243 = vpop.f32.mrf.mxu0
      %v2244 = vadd.f32 0.0, %v2243
      %2245 = vmatmul.bf16.gmra.mxu0 %v1523
      %v2246 = vpop.f32.mrf.mxu0
      %v2247 = vadd.f32 0.0, %v2246
      %v2248 = vpop.f32.mrf.mxu0
      %v2249 = vadd.f32 0.0, %v2248
      %2250 = vmatmul.bf16.gmra.mxu0 %v2101
      %v2251 = vpop.f32.mrf.mxu0
      %v2252 = vadd.f32 0.0, %v2251
      %v2253 = vpop.f32.mrf.mxu0
      %v2254 = vadd.f32 0.0, %v2253
      %2255 = vdwg.mxu0
      %v2256 = vadd.f32 %v2062, %v2177
      %v2257 = vadd.f32 %v2063, %v2179
      %v2258 = vadd.f32 %v2064, %v2182
      %v2259 = vadd.f32 %v2065, %v2184
      %v2260 = vadd.f32 %v2066, %v2187
      %v2261 = vadd.f32 %v2067, %v2189
      %v2262 = vadd.f32 %v2068, %v2192
      %v2263 = vadd.f32 %v2069, %v2194
      %v2264 = vadd.f32 %v2070, %v2197
      %v2265 = vadd.f32 %v2071, %v2199
      %v2266 = vadd.f32 %v2072, %v2202
      %v2267 = vadd.f32 %v2073, %v2204
      %v2268 = vadd.f32 %v2074, %v2207
      %v2269 = vadd.f32 %v2075, %v2209
      %v2270 = vadd.f32 %v2076, %v2212
      %v2271 = vadd.f32 %v2077, %v2214
      %v2272 = vadd.f32 %v2078, %v2217
      %v2273 = vadd.f32 %v2079, %v2219
      %v2274 = vadd.f32 %v2080, %v2222
      %v2275 = vadd.f32 %v2081, %v2224
      %v2276 = vadd.f32 %v2082, %v2227
      %v2277 = vadd.f32 %v2083, %v2229
      %v2278 = vadd.f32 %v2084, %v2232
      %v2279 = vadd.f32 %v2085, %v2234
      %v2280 = vadd.f32 %v2086, %v2237
      %v2281 = vadd.f32 %v2087, %v2239
      %v2282 = vadd.f32 %v2088, %v2242
      %v2283 = vadd.f32 %v2089, %v2244
      %v2284 = vadd.f32 %v2090, %v2247
      %v2285 = vadd.f32 %v2091, %v2249
      %v2286 = vadd.f32 %v2092, %v2252
      %v2287 = vadd.f32 %v2093, %v2254
      %v2288 = vld [vmem:[%s2] sm:$0x1]
      %v2290 = vperm.slane %v2288, 0
      %v2292 = vadd.f32 %v2256, %v2290
      %v2293 = vadd.f32 %v2257, %v2290
      %v2294 = vadd.f32 %v2258, %v2290
      %v2295 = vadd.f32 %v2259, %v2290
      %v2296 = vadd.f32 %v2260, %v2290
      %v2297 = vadd.f32 %v2261, %v2290
      %v2298 = vadd.f32 %v2262, %v2290
      %v2299 = vadd.f32 %v2263, %v2290
      %v2300 = vadd.f32 %v2264, %v2290
      %v2301 = vadd.f32 %v2265, %v2290
      %v2302 = vadd.f32 %v2266, %v2290
      %v2303 = vadd.f32 %v2267, %v2290
      %v2304 = vadd.f32 %v2268, %v2290
      %v2305 = vadd.f32 %v2269, %v2290
      %v2306 = vadd.f32 %v2270, %v2290
      %v2307 = vadd.f32 %v2271, %v2290
      %v2308 = vadd.f32 %v2272, %v2290
      %v2309 = vadd.f32 %v2273, %v2290
      %v2310 = vadd.f32 %v2274, %v2290
      %v2311 = vadd.f32 %v2275, %v2290
      %v2312 = vadd.f32 %v2276, %v2290
      %v2313 = vadd.f32 %v2277, %v2290
      %v2314 = vadd.f32 %v2278, %v2290
      %v2315 = vadd.f32 %v2279, %v2290
      %v2316 = vadd.f32 %v2280, %v2290
      %v2317 = vadd.f32 %v2281, %v2290
      %v2318 = vadd.f32 %v2282, %v2290
      %v2319 = vadd.f32 %v2283, %v2290
      %v2320 = vadd.f32 %v2284, %v2290
      %v2321 = vadd.f32 %v2285, %v2290
      %v2322 = vadd.f32 %v2286, %v2290
      %v2323 = vadd.f32 %v2287, %v2290
      %v2324 = vadd.f32 %v2292, %v2293
      %v2325 = vadd.f32 %v2324, %v2294
      %v2326 = vadd.f32 %v2325, %v2295
      %v2327 = vadd.f32 %v2326, %v2296
      %v2328 = vadd.f32 %v2327, %v2297
      %v2329 = vadd.f32 %v2328, %v2298
      %v2330 = vadd.f32 %v2329, %v2299
      %v2331 = vadd.f32 %v2330, %v2300
      %v2332 = vadd.f32 %v2331, %v2301
      %v2333 = vadd.f32 %v2332, %v2302
      %v2334 = vadd.f32 %v2333, %v2303
      %v2335 = vadd.f32 %v2334, %v2304
      %v2336 = vadd.f32 %v2335, %v2305
      %v2337 = vadd.f32 %v2336, %v2306
      %v2338 = vadd.f32 %v2337, %v2307
      %v2339 = vadd.f32 %v2338, %v2308
      %v2340 = vadd.f32 %v2339, %v2309
      %v2341 = vadd.f32 %v2340, %v2310
      %v2342 = vadd.f32 %v2341, %v2311
      %v2343 = vadd.f32 %v2342, %v2312
      %v2344 = vadd.f32 %v2343, %v2313
      %v2345 = vadd.f32 %v2344, %v2314
      %v2346 = vadd.f32 %v2345, %v2315
      %v2347 = vadd.f32 %v2346, %v2316
      %v2348 = vadd.f32 %v2347, %v2317
      %v2349 = vadd.f32 %v2348, %v2318
      %v2350 = vadd.f32 %v2349, %v2319
      %v2351 = vadd.f32 %v2350, %v2320
      %v2352 = vadd.f32 %v2351, %v2321
      %v2353 = vadd.f32 %v2352, %v2322
      %v2354 = vadd.f32 %v2353, %v2323
      %v2355 = vrot.slane %v2354, 4
      %v2356 = vadd.f32 %v2354, %v2355
      %v2357 = vrot.slane %v2356, 2
      %v2358 = vadd.f32 %v2356, %v2357
      %v2359 = vrot.slane %v2358, 1
      %v2360 = vadd.f32 %v2358, %v2359
      %2361 = vst [vmem:[%s208] sm:$0x1] %v2360
      %v2362 = vmul.f32 %v2292, %v2292
      %v2363 = vmul.f32 %v2293, %v2293
      %v2364 = vmul.f32 %v2294, %v2294
      %v2365 = vmul.f32 %v2295, %v2295
      %v2366 = vmul.f32 %v2296, %v2296
      %v2367 = vmul.f32 %v2297, %v2297
      %v2368 = vmul.f32 %v2298, %v2298
      %v2369 = vmul.f32 %v2299, %v2299
      %v2370 = vmul.f32 %v2300, %v2300
      %v2371 = vmul.f32 %v2301, %v2301
      %v2372 = vmul.f32 %v2302, %v2302
      %v2373 = vmul.f32 %v2303, %v2303
      %v2374 = vmul.f32 %v2304, %v2304
      %v2375 = vmul.f32 %v2305, %v2305
      %v2376 = vmul.f32 %v2306, %v2306
      %v2377 = vmul.f32 %v2307, %v2307
      %v2378 = vmul.f32 %v2308, %v2308
      %v2379 = vmul.f32 %v2309, %v2309
      %v2380 = vmul.f32 %v2310, %v2310
      %v2381 = vmul.f32 %v2311, %v2311
      %v2382 = vmul.f32 %v2312, %v2312
      %v2383 = vmul.f32 %v2313, %v2313
      %v2384 = vmul.f32 %v2314, %v2314
      %v2385 = vmul.f32 %v2315, %v2315
      %v2386 = vmul.f32 %v2316, %v2316
      %v2387 = vmul.f32 %v2317, %v2317
      %v2388 = vmul.f32 %v2318, %v2318
      %v2389 = vmul.f32 %v2319, %v2319
      %v2390 = vmul.f32 %v2320, %v2320
      %v2391 = vmul.f32 %v2321, %v2321
      %v2392 = vmul.f32 %v2322, %v2322
      %v2393 = vmul.f32 %v2323, %v2323
      %v2394 = vadd.f32 %v2362, %v2363
      %v2395 = vadd.f32 %v2394, %v2364
      %v2396 = vadd.f32 %v2395, %v2365
      %v2397 = vadd.f32 %v2396, %v2366
      %v2398 = vadd.f32 %v2397, %v2367
      %v2399 = vadd.f32 %v2398, %v2368
      %v2400 = vadd.f32 %v2399, %v2369
      %v2401 = vadd.f32 %v2400, %v2370
      %v2402 = vadd.f32 %v2401, %v2371
      %v2403 = vadd.f32 %v2402, %v2372
      %v2404 = vadd.f32 %v2403, %v2373
      %v2405 = vadd.f32 %v2404, %v2374
      %v2406 = vadd.f32 %v2405, %v2375
      %v2407 = vadd.f32 %v2406, %v2376
      %v2408 = vadd.f32 %v2407, %v2377
      %v2409 = vadd.f32 %v2408, %v2378
      %v2410 = vadd.f32 %v2409, %v2379
      %v2411 = vadd.f32 %v2410, %v2380
      %v2412 = vadd.f32 %v2411, %v2381
      %v2413 = vadd.f32 %v2412, %v2382
      %v2414 = vadd.f32 %v2413, %v2383
      %v2415 = vadd.f32 %v2414, %v2384
      %v2416 = vadd.f32 %v2415, %v2385
      %v2417 = vadd.f32 %v2416, %v2386
      %v2418 = vadd.f32 %v2417, %v2387
      %v2419 = vadd.f32 %v2418, %v2388
      %v2420 = vadd.f32 %v2419, %v2389
      %v2421 = vadd.f32 %v2420, %v2390
      %v2422 = vadd.f32 %v2421, %v2391
      %v2423 = vadd.f32 %v2422, %v2392
      %v2424 = vadd.f32 %v2423, %v2393
      %v2425 = vrot.slane %v2424, 4
      %v2426 = vadd.f32 %v2424, %v2425
      %v2427 = vrot.slane %v2426, 2
      %v2428 = vadd.f32 %v2426, %v2427
      %v2429 = vrot.slane %v2428, 1
      %v2430 = vadd.f32 %v2428, %v2429
      %2431 = vst [vmem:[%s208 + $0x1] sm:$0x1] %v2430
      %v2432 = vpack.c.bf16 %v2292, %v2292
      %v2433 = vpack.c.bf16 %v2293, %v2293
      %v2434 = vpack.c.bf16 %v2294, %v2294
      %v2435 = vpack.c.bf16 %v2295, %v2295
      %v2436 = vpack.c.bf16 %v2296, %v2296
      %v2437 = vpack.c.bf16 %v2297, %v2297
      %v2438 = vpack.c.bf16 %v2298, %v2298
      %v2439 = vpack.c.bf16 %v2299, %v2299
      %v2440 = vpack.c.bf16 %v2300, %v2300
      %v2441 = vpack.c.bf16 %v2301, %v2301
      %v2442 = vpack.c.bf16 %v2302, %v2302
      %v2443 = vpack.c.bf16 %v2303, %v2303
      %v2444 = vpack.c.bf16 %v2304, %v2304
      %v2445 = vpack.c.bf16 %v2305, %v2305
      %v2446 = vpack.c.bf16 %v2306, %v2306
      %v2447 = vpack.c.bf16 %v2307, %v2307
      %v2448 = vpack.c.bf16 %v2308, %v2308
      %v2449 = vpack.c.bf16 %v2309, %v2309
      %v2450 = vpack.c.bf16 %v2310, %v2310
      %v2451 = vpack.c.bf16 %v2311, %v2311
      %v2452 = vpack.c.bf16 %v2312, %v2312
      %v2453 = vpack.c.bf16 %v2313, %v2313
      %v2454 = vpack.c.bf16 %v2314, %v2314
      %v2455 = vpack.c.bf16 %v2315, %v2315
      %v2456 = vpack.c.bf16 %v2316, %v2316
      %v2457 = vpack.c.bf16 %v2317, %v2317
      %v2458 = vpack.c.bf16 %v2318, %v2318
      %v2459 = vpack.c.bf16 %v2319, %v2319
      %v2460 = vpack.c.bf16 %v2320, %v2320
      %v2461 = vpack.c.bf16 %v2321, %v2321
      %v2462 = vpack.c.bf16 %v2322, %v2322
      %v2463 = vpack.c.bf16 %v2323, %v2323
      %2464 = vst [vmem:[%s204] sm:$0xf] %v2432
      %2465 = vst [vmem:[%s204 + $0x4] sm:$0xf] %v2433
      %2466 = vst [vmem:[%s204 + $0x8] sm:$0xf] %v2434
      %2467 = vst [vmem:[%s204 + $0xc] sm:$0xf] %v2435
      %2468 = vst [vmem:[%s204 + $0x10] sm:$0xf] %v2436
      %2469 = vst [vmem:[%s204 + $0x14] sm:$0xf] %v2437
      %2470 = vst [vmem:[%s204 + $0x18] sm:$0xf] %v2438
      %2471 = vst [vmem:[%s204 + $0x1c] sm:$0xf] %v2439
      %2472 = vst [vmem:[%s204 + $0x20] sm:$0xf] %v2440
      %2473 = vst [vmem:[%s204 + $0x24] sm:$0xf] %v2441
      %2474 = vst [vmem:[%s204 + $0x28] sm:$0xf] %v2442
      %2475 = vst [vmem:[%s204 + $0x2c] sm:$0xf] %v2443
      %2476 = vst [vmem:[%s204 + $0x30] sm:$0xf] %v2444
      %2477 = vst [vmem:[%s204 + $0x34] sm:$0xf] %v2445
      %2478 = vst [vmem:[%s204 + $0x38] sm:$0xf] %v2446
      %2479 = vst [vmem:[%s204 + $0x3c] sm:$0xf] %v2447
      %2480 = vst [vmem:[%s204 + $0x40] sm:$0xf] %v2448
      %2481 = vst [vmem:[%s204 + $0x44] sm:$0xf] %v2449
      %2482 = vst [vmem:[%s204 + $0x48] sm:$0xf] %v2450
      %2483 = vst [vmem:[%s204 + $0x4c] sm:$0xf] %v2451
      %2484 = vst [vmem:[%s204 + $0x50] sm:$0xf] %v2452
      %2485 = vst [vmem:[%s204 + $0x54] sm:$0xf] %v2453
      %2486 = vst [vmem:[%s204 + $0x58] sm:$0xf] %v2454
      %2487 = vst [vmem:[%s204 + $0x5c] sm:$0xf] %v2455
      %2488 = vst [vmem:[%s204 + $0x60] sm:$0xf] %v2456
      %2489 = vst [vmem:[%s204 + $0x64] sm:$0xf] %v2457
      %2490 = vst [vmem:[%s204 + $0x68] sm:$0xf] %v2458
      %2491 = vst [vmem:[%s204 + $0x6c] sm:$0xf] %v2459
      %2492 = vst [vmem:[%s204 + $0x70] sm:$0xf] %v2460
      %2493 = vst [vmem:[%s204 + $0x74] sm:$0xf] %v2461
      %2494 = vst [vmem:[%s204 + $0x78] sm:$0xf] %v2462
      %2495 = vst [vmem:[%s204 + $0x7c] sm:$0xf] %v2463
      %p2496 = scmp.lt.s32.totalorder %s16, 1
      %s2497 = scalar_select %p2496, %s16, 1
      %s2498 = smul.addr %s2497, 32
      %s2499 = smul.addr %s2498, 4
      %s2500 = scalar_lea.vmem %s3, %s2499
      %p2501 = scmp.lt.s32.totalorder %s16, 1
      %s2502 = scalar_select %p2501, %s16, 1
      %s2503 = smul.addr %s2502, 2
      %s2504 = scalar_lea.vmem %s4, %s2503
      // Predicated region
      $region33: #{double_conv.3} parent=31 // pred_check
        %p2505 = pneg %p102
      $region34: #{double_conv.3} parent=31 // pred_check_branch
        %2507 = sbr.rel (%p2505) target = $region36
      $region35: #{double_conv.3} parent=31 // pred_region
        _
      $region36: #{double_conv.3} parent=31 // pred_fallthru
        _
      // Predicated region
      $region37: #{double_conv.3} parent=31 // pred_check
        %p2508 = pneg %p128
      $region38: #{double_conv.3} parent=31 // pred_check_branch
        %2510 = sbr.rel (%p2508) target = $region40
      $region39: #{double_conv.3} parent=31 // pred_region
        _
      $region40: #{double_conv.3} parent=31 // pred_fallthru
        _
    $region32: #{double_conv.3} parent=5 // pred_fallthru
      _
    %p2511 = scmp.le.s32.totalorder 2, %s11
    // Predicated region
    $region41: #{double_conv.3} parent=5 // pred_check
      %p2512 = pneg %p2511
    $region42: #{double_conv.3} parent=5 // pred_check_branch
      %2514 = sbr.rel (%p2512) target = $region44
    $region43: #{double_conv.3} parent=5 // pred_region
      %s2515 = ssub.s32 %s11, 2
      // Predicated region
      $region45: #{double_conv.3} parent=43 // pred_check
        %p2516 = pneg %p108
      $region46: #{double_conv.3} parent=43 // pred_check_branch
        %2518 = sbr.rel (%p2516) target = $region48
      $region47: #{double_conv.3} parent=43 // pred_region
        %p2519 = scmp.lt.s32.totalorder %s17, 1
        %s2520 = scalar_select %p2519, %s17, 1
        %s2521 = smul.addr %s2520, 32
        %s2522 = smul.addr %s2521, 4
        %s2523 = scalar_lea.vmem %s3, %s2522
      $region48: #{double_conv.3} parent=43 // pred_fallthru
        _
      // Predicated region
      $region49: #{double_conv.3} parent=43 // pred_check
        %p2524 = pneg %p134
      $region50: #{double_conv.3} parent=43 // pred_check_branch
        %2526 = sbr.rel (%p2524) target = $region52
      $region51: #{double_conv.3} parent=43 // pred_region
        %p2527 = scmp.lt.s32.totalorder %s17, 1
        %s2528 = scalar_select %p2527, %s17, 1
        %s2529 = smul.addr %s2528, 2
        %s2530 = scalar_lea.vmem %s4, %s2529
      $region52: #{double_conv.3} parent=43 // pred_fallthru
        _
    $region44: #{double_conv.3} parent=5 // pred_fallthru
      _
  $region6: #{double_conv.3} parent=0 // loop_footer
    %s15 = sadd.s32 1, %s11
  $region7: #{double_conv.3} parent=0 // loop_footer_branch
    %10 = sbr.rel target = $region3
  $region8: #{double_conv.3} parent=0 // loop_exit
    _

// kernel: double_conv.4
$region0: #{double_conv.4}
  #allocation0 [shape = 'u32[]', space=smem, size = 0x4, offset = 0x4, fixed_abs, tag = 'smem constant byte address 0x4 - core index']
  #allocation1 [shape = 'u32[72,128]{1,0:T(1,128)}', space=vmem, size = 0x9000, scoped, tag = 'internal scratch']
  #allocation2 [shape = 'f32[18,18,128]{2,1,0:T(8,128)}', space=vmem, size = 0x36000, scoped, tag = 'scratch operand']
  %s0 = inlined_call_operand.vmem [shape: bf16[2,16,16,128], index: 0, kind: input, shape index: {}]
  %s1 = inlined_call_operand.vmem [shape: f32[1,128], index: 1, kind: input, shape index: {}]
  %s2 = inlined_call_operand.vmem [shape: f32[1,128], index: 2, kind: input, shape index: {}]
  %s3 = inlined_call_operand.vmem [shape: bf16[9,128,128], index: 3, kind: input, shape index: {}]
  %s4 = inlined_call_operand.vmem [shape: f32[1,128], index: 4, kind: input, shape index: {}]
  %s5 = inlined_call_operand.vmem [shape: f32[2,16,16,128], index: 5, kind: output, shape index: {0}]
  %s6 = inlined_call_operand.vmem [shape: f32[2,2,128], index: 6, kind: output, shape index: {1}]
  %7 = xla_tuple %s5, %s6
  %s8 = sld [smem:[#allocation0]]
  $region61: #{double_conv.4} parent=0
    _
  %s10 = ssub.s32 1, %s8
  %s11 = scalar_select 0, %s10, %s8
  loop: start=0, step=1, limit=4
  $region2: #{double_conv.4} parent=0 // loop_pre_header
    _
  $region3: #{double_conv.4} parent=0 // loop_header
    %s13 = sphi 0, %s17
    %p14 = scmp.ge.s32.totalorder %s13, 4
    %s23 = sphi 0, %s25
    %s26 = sphi 0, %s23
    %s27 = sphi 0, %s26
    %s43 = sphi 0, %s27
    %s47 = sphi 0, %s47
    %s49 = sphi 0, %s47
    %s50 = sphi 0, %s49
    %s64 = sphi 0, %s50
    %s68 = sphi 0, %s68
    %s70 = sphi 0, %s68
    %s71 = sphi 0, %s70
    %s85 = sphi 0, %s71
    %s89 = sphi 0, %s89
    %s91 = sphi 0, %s89
    %s92 = sphi 0, %s91
    %s106 = sphi 0, %s92
    %s110 = sphi 0, %s110
    %s112 = sphi 0, %s110
    %s113 = sphi 0, %s112
    %s127 = sphi 0, %s113
    %s133 = sphi 0, %s135
    %s136 = sphi 0, %s133
    %s137 = sphi 0, %s136
    %s153 = sphi 0, %s137
    %s159 = sphi 0, %s161
    %s162 = sphi 0, %s159
    %s163 = sphi 0, %s162
    %s179 = sphi 0, %s163
  $region4: #{double_conv.4} parent=0 // loop_header_branch
    %16 = sbr.rel (%p14) target = $region8
  $region5: #{double_conv.4} parent=0 // loop_body
    %s18 = ssub.s32 %s13, 1
    %s19 = ssub.s32 %s13, 2
    %s20 = sadd.s32 %s13, 1
    %s21 = ssub.s32 %s13, %s20
    %p22 = scmp.eq.s32.totalorder %s21, 0
    %s24 = sadd.s32 %s23, 1
    %s25 = scalar_select %p22, %s23, %s24
    %p28 = pneg %p22
    %p29 = scmp.eq.s32.totalorder %s13, 1
    %p30 = por %p28, %p29
    %p31 = scmp.ne.s32.totalorder %s23, %s26
    %p32 = scmp.eq.s32.totalorder %s13, 0
    %p33 = por %p31, %p32
    %p34 = scmp.ne.s32.totalorder %s23, %s26
    %p35 = scmp.eq.s32.totalorder %s18, 1
    %p36 = por %p34, %p35
    %p37 = scmp.ne.s32.totalorder %s26, %s27
    %p38 = scmp.eq.s32.totalorder %s18, 0
    %p39 = por %p37, %p38
    %p40 = scmp.ne.s32.totalorder %s26, %s27
    %p41 = scmp.eq.s32.totalorder %s19, 1
    %p42 = por %p40, %p41
    %p44 = scmp.ne.s32.totalorder %s27, %s43
    %p45 = scmp.eq.s32.totalorder %s19, 0
    %p46 = por %p44, %p45
    %s48 = sadd.s32 %s47, 1
    %p51 = scmp.eq.s32.totalorder %s13, 1
    %p52 = scmp.ne.s32.totalorder %s47, %s49
    %p53 = scmp.eq.s32.totalorder %s13, 0
    %p54 = por %p52, %p53
    %p55 = scmp.ne.s32.totalorder %s47, %s49
    %p56 = scmp.eq.s32.totalorder %s18, 1
    %p57 = por %p55, %p56
    %p58 = scmp.ne.s32.totalorder %s49, %s50
    %p59 = scmp.eq.s32.totalorder %s18, 0
    %p60 = por %p58, %p59
    %p61 = scmp.ne.s32.totalorder %s49, %s50
    %p62 = scmp.eq.s32.totalorder %s19, 1
    %p63 = por %p61, %p62
    %p65 = scmp.ne.s32.totalorder %s50, %s64
    %p66 = scmp.eq.s32.totalorder %s19, 0
    %p67 = por %p65, %p66
    %s69 = sadd.s32 %s68, 1
    %p72 = scmp.eq.s32.totalorder %s13, 1
    %p73 = scmp.ne.s32.totalorder %s68, %s70
    %p74 = scmp.eq.s32.totalorder %s13, 0
    %p75 = por %p73, %p74
    %p76 = scmp.ne.s32.totalorder %s68, %s70
    %p77 = scmp.eq.s32.totalorder %s18, 1
    %p78 = por %p76, %p77
    %p79 = scmp.ne.s32.totalorder %s70, %s71
    %p80 = scmp.eq.s32.totalorder %s18, 0
    %p81 = por %p79, %p80
    %p82 = scmp.ne.s32.totalorder %s70, %s71
    %p83 = scmp.eq.s32.totalorder %s19, 1
    %p84 = por %p82, %p83
    %p86 = scmp.ne.s32.totalorder %s71, %s85
    %p87 = scmp.eq.s32.totalorder %s19, 0
    %p88 = por %p86, %p87
    %s90 = sadd.s32 %s89, 1
    %p93 = scmp.eq.s32.totalorder %s13, 1
    %p94 = scmp.ne.s32.totalorder %s89, %s91
    %p95 = scmp.eq.s32.totalorder %s13, 0
    %p96 = por %p94, %p95
    %p97 = scmp.ne.s32.totalorder %s89, %s91
    %p98 = scmp.eq.s32.totalorder %s18, 1
    %p99 = por %p97, %p98
    %p100 = scmp.ne.s32.totalorder %s91, %s92
    %p101 = scmp.eq.s32.totalorder %s18, 0
    %p102 = por %p100, %p101
    %p103 = scmp.ne.s32.totalorder %s91, %s92
    %p104 = scmp.eq.s32.totalorder %s19, 1
    %p105 = por %p103, %p104
    %p107 = scmp.ne.s32.totalorder %s92, %s106
    %p108 = scmp.eq.s32.totalorder %s19, 0
    %p109 = por %p107, %p108
    %s111 = sadd.s32 %s110, 1
    %p114 = scmp.eq.s32.totalorder %s13, 1
    %p115 = scmp.ne.s32.totalorder %s110, %s112
    %p116 = scmp.eq.s32.totalorder %s13, 0
    %p117 = por %p115, %p116
    %p118 = scmp.ne.s32.totalorder %s110, %s112
    %p119 = scmp.eq.s32.totalorder %s18, 1
    %p120 = por %p118, %p119
    %p121 = scmp.ne.s32.totalorder %s112, %s113
    %p122 = scmp.eq.s32.totalorder %s18, 0
    %p123 = por %p121, %p122
    %p124 = scmp.ne.s32.totalorder %s112, %s113
    %p125 = scmp.eq.s32.totalorder %s19, 1
    %p126 = por %p124, %p125
    %p128 = scmp.ne.s32.totalorder %s113, %s127
    %p129 = scmp.eq.s32.totalorder %s19, 0
    %p130 = por %p128, %p129
    %s131 = ssub.s32 %s13, %s20
    %p132 = scmp.eq.s32.totalorder %s131, 0
    %s134 = sadd.s32 %s133, 1
    %s135 = scalar_select %p132, %s133, %s134
    %p138 = pneg %p132
    %p139 = scmp.eq.s32.totalorder %s13, 1
    %p140 = por %p138, %p139
    %p141 = scmp.ne.s32.totalorder %s133, %s136
    %p142 = scmp.eq.s32.totalorder %s13, 0
    %p143 = por %p141, %p142
    %p144 = scmp.ne.s32.totalorder %s133, %s136
    %p145 = scmp.eq.s32.totalorder %s18, 1
    %p146 = por %p144, %p145
    %p147 = scmp.ne.s32.totalorder %s136, %s137
    %p148 = scmp.eq.s32.totalorder %s18, 0
    %p149 = por %p147, %p148
    %p150 = scmp.ne.s32.totalorder %s136, %s137
    %p151 = scmp.eq.s32.totalorder %s19, 1
    %p152 = por %p150, %p151
    %p154 = scmp.ne.s32.totalorder %s137, %s153
    %p155 = scmp.eq.s32.totalorder %s19, 0
    %p156 = por %p154, %p155
    %s157 = ssub.s32 %s13, %s20
    %p158 = scmp.eq.s32.totalorder %s157, 0
    %s160 = sadd.s32 %s159, 1
    %s161 = scalar_select %p158, %s159, %s160
    %p164 = pneg %p158
    %p165 = scmp.eq.s32.totalorder %s13, 1
    %p166 = por %p164, %p165
    %p167 = scmp.ne.s32.totalorder %s159, %s162
    %p168 = scmp.eq.s32.totalorder %s13, 0
    %p169 = por %p167, %p168
    %p170 = scmp.ne.s32.totalorder %s159, %s162
    %p171 = scmp.eq.s32.totalorder %s18, 1
    %p172 = por %p170, %p171
    %p173 = scmp.ne.s32.totalorder %s162, %s163
    %p174 = scmp.eq.s32.totalorder %s18, 0
    %p175 = por %p173, %p174
    %p176 = scmp.ne.s32.totalorder %s162, %s163
    %p177 = scmp.eq.s32.totalorder %s19, 1
    %p178 = por %p176, %p177
    %p180 = scmp.ne.s32.totalorder %s163, %s179
    %p181 = scmp.eq.s32.totalorder %s19, 0
    %p182 = por %p180, %p181
    %p183 = scmp.le.s32.totalorder 1, %s13
    %p184 = scmp.lt.s32.totalorder %s13, 3
    %p185 = pnand %p183, %p184
    %p186 = pneg %p185
    // Predicated region
    $region9: #{double_conv.4} parent=5 // pred_check
      _
    $region10: #{double_conv.4} parent=5 // pred_check_branch
      %188 = sbr.rel (%p185) target = $region12
    $region11: #{double_conv.4} parent=5 // pred_region
      %s189 = ssub.s32 %s13, 1
      // Predicated region
      $region13: #{double_conv.4} parent=11 // pred_check
        %p190 = pneg %p60
      $region14: #{double_conv.4} parent=11 // pred_check_branch
        %192 = sbr.rel (%p190) target = $region16
      $region15: #{double_conv.4} parent=11 // pred_region
        _
      $region16: #{double_conv.4} parent=11 // pred_fallthru
        _
      // Predicated region
      $region17: #{double_conv.4} parent=11 // pred_check
        %p193 = pneg %p81
      $region18: #{double_conv.4} parent=11 // pred_check_branch
        %195 = sbr.rel (%p193) target = $region20
      $region19: #{double_conv.4} parent=11 // pred_region
        _
      $region20: #{double_conv.4} parent=11 // pred_fallthru
        _
      // Predicated region
      $region21: #{double_conv.4} parent=11 // pred_check
        %p196 = pneg %p102
      $region22: #{double_conv.4} parent=11 // pred_check_branch
        %198 = sbr.rel (%p196) target = $region24
      $region23: #{double_conv.4} parent=11 // pred_region
        _
      $region24: #{double_conv.4} parent=11 // pred_fallthru
        _
      // Predicated region
      $region25: #{double_conv.4} parent=11 // pred_check
        %p199 = pneg %p123
      $region26: #{double_conv.4} parent=11 // pred_check_branch
        %201 = sbr.rel (%p199) target = $region28
      $region27: #{double_conv.4} parent=11 // pred_region
        _
      $region28: #{double_conv.4} parent=11 // pred_fallthru
        _
    $region12: #{double_conv.4} parent=5 // pred_fallthru
      _
    %p202 = scmp.lt.s32.totalorder %s13, 2
    // Predicated region
    $region29: #{double_conv.4} parent=5 // pred_check
      %p203 = pneg %p202
    $region30: #{double_conv.4} parent=5 // pred_check_branch
      %205 = sbr.rel (%p203) target = $region32
    $region31: #{double_conv.4} parent=5 // pred_region
      // Predicated region
      $region33: #{double_conv.4} parent=31 // pred_check
        %p206 = pneg %p33
      $region34: #{double_conv.4} parent=31 // pred_check_branch
        %208 = sbr.rel (%p206) target = $region36
      $region35: #{double_conv.4} parent=31 // pred_region
        %p209 = scmp.lt.s32.totalorder %s13, 1
        %s210 = scalar_select %p209, %s13, 1
        %s211 = smul.addr %s210, 32
        %s212 = smul.addr %s211, 4
        %s213 = scalar_lea.vmem %s0, %s212
      $region36: #{double_conv.4} parent=31 // pred_fallthru
        _
    $region32: #{double_conv.4} parent=5 // pred_fallthru
      _
    %p214 = scmp.le.s32.totalorder 1, %s13
    %p215 = scmp.lt.s32.totalorder %s13, 3
    %p216 = pnand %p214, %p215
    %p217 = pneg %p216
    // Predicated region
    $region37: #{double_conv.4} parent=5 // pred_check
      _
    $region38: #{double_conv.4} parent=5 // pred_check_branch
      %219 = sbr.rel (%p216) target = $region40
    $region39: #{double_conv.4} parent=5 // pred_region
      %s220 = ssub.s32 %s13, 1
      %p221 = scmp.lt.s32.totalorder %s18, 1
      %s222 = scalar_select %p221, %s18, 1
      %s223 = smul.addr %s222, 32
      %s224 = smul.addr %s223, 4
      %s225 = scalar_lea.vmem %s0, %s224
      %p226 = pneg %p39
      %p227 = pneg %p36
      %p228 = pneg %p60
      %p229 = pneg %p57
      %p230 = pneg %p81
      %p231 = pneg %p78
      %p232 = pneg %p102
      %p233 = pneg %p99
      %p234 = pneg %p123
      %p235 = pneg %p120
      %p236 = pneg %p149
      %p237 = pneg %p146
      %p238 = scmp.lt.s32.totalorder %s18, 1
      %s239 = scalar_select %p238, %s18, 1
      %s240 = smul.addr %s239, 32
      %s241 = smul.addr %s240, 8
      %s242 = scalar_lea.vmem %s5, %s241
      %p243 = pneg %p175
      %p244 = pneg %p172
      %p245 = scmp.lt.s32.totalorder %s18, 1
      %s246 = scalar_select %p245, %s18, 1
      %s247 = smul.addr %s246, 2
      %s248 = scalar_lea.vmem %s6, %s247
      %p249 = scmp.lt.s32.totalorder %s18, 1
      %s250 = scalar_select %p249, %s18, 1
      %s251 = smul.addr %s250, 32
      %s252 = smul.addr %s251, 4
      %s253 = scalar_lea.vmem %s0, %s252
      %p254 = scmp.lt.s32.totalorder %s18, 1
      %s255 = scalar_select %p254, %s18, 1
      %s256 = smul.addr %s255, 32
      %s257 = smul.addr %s256, 8
      %s258 = scalar_lea.vmem %s5, %s257
      %p259 = scmp.lt.s32.totalorder %s18, 1
      %s260 = scalar_select %p259, %s18, 1
      %s261 = smul.addr %s260, 2
      %s262 = scalar_lea.vmem %s6, %s261
      %v263 = vld [vmem:[%s253] sm:$0xf]
      %v264 = vld [vmem:[%s253 + $0x4] sm:$0xf]
      %v265 = vld [vmem:[%s253 + $0x8] sm:$0xf]
      %v266 = vld [vmem:[%s253 + $0xc] sm:$0xf]
      %v267 = vld [vmem:[%s253 + $0x10] sm:$0xf]
      %v268 = vld [vmem:[%s253 + $0x14] sm:$0xf]
      %v269 = vld [vmem:[%s253 + $0x18] sm:$0xf]
      %v270 = vld [vmem:[%s253 + $0x1c] sm:$0xf]
      %v271 = vld [vmem:[%s253 + $0x20] sm:$0xf]
      %v272 = vld [vmem:[%s253 + $0x24] sm:$0xf]
      %v273 = vld [vmem:[%s253 + $0x28] sm:$0xf]
      %v274 = vld [vmem:[%s253 + $0x2c] sm:$0xf]
      %v275 = vld [vmem:[%s253 + $0x30] sm:$0xf]
      %v276 = vld [vmem:[%s253 + $0x34] sm:$0xf]
      %v277 = vld [vmem:[%s253 + $0x38] sm:$0xf]
      %v278 = vld [vmem:[%s253 + $0x3c] sm:$0xf]
      %v279 = vld [vmem:[%s253 + $0x40] sm:$0xf]
      %v280 = vld [vmem:[%s253 + $0x44] sm:$0xf]
      %v281 = vld [vmem:[%s253 + $0x48] sm:$0xf]
      %v282 = vld [vmem:[%s253 + $0x4c] sm:$0xf]
      %v283 = vld [vmem:[%s253 + $0x50] sm:$0xf]
      %v284 = vld [vmem:[%s253 + $0x54] sm:$0xf]
      %v285 = vld [vmem:[%s253 + $0x58] sm:$0xf]
      %v286 = vld [vmem:[%s253 + $0x5c] sm:$0xf]
      %v287 = vld [vmem:[%s253 + $0x60] sm:$0xf]
      %v288 = vld [vmem:[%s253 + $0x64] sm:$0xf]
      %v289 = vld [vmem:[%s253 + $0x68] sm:$0xf]
      %v290 = vld [vmem:[%s253 + $0x6c] sm:$0xf]
      %v291 = vld [vmem:[%s253 + $0x70] sm:$0xf]
      %v292 = vld [vmem:[%s253 + $0x74] sm:$0xf]
      %v293 = vld [vmem:[%s253 + $0x78] sm:$0xf]
      %v294 = vld [vmem:[%s253 + $0x7c] sm:$0xf]
      %v295 = vunpack.c.l.bf16 %v263
      %v296 = vunpack.c.l.bf16 %v264
      %v297 = vunpack.c.l.bf16 %v265
      %v298 = vunpack.c.l.bf16 %v266
      %v299 = vunpack.c.l.bf16 %v267
      %v300 = vunpack.c.l.bf16 %v268
      %v301 = vunpack.c.l.bf16 %v269
      %v302 = vunpack.c.l.bf16 %v270
      %v303 = vunpack.c.l.bf16 %v271
      %v304 = vunpack.c.l.bf16 %v272
      %v305 = vunpack.c.l.bf16 %v273
      %v306 = vunpack.c.l.bf16 %v274
      %v307 = vunpack.c.l.bf16 %v275
      %v308 = vunpack.c.l.bf16 %v276
      %v309 = vunpack.c.l.bf16 %v277
      %v310 = vunpack.c.l.bf16 %v278
      %v311 = vunpack.c.l.bf16 %v279
      %v312 = vunpack.c.l.bf16 %v280
      %v313 = vunpack.c.l.bf16 %v281
      %v314 = vunpack.c.l.bf16 %v282
      %v315 = vunpack.c.l.bf16 %v283
      %v316 = vunpack.c.l.bf16 %v284
      %v317 = vunpack.c.l.bf16 %v285
      %v318 = vunpack.c.l.bf16 %v286
      %v319 = vunpack.c.l.bf16 %v287
      %v320 = vunpack.c.l.bf16 %v288
      %v321 = vunpack.c.l.bf16 %v289
      %v322 = vunpack.c.l.bf16 %v290
      %v323 = vunpack.c.l.bf16 %v291
      %v324 = vunpack.c.l.bf16 %v292
      %v325 = vunpack.c.l.bf16 %v293
      %v326 = vunpack.c.l.bf16 %v294
      %v327 = vld [vmem:[%s1] sm:$0x1]
      %v329 = vperm.slane %v327, 0
      %v331 = vmul.f32 %v295, %v329
      %v332 = vmul.f32 %v296, %v329
      %v333 = vmul.f32 %v297, %v329
      %v334 = vmul.f32 %v298, %v329
      %v335 = vmul.f32 %v299, %v329
      %v336 = vmul.f32 %v300, %v329
      %v337 = vmul.f32 %v301, %v329
      %v338 = vmul.f32 %v302, %v329
      %v339 = vmul.f32 %v303, %v329
      %v340 = vmul.f32 %v304, %v329
      %v341 = vmul.f32 %v305, %v329
      %v342 = vmul.f32 %v306, %v329
      %v343 = vmul.f32 %v307, %v329
      %v344 = vmul.f32 %v308, %v329
      %v345 = vmul.f32 %v309, %v329
      %v346 = vmul.f32 %v310, %v329
      %v347 = vmul.f32 %v311, %v329
      %v348 = vmul.f32 %v312, %v329
      %v349 = vmul.f32 %v313, %v329
      %v350 = vmul.f32 %v314, %v329
      %v351 = vmul.f32 %v315, %v329
      %v352 = vmul.f32 %v316, %v329
      %v353 = vmul.f32 %v317, %v329
      %v354 = vmul.f32 %v318, %v329
      %v355 = vmul.f32 %v319, %v329
      %v356 = vmul.f32 %v320, %v329
      %v357 = vmul.f32 %v321, %v329
      %v358 = vmul.f32 %v322, %v329
      %v359 = vmul.f32 %v323, %v329
      %v360 = vmul.f32 %v324, %v329
      %v361 = vmul.f32 %v325, %v329
      %v362 = vmul.f32 %v326, %v329
      %v363 = vld [vmem:[%s2] sm:$0x1]
      %v365 = vperm.slane %v363, 0
      %v367 = vadd.f32 %v331, %v365
      %v368 = vadd.f32 %v332, %v365
      %v369 = vadd.f32 %v333, %v365
      %v370 = vadd.f32 %v334, %v365
      %v371 = vadd.f32 %v335, %v365
      %v372 = vadd.f32 %v336, %v365
      %v373 = vadd.f32 %v337, %v365
      %v374 = vadd.f32 %v338, %v365
      %v375 = vadd.f32 %v339, %v365
      %v376 = vadd.f32 %v340, %v365
      %v377 = vadd.f32 %v341, %v365
      %v378 = vadd.f32 %v342, %v365
      %v379 = vadd.f32 %v343, %v365
      %v380 = vadd.f32 %v344, %v365
      %v381 = vadd.f32 %v345, %v365
      %v382 = vadd.f32 %v346, %v365
      %v383 = vadd.f32 %v347, %v365
      %v384 = vadd.f32 %v348, %v365
      %v385 = vadd.f32 %v349, %v365
      %v386 = vadd.f32 %v350, %v365
      %v387 = vadd.f32 %v351, %v365
      %v388 = vadd.f32 %v352, %v365
      %v389 = vadd.f32 %v353, %v365
      %v390 = vadd.f32 %v354, %v365
      %v391 = vadd.f32 %v355, %v365
      %v392 = vadd.f32 %v356, %v365
      %v393 = vadd.f32 %v357, %v365
      %v394 = vadd.f32 %v358, %v365
      %v395 = vadd.f32 %v359, %v365
      %v396 = vadd.f32 %v360, %v365
      %v397 = vadd.f32 %v361, %v365
      %v398 = vadd.f32 %v362, %v365
      %v399 = vmax.f32 %v367, 0.0
      %v400 = vmax.f32 %v368, 0.0
      %v401 = vmax.f32 %v369, 0.0
      %v402 = vmax.f32 %v370, 0.0
      %v403 = vmax.f32 %v371, 0.0
      %v404 = vmax.f32 %v372, 0.0
      %v405 = vmax.f32 %v373, 0.0
      %v406 = vmax.f32 %v374, 0.0
      %v407 = vmax.f32 %v375, 0.0
      %v408 = vmax.f32 %v376, 0.0
      %v409 = vmax.f32 %v377, 0.0
      %v410 = vmax.f32 %v378, 0.0
      %v411 = vmax.f32 %v379, 0.0
      %v412 = vmax.f32 %v380, 0.0
      %v413 = vmax.f32 %v381, 0.0
      %v414 = vmax.f32 %v382, 0.0
      %v415 = vmax.f32 %v383, 0.0
      %v416 = vmax.f32 %v384, 0.0
      %v417 = vmax.f32 %v385, 0.0
      %v418 = vmax.f32 %v386, 0.0
      %v419 = vmax.f32 %v387, 0.0
      %v420 = vmax.f32 %v388, 0.0
      %v421 = vmax.f32 %v389, 0.0
      %v422 = vmax.f32 %v390, 0.0
      %v423 = vmax.f32 %v391, 0.0
      %v424 = vmax.f32 %v392, 0.0
      %v425 = vmax.f32 %v393, 0.0
      %v426 = vmax.f32 %v394, 0.0
      %v427 = vmax.f32 %v395, 0.0
      %v428 = vmax.f32 %v396, 0.0
      %v429 = vmax.f32 %v397, 0.0
      %v430 = vmax.f32 %v398, 0.0
      %431 = vst [vmem:[#allocation2] sm:$0xff] 0.0
      %432 = vst [vmem:[#allocation2 + $0x8] sm:$0xff] 0.0
      %433 = vst [vmem:[#allocation2 + $0x10] sm:$0x3] 0.0
      %s434 = scalar_lea.vmem [#allocation2], 408
      %435 = vst [vmem:[%s434] sm:$0xff] 0.0
      %436 = vst [vmem:[%s434 + $0x8] sm:$0xff] 0.0
      %437 = vst [vmem:[%s434 + $0x10] sm:$0x3] 0.0
      %438 = vst [vmem:[#allocation2] sm:$0x1] 0.0
      %439 = vst [vmem:[#allocation2 + $0x18] sm:$0x1] 0.0
      %440 = vst [vmem:[#allocation2 + $0x30] sm:$0x1] 0.0
      %441 = vst [vmem:[#allocation2 + $0x48] sm:$0x1] 0.0
      %442 = vst [vmem:[#allocation2 + $0x60] sm:$0x1] 0.0
      %443 = vst [vmem:[#allocation2 + $0x78] sm:$0x1] 0.0
      %444 = vst [vmem:[#allocation2 + $0x90] sm:$0x1] 0.0
      %445 = vst [vmem:[#allocation2 + $0xa8] sm:$0x1] 0.0
      %446 = vst [vmem:[#allocation2 + $0xc0] sm:$0x1] 0.0
      %447 = vst [vmem:[#allocation2 + $0xd8] sm:$0x1] 0.0
      %448 = vst [vmem:[#allocation2 + $0xf0] sm:$0x1] 0.0
      %449 = vst [vmem:[#allocation2 + $0x108] sm:$0x1] 0.0
      %450 = vst [vmem:[#allocation2 + $0x120] sm:$0x1] 0.0
      %451 = vst [vmem:[#allocation2 + $0x138] sm:$0x1] 0.0
      %452 = vst [vmem:[#allocation2 + $0x150] sm:$0x1] 0.0
      %453 = vst [vmem:[#allocation2 + $0x168] sm:$0x1] 0.0
      %454 = vst [vmem:[#allocation2 + $0x180] sm:$0x1] 0.0
      %455 = vst [vmem:[#allocation2 + $0x198] sm:$0x1] 0.0
      %456 = vst [vmem:[#allocation2 + $0x11] sm:$0x1] 0.0
      %457 = vst [vmem:[#allocation2 + $0x29] sm:$0x1] 0.0
      %458 = vst [vmem:[#allocation2 + $0x41] sm:$0x1] 0.0
      %459 = vst [vmem:[#allocation2 + $0x59] sm:$0x1] 0.0
      %460 = vst [vmem:[#allocation2 + $0x71] sm:$0x1] 0.0
      %461 = vst [vmem:[#allocation2 + $0x89] sm:$0x1] 0.0
      %462 = vst [vmem:[#allocation2 + $0xa1] sm:$0x1] 0.0
      %463 = vst [vmem:[#allocation2 + $0xb9] sm:$0x1] 0.0
      %464 = vst [vmem:[#allocation2 + $0xd1] sm:$0x1] 0.0
      %465 = vst [vmem:[#allocation2 + $0xe9] sm:$0x1] 0.0
      %466 = vst [vmem:[#allocation2 + $0x101] sm:$0x1] 0.0
      %467 = vst [vmem:[#allocation2 + $0x119] sm:$0x1] 0.0
      %468 = vst [vmem:[#allocation2 + $0x131] sm:$0x1] 0.0
      %469 = vst [vmem:[#allocation2 + $0x149] sm:$0x1] 0.0
      %470 = vst [vmem:[#allocation2 + $0x161] sm:$0x1] 0.0
      %471 = vst [vmem:[#allocation2 + $0x179] sm:$0x1] 0.0
      %472 = vst [vmem:[#allocation2 + $0x191] sm:$0x1] 0.0
      %473 = vst [vmem:[#allocation2 + $0x1a9] sm:$0x1] 0.0
      %s474 = scalar_lea.vmem [#allocation2], 24
      %475 = vst [vmem:[%s474 + $0x1] sm:$0xff] %v399
      %476 = vst [vmem:[%s474 + $0x9] sm:$0xff] %v400
      %477 = vst [vmem:[%s474 + $0x19] sm:$0xff] %v401
      %478 = vst [vmem:[%s474 + $0x21] sm:$0xff] %v402
      %479 = vst [vmem:[%s474 + $0x31] sm:$0xff] %v403
      %480 = vst [vmem:[%s474 + $0x39] sm:$0xff] %v404
      %481 = vst [vmem:[%s474 + $0x49] sm:$0xff] %v405
      %482 = vst [vmem:[%s474 + $0x51] sm:$0xff] %v406
      %483 = vst [vmem:[%s474 + $0x61] sm:$0xff] %v407
      %484 = vst [vmem:[%s474 + $0x69] sm:$0xff] %v408
      %485 = vst [vmem:[%s474 + $0x79] sm:$0xff] %v409
      %486 = vst [vmem:[%s474 + $0x81] sm:$0xff] %v410
      %487 = vst [vmem:[%s474 + $0x91] sm:$0xff] %v411
      %488 = vst [vmem:[%s474 + $0x99] sm:$0xff] %v412
      %489 = vst [vmem:[%s474 + $0xa9] sm:$0xff] %v413
      %490 = vst [vmem:[%s474 + $0xb1] sm:$0xff] %v414
      %491 = vst [vmem:[%s474 + $0xc1] sm:$0xff] %v415
      %492 = vst [vmem:[%s474 + $0xc9] sm:$0xff] %v416
      %493 = vst [vmem:[%s474 + $0xd9] sm:$0xff] %v417
      %494 = vst [vmem:[%s474 + $0xe1] sm:$0xff] %v418
      %495 = vst [vmem:[%s474 + $0xf1] sm:$0xff] %v419
      %496 = vst [vmem:[%s474 + $0xf9] sm:$0xff] %v420
      %497 = vst [vmem:[%s474 + $0x109] sm:$0xff] %v421
      %498 = vst [vmem:[%s474 + $0x111] sm:$0xff] %v422
      %499 = vst [vmem:[%s474 + $0x121] sm:$0xff] %v423
      %500 = vst [vmem:[%s474 + $0x129] sm:$0xff] %v424
      %501 = vst [vmem:[%s474 + $0x139] sm:$0xff] %v425
      %502 = vst [vmem:[%s474 + $0x141] sm:$0xff] %v426
      %503 = vst [vmem:[%s474 + $0x151] sm:$0xff] %v427
      %504 = vst [vmem:[%s474 + $0x159] sm:$0xff] %v428
      %505 = vst [vmem:[%s474 + $0x169] sm:$0xff] %v429
      %506 = vst [vmem:[%s474 + $0x171] sm:$0xff] %v430
      %v507 = vld [vmem:[#allocation2] sm:$0xff]
      %v508 = vld [vmem:[#allocation2 + $0x8] sm:$0xff]
      %v509 = vld [vmem:[#allocation2 + $0x18] sm:$0xff]
      %v510 = vld [vmem:[#allocation2 + $0x20] sm:$0xff]
      %v511 = vld [vmem:[#allocation2 + $0x30] sm:$0xff]
      %v512 = vld [vmem:[#allocation2 + $0x38] sm:$0xff]
      %v513 = vld [vmem:[#allocation2 + $0x48] sm:$0xff]
      %v514 = vld [vmem:[#allocation2 + $0x50] sm:$0xff]
      %v515 = vld [vmem:[#allocation2 + $0x60] sm:$0xff]
      %v516 = vld [vmem:[#allocation2 + $0x68] sm:$0xff]
      %v517 = vld [vmem:[#allocation2 + $0x78] sm:$0xff]
      %v518 = vld [vmem:[#allocation2 + $0x80] sm:$0xff]
      %v519 = vld [vmem:[#allocation2 + $0x90] sm:$0xff]
      %v520 = vld [vmem:[#allocation2 + $0x98] sm:$0xff]
      %v521 = vld [vmem:[#allocation2 + $0xa8] sm:$0xff]
      %v522 = vld [vmem:[#allocation2 + $0xb0] sm:$0xff]
      %v523 = vld [vmem:[#allocation2 + $0xc0] sm:$0xff]
      %v524 = vld [vmem:[#allocation2 + $0xc8] sm:$0xff]
      %v525 = vld [vmem:[#allocation2 + $0xd8] sm:$0xff]
      %v526 = vld [vmem:[#allocation2 + $0xe0] sm:$0xff]
      %v527 = vld [vmem:[#allocation2 + $0xf0] sm:$0xff]
      %v528 = vld [vmem:[#allocation2 + $0xf8] sm:$0xff]
      %v529 = vld [vmem:[#allocation2 + $0x108] sm:$0xff]
      %v530 = vld [vmem:[#allocation2 + $0x110] sm:$0xff]
      %v531 = vld [vmem:[#allocation2 + $0x120] sm:$0xff]
      %v532 = vld [vmem:[#allocation2 + $0x128] sm:$0xff]
      %v533 = vld [vmem:[#allocation2 + $0x138] sm:$0xff]
      %v534 = vld [vmem:[#allocation2 + $0x140] sm:$0xff]
      %v535 = vld [vmem:[#allocation2 + $0x150] sm:$0xff]
      %v536 = vld [vmem:[#allocation2 + $0x158] sm:$0xff]
      %v537 = vld [vmem:[#allocation2 + $0x168] sm:$0xff]
      %v538 = vld [vmem:[#allocation2 + $0x170] sm:$0xff]
      %v539 = vpack.c.bf16 %v508, %v507
      %v540 = vpack.c.bf16 %v510, %v509
      %v541 = vpack.c.bf16 %v512, %v511
      %v542 = vpack.c.bf16 %v514, %v513
      %v543 = vpack.c.bf16 %v516, %v515
      %v544 = vpack.c.bf16 %v518, %v517
      %v545 = vpack.c.bf16 %v520, %v519
      %v546 = vpack.c.bf16 %v522, %v521
      %v547 = vpack.c.bf16 %v524, %v523
      %v548 = vpack.c.bf16 %v526, %v525
      %v549 = vpack.c.bf16 %v528, %v527
      %v550 = vpack.c.bf16 %v530, %v529
      %v551 = vpack.c.bf16 %v532, %v531
      %v552 = vpack.c.bf16 %v534, %v533
      %v553 = vpack.c.bf16 %v536, %v535
      %v554 = vpack.c.bf16 %v538, %v537
      %v555 = vld [vmem:[%s3] sm:$0xf]
      %v556 = vld [vmem:[%s3 + $0x4] sm:$0xf]
      %v557 = vld [vmem:[%s3 + $0x8] sm:$0xf]
      %v558 = vld [vmem:[%s3 + $0xc] sm:$0xf]
      %v559 = vld [vmem:[%s3 + $0x10] sm:$0xf]
      %v560 = vld [vmem:[%s3 + $0x14] sm:$0xf]
      %v561 = vld [vmem:[%s3 + $0x18] sm:$0xf]
      %v562 = vld [vmem:[%s3 + $0x1c] sm:$0xf]
      %v563 = vld [vmem:[%s3 + $0x20] sm:$0xf]
      %v564 = vld [vmem:[%s3 + $0x24] sm:$0xf]
      %v565 = vld [vmem:[%s3 + $0x28] sm:$0xf]
      %v566 = vld [vmem:[%s3 + $0x2c] sm:$0xf]
      %v567 = vld [vmem:[%s3 + $0x30] sm:$0xf]
      %v568 = vld [vmem:[%s3 + $0x34] sm:$0xf]
      %v569 = vld [vmem:[%s3 + $0x38] sm:$0xf]
      %v570 = vld [vmem:[%s3 + $0x3c] sm:$0xf]
      %v571 = vld [vmem:[#allocation2 + $0x1] sm:$0xff]
      %v572 = vld [vmem:[#allocation2 + $0x9] sm:$0xff]
      %v573 = vld [vmem:[#allocation2 + $0x19] sm:$0xff]
      %v574 = vld [vmem:[#allocation2 + $0x21] sm:$0xff]
      %v575 = vld [vmem:[#allocation2 + $0x31] sm:$0xff]
      %v576 = vld [vmem:[#allocation2 + $0x39] sm:$0xff]
      %v577 = vld [vmem:[#allocation2 + $0x49] sm:$0xff]
      %v578 = vld [vmem:[#allocation2 + $0x51] sm:$0xff]
      %v579 = vld [vmem:[#allocation2 + $0x61] sm:$0xff]
      %v580 = vld [vmem:[#allocation2 + $0x69] sm:$0xff]
      %v581 = vld [vmem:[#allocation2 + $0x79] sm:$0xff]
      %v582 = vld [vmem:[#allocation2 + $0x81] sm:$0xff]
      %v583 = vld [vmem:[#allocation2 + $0x91] sm:$0xff]
      %v584 = vld [vmem:[#allocation2 + $0x99] sm:$0xff]
      %v585 = vld [vmem:[#allocation2 + $0xa9] sm:$0xff]
      %v586 = vld [vmem:[#allocation2 + $0xb1] sm:$0xff]
      %v587 = vld [vmem:[#allocation2 + $0xc1] sm:$0xff]
      %v588 = vld [vmem:[#allocation2 + $0xc9] sm:$0xff]
      %v589 = vld [vmem:[#allocation2 + $0xd9] sm:$0xff]
      %v590 = vld [vmem:[#allocation2 + $0xe1] sm:$0xff]
      %v591 = vld [vmem:[#allocation2 + $0xf1] sm:$0xff]
      %v592 = vld [vmem:[#allocation2 + $0xf9] sm:$0xff]
      %v593 = vld [vmem:[#allocation2 + $0x109] sm:$0xff]
      %v594 = vld [vmem:[#allocation2 + $0x111] sm:$0xff]
      %v595 = vld [vmem:[#allocation2 + $0x121] sm:$0xff]
      %v596 = vld [vmem:[#allocation2 + $0x129] sm:$0xff]
      %v597 = vld [vmem:[#allocation2 + $0x139] sm:$0xff]
      %v598 = vld [vmem:[#allocation2 + $0x141] sm:$0xff]
      %v599 = vld [vmem:[#allocation2 + $0x151] sm:$0xff]
      %v600 = vld [vmem:[#allocation2 + $0x159] sm:$0xff]
      %v601 = vld [vmem:[#allocation2 + $0x169] sm:$0xff]
      %v602 = vld [vmem:[#allocation2 + $0x171] sm:$0xff]
      %v603 = vpack.c.bf16 %v572, %v571
      %v604 = vpack.c.bf16 %v574, %v573
      %v605 = vpack.c.bf16 %v576, %v575
      %v606 = vpack.c.bf16 %v578, %v577
      %v607 = vpack.c.bf16 %v580, %v579
      %v608 = vpack.c.bf16 %v582, %v581
      %v609 = vpack.c.bf16 %v584, %v583
      %v610 = vpack.c.bf16 %v586, %v585
      %v611 = vpack.c.bf16 %v588, %v587
      %v612 = vpack.c.bf16 %v590, %v589
      %v613 = vpack.c.bf16 %v592, %v591
      %v614 = vpack.c.bf16 %v594, %v593
      %v615 = vpack.c.bf16 %v596, %v595
      %v616 = vpack.c.bf16 %v598, %v597
      %v617 = vpack.c.bf16 %v600, %v599
      %v618 = vpack.c.bf16 %v602, %v601
      %s619 = scalar_lea.vmem %s3, 64
      %v620 = vld [vmem:[%s619] sm:$0xf]
      %v621 = vld [vmem:[%s619 + $0x4] sm:$0xf]
      %v622 = vld [vmem:[%s619 + $0x8] sm:$0xf]
      %v623 = vld [vmem:[%s619 + $0xc] sm:$0xf]
      %v624 = vld [vmem:[%s619 + $0x10] sm:$0xf]
      %v625 = vld [vmem:[%s619 + $0x14] sm:$0xf]
      %v626 = vld [vmem:[%s619 + $0x18] sm:$0xf]
      %v627 = vld [vmem:[%s619 + $0x1c] sm:$0xf]
      %v628 = vld [vmem:[%s619 + $0x20] sm:$0xf]
      %v629 = vld [vmem:[%s619 + $0x24] sm:$0xf]
      %v630 = vld [vmem:[%s619 + $0x28] sm:$0xf]
      %v631 = vld [vmem:[%s619 + $0x2c] sm:$0xf]
      %v632 = vld [vmem:[%s619 + $0x30] sm:$0xf]
      %v633 = vld [vmem:[%s619 + $0x34] sm:$0xf]
      %v634 = vld [vmem:[%s619 + $0x38] sm:$0xf]
      %v635 = vld [vmem:[%s619 + $0x3c] sm:$0xf]
      %v652 = vunpack.c.l.b16 %v620
      %v653 = vunpack.c.l.b16 %v621
      %v654 = vunpack.c.l.b16 %v622
      %v655 = vunpack.c.l.b16 %v623
      %v656 = vunpack.c.l.b16 %v624
      %v657 = vunpack.c.l.b16 %v625
      %v658 = vunpack.c.l.b16 %v626
      %v659 = vunpack.c.l.b16 %v627
      %v660 = vunpack.c.l.b16 %v628
      %v661 = vunpack.c.l.b16 %v629
      %v662 = vunpack.c.l.b16 %v630
      %v663 = vunpack.c.l.b16 %v631
      %v664 = vunpack.c.l.b16 %v632
      %v665 = vunpack.c.l.b16 %v633
      %v666 = vunpack.c.l.b16 %v634
      %v667 = vunpack.c.l.b16 %v635
      %v668 = vpack.c.b16 %v653, %v652
      %v669 = vpack.c.b16 %v655, %v654
      %v670 = vpack.c.b16 %v657, %v656
      %v671 = vpack.c.b16 %v659, %v658
      %v672 = vpack.c.b16 %v661, %v660
      %v673 = vpack.c.b16 %v663, %v662
      %v674 = vpack.c.b16 %v665, %v664
      %v675 = vpack.c.b16 %v667, %v666
      %684 = vmatpush.bf16.msra.mxu0 %v675
      %685 = vmatpush.bf16.msra.mxu0 %v674
      %686 = vmatpush.bf16.msra.mxu0 %v673
      %687 = vmatpush.bf16.msra.mxu0 %v672
      %688 = vmatpush.bf16.msra.mxu0 %v671
      %689 = vmatpush.bf16.msra.mxu0 %v670
      %690 = vmatpush.bf16.msra.mxu0 %v669
      %691 = vmatpush.bf16.msra.mxu0 %v668
      %692 = vmatmul.bf16.gmra.mxu0 %v603
      %v693 = vpop.f32.mrf.mxu0
      %v694 = vadd.f32 0.0, %v693
      %v695 = vpop.f32.mrf.mxu0
      %v696 = vadd.f32 0.0, %v695
      %697 = vmatmul.bf16.gmra.mxu0 %v604
      %v698 = vpop.f32.mrf.mxu0
      %v699 = vadd.f32 0.0, %v698
      %v700 = vpop.f32.mrf.mxu0
      %v701 = vadd.f32 0.0, %v700
      %702 = vmatmul.bf16.gmra.mxu0 %v605
      %v703 = vpop.f32.mrf.mxu0
      %v704 = vadd.f32 0.0, %v703
      %v705 = vpop.f32.mrf.mxu0
      %v706 = vadd.f32 0.0, %v705
      %707 = vmatmul.bf16.gmra.mxu0 %v606
      %v708 = vpop.f32.mrf.mxu0
      %v709 = vadd.f32 0.0, %v708
      %v710 = vpop.f32.mrf.mxu0
      %v711 = vadd.f32 0.0, %v710
      %712 = vmatmul.bf16.gmra.mxu0 %v607
      %v713 = vpop.f32.mrf.mxu0
      %v714 = vadd.f32 0.0, %v713
      %v715 = vpop.f32.mrf.mxu0
      %v716 = vadd.f32 0.0, %v715
      %717 = vmatmul.bf16.gmra.mxu0 %v608
      %v718 = vpop.f32.mrf.mxu0
      %v719 = vadd.f32 0.0, %v718
      %v720 = vpop.f32.mrf.mxu0
      %v721 = vadd.f32 0.0, %v720
      %722 = vmatmul.bf16.gmra.mxu0 %v609
      %v723 = vpop.f32.mrf.mxu0
      %v724 = vadd.f32 0.0, %v723
      %v725 = vpop.f32.mrf.mxu0
      %v726 = vadd.f32 0.0, %v725
      %727 = vmatmul.bf16.gmra.mxu0 %v610
      %v728 = vpop.f32.mrf.mxu0
      %v729 = vadd.f32 0.0, %v728
      %v730 = vpop.f32.mrf.mxu0
      %v731 = vadd.f32 0.0, %v730
      %732 = vmatmul.bf16.gmra.mxu0 %v611
      %v733 = vpop.f32.mrf.mxu0
      %v734 = vadd.f32 0.0, %v733
      %v735 = vpop.f32.mrf.mxu0
      %v736 = vadd.f32 0.0, %v735
      %737 = vmatmul.bf16.gmra.mxu0 %v612
      %v738 = vpop.f32.mrf.mxu0
      %v739 = vadd.f32 0.0, %v738
      %v740 = vpop.f32.mrf.mxu0
      %v741 = vadd.f32 0.0, %v740
      %742 = vmatmul.bf16.gmra.mxu0 %v613
      %v743 = vpop.f32.mrf.mxu0
      %v744 = vadd.f32 0.0, %v743
      %v745 = vpop.f32.mrf.mxu0
      %v746 = vadd.f32 0.0, %v745
      %747 = vmatmul.bf16.gmra.mxu0 %v614
      %v748 = vpop.f32.mrf.mxu0
      %v749 = vadd.f32 0.0, %v748
      %v750 = vpop.f32.mrf.mxu0
      %v751 = vadd.f32 0.0, %v750
      %752 = vmatmul.bf16.gmra.mxu0 %v615
      %v753 = vpop.f32.mrf.mxu0
      %v754 = vadd.f32 0.0, %v753
      %v755 = vpop.f32.mrf.mxu0
      %v756 = vadd.f32 0.0, %v755
      %757 = vmatmul.bf16.gmra.mxu0 %v616
      %v758 = vpop.f32.mrf.mxu0
      %v759 = vadd.f32 0.0, %v758
      %v760 = vpop.f32.mrf.mxu0
      %v761 = vadd.f32 0.0, %v760
      %762 = vmatmul.bf16.gmra.mxu0 %v617
      %v763 = vpop.f32.mrf.mxu0
      %v764 = vadd.f32 0.0, %v763
      %v765 = vpop.f32.mrf.mxu0
      %v766 = vadd.f32 0.0, %v765
      %767 = vmatmul.bf16.gmra.mxu0 %v618
      %v768 = vpop.f32.mrf.mxu0
      %v769 = vadd.f32 0.0, %v768
      %v770 = vpop.f32.mrf.mxu0
      %v771 = vadd.f32 0.0, %v770
      %772 = vdwg.mxu0
      %v789 = vunpack.c.l.b16 %v555
      %v790 = vunpack.c.l.b16 %v556
      %v791 = vunpack.c.l.b16 %v557
      %v792 = vunpack.c.l.b16 %v558
      %v793 = vunpack.c.l.b16 %v559
      %v794 = vunpack.c.l.b16 %v560
      %v795 = vunpack.c.l.b16 %v561
      %v796 = vunpack.c.l.b16 %v562
      %v797 = vunpack.c.l.b16 %v563
      %v798 = vunpack.c.l.b16 %v564
      %v799 = vunpack.c.l.b16 %v565
      %v800 = vunpack.c.l.b16 %v566
      %v801 = vunpack.c.l.b16 %v567
      %v802 = vunpack.c.l.b16 %v568
      %v803 = vunpack.c.l.b16 %v569
      %v804 = vunpack.c.l.b16 %v570
      %v805 = vpack.c.b16 %v790, %v789
      %v806 = vpack.c.b16 %v792, %v791
      %v807 = vpack.c.b16 %v794, %v793
      %v808 = vpack.c.b16 %v796, %v795
      %v809 = vpack.c.b16 %v798, %v797
      %v810 = vpack.c.b16 %v800, %v799
      %v811 = vpack.c.b16 %v802, %v801
      %v812 = vpack.c.b16 %v804, %v803
      %821 = vmatpush.bf16.msra.mxu0 %v812
      %822 = vmatpush.bf16.msra.mxu0 %v811
      %823 = vmatpush.bf16.msra.mxu0 %v810
      %824 = vmatpush.bf16.msra.mxu0 %v809
      %825 = vmatpush.bf16.msra.mxu0 %v808
      %826 = vmatpush.bf16.msra.mxu0 %v807
      %827 = vmatpush.bf16.msra.mxu0 %v806
      %828 = vmatpush.bf16.msra.mxu0 %v805
      %829 = vmatmul.bf16.gmra.mxu0 %v539
      %v830 = vpop.f32.mrf.mxu0
      %v831 = vadd.f32 %v694, %v830
      %v832 = vpop.f32.mrf.mxu0
      %v833 = vadd.f32 %v696, %v832
      %834 = vmatmul.bf16.gmra.mxu0 %v540
      %v835 = vpop.f32.mrf.mxu0
      %v836 = vadd.f32 %v699, %v835
      %v837 = vpop.f32.mrf.mxu0
      %v838 = vadd.f32 %v701, %v837
      %839 = vmatmul.bf16.gmra.mxu0 %v541
      %v840 = vpop.f32.mrf.mxu0
      %v841 = vadd.f32 %v704, %v840
      %v842 = vpop.f32.mrf.mxu0
      %v843 = vadd.f32 %v706, %v842
      %844 = vmatmul.bf16.gmra.mxu0 %v542
      %v845 = vpop.f32.mrf.mxu0
      %v846 = vadd.f32 %v709, %v845
      %v847 = vpop.f32.mrf.mxu0
      %v848 = vadd.f32 %v711, %v847
      %849 = vmatmul.bf16.gmra.mxu0 %v543
      %v850 = vpop.f32.mrf.mxu0
      %v851 = vadd.f32 %v714, %v850
      %v852 = vpop.f32.mrf.mxu0
      %v853 = vadd.f32 %v716, %v852
      %854 = vmatmul.bf16.gmra.mxu0 %v544
      %v855 = vpop.f32.mrf.mxu0
      %v856 = vadd.f32 %v719, %v855
      %v857 = vpop.f32.mrf.mxu0
      %v858 = vadd.f32 %v721, %v857
      %859 = vmatmul.bf16.gmra.mxu0 %v545
      %v860 = vpop.f32.mrf.mxu0
      %v861 = vadd.f32 %v724, %v860
      %v862 = vpop.f32.mrf.mxu0
      %v863 = vadd.f32 %v726, %v862
      %864 = vmatmul.bf16.gmra.mxu0 %v546
      %v865 = vpop.f32.mrf.mxu0
      %v866 = vadd.f32 %v729, %v865
      %v867 = vpop.f32.mrf.mxu0
      %v868 = vadd.f32 %v731, %v867
      %869 = vmatmul.bf16.gmra.mxu0 %v547
      %v870 = vpop.f32.mrf.mxu0
      %v871 = vadd.f32 %v734, %v870
      %v872 = vpop.f32.mrf.mxu0
      %v873 = vadd.f32 %v736, %v872
      %874 = vmatmul.bf16.gmra.mxu0 %v548
      %v875 = vpop.f32.mrf.mxu0
      %v876 = vadd.f32 %v739, %v875
      %v877 = vpop.f32.mrf.mxu0
      %v878 = vadd.f32 %v741, %v877
      %879 = vmatmul.bf16.gmra.mxu0 %v549
      %v880 = vpop.f32.mrf.mxu0
      %v881 = vadd.f32 %v744, %v880
      %v882 = vpop.f32.mrf.mxu0
      %v883 = vadd.f32 %v746, %v882
      %884 = vmatmul.bf16.gmra.mxu0 %v550
      %v885 = vpop.f32.mrf.mxu0
      %v886 = vadd.f32 %v749, %v885
      %v887 = vpop.f32.mrf.mxu0
      %v888 = vadd.f32 %v751, %v887
      %889 = vmatmul.bf16.gmra.mxu0 %v551
      %v890 = vpop.f32.mrf.mxu0
      %v891 = vadd.f32 %v754, %v890
      %v892 = vpop.f32.mrf.mxu0
      %v893 = vadd.f32 %v756, %v892
      %894 = vmatmul.bf16.gmra.mxu0 %v552
      %v895 = vpop.f32.mrf.mxu0
      %v896 = vadd.f32 %v759, %v895
      %v897 = vpop.f32.mrf.mxu0
      %v898 = vadd.f32 %v761, %v897
      %899 = vmatmul.bf16.gmra.mxu0 %v553
      %v900 = vpop.f32.mrf.mxu0
      %v901 = vadd.f32 %v764, %v900
      %v902 = vpop.f32.mrf.mxu0
      %v903 = vadd.f32 %v766, %v902
      %904 = vmatmul.bf16.gmra.mxu0 %v554
      %v905 = vpop.f32.mrf.mxu0
      %v906 = vadd.f32 %v769, %v905
      %v907 = vpop.f32.mrf.mxu0
      %v908 = vadd.f32 %v771, %v907
      %909 = vdwg.mxu0
      %v910 = vld [vmem:[#allocation2 + $0x2] sm:$0xff]
      %v911 = vld [vmem:[#allocation2 + $0xa] sm:$0xff]
      %v912 = vld [vmem:[#allocation2 + $0x1a] sm:$0xff]
      %v913 = vld [vmem:[#allocation2 + $0x22] sm:$0xff]
      %v914 = vld [vmem:[#allocation2 + $0x32] sm:$0xff]
      %v915 = vld [vmem:[#allocation2 + $0x3a] sm:$0xff]
      %v916 = vld [vmem:[#allocation2 + $0x4a] sm:$0xff]
      %v917 = vld [vmem:[#allocation2 + $0x52] sm:$0xff]
      %v918 = vld [vmem:[#allocation2 + $0x62] sm:$0xff]
      %v919 = vld [vmem:[#allocation2 + $0x6a] sm:$0xff]
      %v920 = vld [vmem:[#allocation2 + $0x7a] sm:$0xff]
      %v921 = vld [vmem:[#allocation2 + $0x82] sm:$0xff]
      %v922 = vld [vmem:[#allocation2 + $0x92] sm:$0xff]
      %v923 = vld [vmem:[#allocation2 + $0x9a] sm:$0xff]
      %v924 = vld [vmem:[#allocation2 + $0xaa] sm:$0xff]
      %v925 = vld [vmem:[#allocation2 + $0xb2] sm:$0xff]
      %v926 = vld [vmem:[#allocation2 + $0xc2] sm:$0xff]
      %v927 = vld [vmem:[#allocation2 + $0xca] sm:$0xff]
      %v928 = vld [vmem:[#allocation2 + $0xda] sm:$0xff]
      %v929 = vld [vmem:[#allocation2 + $0xe2] sm:$0xff]
      %v930 = vld [vmem:[#allocation2 + $0xf2] sm:$0xff]
      %v931 = vld [vmem:[#allocation2 + $0xfa] sm:$0xff]
      %v932 = vld [vmem:[#allocation2 + $0x10a] sm:$0xff]
      %v933 = vld [vmem:[#allocation2 + $0x112] sm:$0xff]
      %v934 = vld [vmem:[#allocation2 + $0x122] sm:$0xff]
      %v935 = vld [vmem:[#allocation2 + $0x12a] sm:$0xff]
      %v936 = vld [vmem:[#allocation2 + $0x13a] sm:$0xff]
      %v937 = vld [vmem:[#allocation2 + $0x142] sm:$0xff]
      %v938 = vld [vmem:[#allocation2 + $0x152] sm:$0xff]
      %v939 = vld [vmem:[#allocation2 + $0x15a] sm:$0xff]
      %v940 = vld [vmem:[#allocation2 + $0x16a] sm:$0xff]
      %v941 = vld [vmem:[#allocation2 + $0x172] sm:$0xff]
      %v942 = vpack.c.bf16 %v911, %v910
      %v943 = vpack.c.bf16 %v913, %v912
      %v944 = vpack.c.bf16 %v915, %v914
      %v945 = vpack.c.bf16 %v917, %v916
      %v946 = vpack.c.bf16 %v919, %v918
      %v947 = vpack.c.bf16 %v921, %v920
      %v948 = vpack.c.bf16 %v923, %v922
      %v949 = vpack.c.bf16 %v925, %v924
      %v950 = vpack.c.bf16 %v927, %v926
      %v951 = vpack.c.bf16 %v929, %v928
      %v952 = vpack.c.bf16 %v931, %v930
      %v953 = vpack.c.bf16 %v933, %v932
      %v954 = vpack.c.bf16 %v935, %v934
      %v955 = vpack.c.bf16 %v937, %v936
      %v956 = vpack.c.bf16 %v939, %v938
      %v957 = vpack.c.bf16 %v941, %v940
      %s958 = scalar_lea.vmem %s3, 128
      %v959 = vld [vmem:[%s958] sm:$0xf]
      %v960 = vld [vmem:[%s958 + $0x4] sm:$0xf]
      %v961 = vld [vmem:[%s958 + $0x8] sm:$0xf]
      %v962 = vld [vmem:[%s958 + $0xc] sm:$0xf]
      %v963 = vld [vmem:[%s958 + $0x10] sm:$0xf]
      %v964 = vld [vmem:[%s958 + $0x14] sm:$0xf]
      %v965 = vld [vmem:[%s958 + $0x18] sm:$0xf]
      %v966 = vld [vmem:[%s958 + $0x1c] sm:$0xf]
      %v967 = vld [vmem:[%s958 + $0x20] sm:$0xf]
      %v968 = vld [vmem:[%s958 + $0x24] sm:$0xf]
      %v969 = vld [vmem:[%s958 + $0x28] sm:$0xf]
      %v970 = vld [vmem:[%s958 + $0x2c] sm:$0xf]
      %v971 = vld [vmem:[%s958 + $0x30] sm:$0xf]
      %v972 = vld [vmem:[%s958 + $0x34] sm:$0xf]
      %v973 = vld [vmem:[%s958 + $0x38] sm:$0xf]
      %v974 = vld [vmem:[%s958 + $0x3c] sm:$0xf]
      %v991 = vunpack.c.l.b16 %v959
      %v992 = vunpack.c.l.b16 %v960
      %v993 = vunpack.c.l.b16 %v961
      %v994 = vunpack.c.l.b16 %v962
      %v995 = vunpack.c.l.b16 %v963
      %v996 = vunpack.c.l.b16 %v964
      %v997 = vunpack.c.l.b16 %v965
      %v998 = vunpack.c.l.b16 %v966
      %v999 = vunpack.c.l.b16 %v967
      %v1000 = vunpack.c.l.b16 %v968
      %v1001 = vunpack.c.l.b16 %v969
      %v1002 = vunpack.c.l.b16 %v970
      %v1003 = vunpack.c.l.b16 %v971
      %v1004 = vunpack.c.l.b16 %v972
      %v1005 = vunpack.c.l.b16 %v973
      %v1006 = vunpack.c.l.b16 %v974
      %v1007 = vpack.c.b16 %v992, %v991
      %v1008 = vpack.c.b16 %v994, %v993
      %v1009 = vpack.c.b16 %v996, %v995
      %v1010 = vpack.c.b16 %v998, %v997
      %v1011 = vpack.c.b16 %v1000, %v999
      %v1012 = vpack.c.b16 %v1002, %v1001
      %v1013 = vpack.c.b16 %v1004, %v1003
      %v1014 = vpack.c.b16 %v1006, %v1005
      %1023 = vmatpush.bf16.msra.mxu0 %v1014
      %1024 = vmatpush.bf16.msra.mxu0 %v1013
      %1025 = vmatpush.bf16.msra.mxu0 %v1012
      %1026 = vmatpush.bf16.msra.mxu0 %v1011
      %1027 = vmatpush.bf16.msra.mxu0 %v1010
      %1028 = vmatpush.bf16.msra.mxu0 %v1009
      %1029 = vmatpush.bf16.msra.mxu0 %v1008
      %1030 = vmatpush.bf16.msra.mxu0 %v1007
      %1031 = vmatmul.bf16.gmra.mxu0 %v942
      %v1032 = vpop.f32.mrf.mxu0
      %v1033 = vadd.f32 0.0, %v1032
      %v1034 = vpop.f32.mrf.mxu0
      %v1035 = vadd.f32 0.0, %v1034
      %1036 = vmatmul.bf16.gmra.mxu0 %v943
      %v1037 = vpop.f32.mrf.mxu0
      %v1038 = vadd.f32 0.0, %v1037
      %v1039 = vpop.f32.mrf.mxu0
      %v1040 = vadd.f32 0.0, %v1039
      %1041 = vmatmul.bf16.gmra.mxu0 %v944
      %v1042 = vpop.f32.mrf.mxu0
      %v1043 = vadd.f32 0.0, %v1042
      %v1044 = vpop.f32.mrf.mxu0
      %v1045 = vadd.f32 0.0, %v1044
      %1046 = vmatmul.bf16.gmra.mxu0 %v945
      %v1047 = vpop.f32.mrf.mxu0
      %v1048 = vadd.f32 0.0, %v1047
      %v1049 = vpop.f32.mrf.mxu0
      %v1050 = vadd.f32 0.0, %v1049
      %1051 = vmatmul.bf16.gmra.mxu0 %v946
      %v1052 = vpop.f32.mrf.mxu0
      %v1053 = vadd.f32 0.0, %v1052
      %v1054 = vpop.f32.mrf.mxu0
      %v1055 = vadd.f32 0.0, %v1054
      %1056 = vmatmul.bf16.gmra.mxu0 %v947
      %v1057 = vpop.f32.mrf.mxu0
      %v1058 = vadd.f32 0.0, %v1057
      %v1059 = vpop.f32.mrf.mxu0
      %v1060 = vadd.f32 0.0, %v1059
      %1061 = vmatmul.bf16.gmra.mxu0 %v948
      %v1062 = vpop.f32.mrf.mxu0
      %v1063 = vadd.f32 0.0, %v1062
      %v1064 = vpop.f32.mrf.mxu0
      %v1065 = vadd.f32 0.0, %v1064
      %1066 = vmatmul.bf16.gmra.mxu0 %v949
      %v1067 = vpop.f32.mrf.mxu0
      %v1068 = vadd.f32 0.0, %v1067
      %v1069 = vpop.f32.mrf.mxu0
      %v1070 = vadd.f32 0.0, %v1069
      %1071 = vmatmul.bf16.gmra.mxu0 %v950
      %v1072 = vpop.f32.mrf.mxu0
      %v1073 = vadd.f32 0.0, %v1072
      %v1074 = vpop.f32.mrf.mxu0
      %v1075 = vadd.f32 0.0, %v1074
      %1076 = vmatmul.bf16.gmra.mxu0 %v951
      %v1077 = vpop.f32.mrf.mxu0
      %v1078 = vadd.f32 0.0, %v1077
      %v1079 = vpop.f32.mrf.mxu0
      %v1080 = vadd.f32 0.0, %v1079
      %1081 = vmatmul.bf16.gmra.mxu0 %v952
      %v1082 = vpop.f32.mrf.mxu0
      %v1083 = vadd.f32 0.0, %v1082
      %v1084 = vpop.f32.mrf.mxu0
      %v1085 = vadd.f32 0.0, %v1084
      %1086 = vmatmul.bf16.gmra.mxu0 %v953
      %v1087 = vpop.f32.mrf.mxu0
      %v1088 = vadd.f32 0.0, %v1087
      %v1089 = vpop.f32.mrf.mxu0
      %v1090 = vadd.f32 0.0, %v1089
      %1091 = vmatmul.bf16.gmra.mxu0 %v954
      %v1092 = vpop.f32.mrf.mxu0
      %v1093 = vadd.f32 0.0, %v1092
      %v1094 = vpop.f32.mrf.mxu0
      %v1095 = vadd.f32 0.0, %v1094
      %1096 = vmatmul.bf16.gmra.mxu0 %v955
      %v1097 = vpop.f32.mrf.mxu0
      %v1098 = vadd.f32 0.0, %v1097
      %v1099 = vpop.f32.mrf.mxu0
      %v1100 = vadd.f32 0.0, %v1099
      %1101 = vmatmul.bf16.gmra.mxu0 %v956
      %v1102 = vpop.f32.mrf.mxu0
      %v1103 = vadd.f32 0.0, %v1102
      %v1104 = vpop.f32.mrf.mxu0
      %v1105 = vadd.f32 0.0, %v1104
      %1106 = vmatmul.bf16.gmra.mxu0 %v957
      %v1107 = vpop.f32.mrf.mxu0
      %v1108 = vadd.f32 0.0, %v1107
      %v1109 = vpop.f32.mrf.mxu0
      %v1110 = vadd.f32 0.0, %v1109
      %1111 = vdwg.mxu0
      %v1112 = vadd.f32 %v831, %v1033
      %v1113 = vadd.f32 %v833, %v1035
      %v1114 = vadd.f32 %v836, %v1038
      %v1115 = vadd.f32 %v838, %v1040
      %v1116 = vadd.f32 %v841, %v1043
      %v1117 = vadd.f32 %v843, %v1045
      %v1118 = vadd.f32 %v846, %v1048
      %v1119 = vadd.f32 %v848, %v1050
      %v1120 = vadd.f32 %v851, %v1053
      %v1121 = vadd.f32 %v853, %v1055
      %v1122 = vadd.f32 %v856, %v1058
      %v1123 = vadd.f32 %v858, %v1060
      %v1124 = vadd.f32 %v861, %v1063
      %v1125 = vadd.f32 %v863, %v1065
      %v1126 = vadd.f32 %v866, %v1068
      %v1127 = vadd.f32 %v868, %v1070
      %v1128 = vadd.f32 %v871, %v1073
      %v1129 = vadd.f32 %v873, %v1075
      %v1130 = vadd.f32 %v876, %v1078
      %v1131 = vadd.f32 %v878, %v1080
      %v1132 = vadd.f32 %v881, %v1083
      %v1133 = vadd.f32 %v883, %v1085
      %v1134 = vadd.f32 %v886, %v1088
      %v1135 = vadd.f32 %v888, %v1090
      %v1136 = vadd.f32 %v891, %v1093
      %v1137 = vadd.f32 %v893, %v1095
      %v1138 = vadd.f32 %v896, %v1098
      %v1139 = vadd.f32 %v898, %v1100
      %v1140 = vadd.f32 %v901, %v1103
      %v1141 = vadd.f32 %v903, %v1105
      %v1142 = vadd.f32 %v906, %v1108
      %v1143 = vadd.f32 %v908, %v1110
      %v1144 = vld [vmem:[%s474] sm:$0xff]
      %v1145 = vld [vmem:[%s474 + $0x8] sm:$0xff]
      %v1146 = vld [vmem:[%s474 + $0x18] sm:$0xff]
      %v1147 = vld [vmem:[%s474 + $0x20] sm:$0xff]
      %v1148 = vld [vmem:[%s474 + $0x30] sm:$0xff]
      %v1149 = vld [vmem:[%s474 + $0x38] sm:$0xff]
      %v1150 = vld [vmem:[%s474 + $0x48] sm:$0xff]
      %v1151 = vld [vmem:[%s474 + $0x50] sm:$0xff]
      %v1152 = vld [vmem:[%s474 + $0x60] sm:$0xff]
      %v1153 = vld [vmem:[%s474 + $0x68] sm:$0xff]
      %v1154 = vld [vmem:[%s474 + $0x78] sm:$0xff]
      %v1155 = vld [vmem:[%s474 + $0x80] sm:$0xff]
      %v1156 = vld [vmem:[%s474 + $0x90] sm:$0xff]
      %v1157 = vld [vmem:[%s474 + $0x98] sm:$0xff]
      %v1158 = vld [vmem:[%s474 + $0xa8] sm:$0xff]
      %v1159 = vld [vmem:[%s474 + $0xb0] sm:$0xff]
      %v1160 = vld [vmem:[%s474 + $0xc0] sm:$0xff]
      %v1161 = vld [vmem:[%s474 + $0xc8] sm:$0xff]
      %v1162 = vld [vmem:[%s474 + $0xd8] sm:$0xff]
      %v1163 = vld [vmem:[%s474 + $0xe0] sm:$0xff]
      %v1164 = vld [vmem:[%s474 + $0xf0] sm:$0xff]
      %v1165 = vld [vmem:[%s474 + $0xf8] sm:$0xff]
      %v1166 = vld [vmem:[%s474 + $0x108] sm:$0xff]
      %v1167 = vld [vmem:[%s474 + $0x110] sm:$0xff]
      %v1168 = vld [vmem:[%s474 + $0x120] sm:$0xff]
      %v1169 = vld [vmem:[%s474 + $0x128] sm:$0xff]
      %v1170 = vld [vmem:[%s474 + $0x138] sm:$0xff]
      %v1171 = vld [vmem:[%s474 + $0x140] sm:$0xff]
      %v1172 = vld [vmem:[%s474 + $0x150] sm:$0xff]
      %v1173 = vld [vmem:[%s474 + $0x158] sm:$0xff]
      %v1174 = vld [vmem:[%s474 + $0x168] sm:$0xff]
      %v1175 = vld [vmem:[%s474 + $0x170] sm:$0xff]
      %v1176 = vpack.c.bf16 %v1145, %v1144
      %v1177 = vpack.c.bf16 %v1147, %v1146
      %v1178 = vpack.c.bf16 %v1149, %v1148
      %v1179 = vpack.c.bf16 %v1151, %v1150
      %v1180 = vpack.c.bf16 %v1153, %v1152
      %v1181 = vpack.c.bf16 %v1155, %v1154
      %v1182 = vpack.c.bf16 %v1157, %v1156
      %v1183 = vpack.c.bf16 %v1159, %v1158
      %v1184 = vpack.c.bf16 %v1161, %v1160
      %v1185 = vpack.c.bf16 %v1163, %v1162
      %v1186 = vpack.c.bf16 %v1165, %v1164
      %v1187 = vpack.c.bf16 %v1167, %v1166
      %v1188 = vpack.c.bf16 %v1169, %v1168
      %v1189 = vpack.c.bf16 %v1171, %v1170
      %v1190 = vpack.c.bf16 %v1173, %v1172
      %v1191 = vpack.c.bf16 %v1175, %v1174
      %s1192 = scalar_lea.vmem %s3, 192
      %v1193 = vld [vmem:[%s1192] sm:$0xf]
      %v1194 = vld [vmem:[%s1192 + $0x4] sm:$0xf]
      %v1195 = vld [vmem:[%s1192 + $0x8] sm:$0xf]
      %v1196 = vld [vmem:[%s1192 + $0xc] sm:$0xf]
      %v1197 = vld [vmem:[%s1192 + $0x10] sm:$0xf]
      %v1198 = vld [vmem:[%s1192 + $0x14] sm:$0xf]
      %v1199 = vld [vmem:[%s1192 + $0x18] sm:$0xf]
      %v1200 = vld [vmem:[%s1192 + $0x1c] sm:$0xf]
      %v1201 = vld [vmem:[%s1192 + $0x20] sm:$0xf]
      %v1202 = vld [vmem:[%s1192 + $0x24] sm:$0xf]
      %v1203 = vld [vmem:[%s1192 + $0x28] sm:$0xf]
      %v1204 = vld [vmem:[%s1192 + $0x2c] sm:$0xf]
      %v1205 = vld [vmem:[%s1192 + $0x30] sm:$0xf]
      %v1206 = vld [vmem:[%s1192 + $0x34] sm:$0xf]
      %v1207 = vld [vmem:[%s1192 + $0x38] sm:$0xf]
      %v1208 = vld [vmem:[%s1192 + $0x3c] sm:$0xf]
      %v1225 = vunpack.c.l.b16 %v1193
      %v1226 = vunpack.c.l.b16 %v1194
      %v1227 = vunpack.c.l.b16 %v1195
      %v1228 = vunpack.c.l.b16 %v1196
      %v1229 = vunpack.c.l.b16 %v1197
      %v1230 = vunpack.c.l.b16 %v1198
      %v1231 = vunpack.c.l.b16 %v1199
      %v1232 = vunpack.c.l.b16 %v1200
      %v1233 = vunpack.c.l.b16 %v1201
      %v1234 = vunpack.c.l.b16 %v1202
      %v1235 = vunpack.c.l.b16 %v1203
      %v1236 = vunpack.c.l.b16 %v1204
      %v1237 = vunpack.c.l.b16 %v1205
      %v1238 = vunpack.c.l.b16 %v1206
      %v1239 = vunpack.c.l.b16 %v1207
      %v1240 = vunpack.c.l.b16 %v1208
      %v1241 = vpack.c.b16 %v1226, %v1225
      %v1242 = vpack.c.b16 %v1228, %v1227
      %v1243 = vpack.c.b16 %v1230, %v1229
      %v1244 = vpack.c.b16 %v1232, %v1231
      %v1245 = vpack.c.b16 %v1234, %v1233
      %v1246 = vpack.c.b16 %v1236, %v1235
      %v1247 = vpack.c.b16 %v1238, %v1237
      %v1248 = vpack.c.b16 %v1240, %v1239
      %1257 = vmatpush.bf16.msra.mxu0 %v1248
      %1258 = vmatpush.bf16.msra.mxu0 %v1247
      %1259 = vmatpush.bf16.msra.mxu0 %v1246
      %1260 = vmatpush.bf16.msra.mxu0 %v1245
      %1261 = vmatpush.bf16.msra.mxu0 %v1244
      %1262 = vmatpush.bf16.msra.mxu0 %v1243
      %1263 = vmatpush.bf16.msra.mxu0 %v1242
      %1264 = vmatpush.bf16.msra.mxu0 %v1241
      %1265 = vmatmul.bf16.gmra.mxu0 %v1176
      %v1266 = vpop.f32.mrf.mxu0
      %v1267 = vadd.f32 0.0, %v1266
      %v1268 = vpop.f32.mrf.mxu0
      %v1269 = vadd.f32 0.0, %v1268
      %1270 = vmatmul.bf16.gmra.mxu0 %v1177
      %v1271 = vpop.f32.mrf.mxu0
      %v1272 = vadd.f32 0.0, %v1271
      %v1273 = vpop.f32.mrf.mxu0
      %v1274 = vadd.f32 0.0, %v1273
      %1275 = vmatmul.bf16.gmra.mxu0 %v1178
      %v1276 = vpop.f32.mrf.mxu0
      %v1277 = vadd.f32 0.0, %v1276
      %v1278 = vpop.f32.mrf.mxu0
      %v1279 = vadd.f32 0.0, %v1278
      %1280 = vmatmul.bf16.gmra.mxu0 %v1179
      %v1281 = vpop.f32.mrf.mxu0
      %v1282 = vadd.f32 0.0, %v1281
      %v1283 = vpop.f32.mrf.mxu0
      %v1284 = vadd.f32 0.0, %v1283
      %1285 = vmatmul.bf16.gmra.mxu0 %v1180
      %v1286 = vpop.f32.mrf.mxu0
      %v1287 = vadd.f32 0.0, %v1286
      %v1288 = vpop.f32.mrf.mxu0
      %v1289 = vadd.f32 0.0, %v1288
      %1290 = vmatmul.bf16.gmra.mxu0 %v1181
      %v1291 = vpop.f32.mrf.mxu0
      %v1292 = vadd.f32 0.0, %v1291
      %v1293 = vpop.f32.mrf.mxu0
      %v1294 = vadd.f32 0.0, %v1293
      %1295 = vmatmul.bf16.gmra.mxu0 %v1182
      %v1296 = vpop.f32.mrf.mxu0
      %v1297 = vadd.f32 0.0, %v1296
      %v1298 = vpop.f32.mrf.mxu0
      %v1299 = vadd.f32 0.0, %v1298
      %1300 = vmatmul.bf16.gmra.mxu0 %v1183
      %v1301 = vpop.f32.mrf.mxu0
      %v1302 = vadd.f32 0.0, %v1301
      %v1303 = vpop.f32.mrf.mxu0
      %v1304 = vadd.f32 0.0, %v1303
      %1305 = vmatmul.bf16.gmra.mxu0 %v1184
      %v1306 = vpop.f32.mrf.mxu0
      %v1307 = vadd.f32 0.0, %v1306
      %v1308 = vpop.f32.mrf.mxu0
      %v1309 = vadd.f32 0.0, %v1308
      %1310 = vmatmul.bf16.gmra.mxu0 %v1185
      %v1311 = vpop.f32.mrf.mxu0
      %v1312 = vadd.f32 0.0, %v1311
      %v1313 = vpop.f32.mrf.mxu0
      %v1314 = vadd.f32 0.0, %v1313
      %1315 = vmatmul.bf16.gmra.mxu0 %v1186
      %v1316 = vpop.f32.mrf.mxu0
      %v1317 = vadd.f32 0.0, %v1316
      %v1318 = vpop.f32.mrf.mxu0
      %v1319 = vadd.f32 0.0, %v1318
      %1320 = vmatmul.bf16.gmra.mxu0 %v1187
      %v1321 = vpop.f32.mrf.mxu0
      %v1322 = vadd.f32 0.0, %v1321
      %v1323 = vpop.f32.mrf.mxu0
      %v1324 = vadd.f32 0.0, %v1323
      %1325 = vmatmul.bf16.gmra.mxu0 %v1188
      %v1326 = vpop.f32.mrf.mxu0
      %v1327 = vadd.f32 0.0, %v1326
      %v1328 = vpop.f32.mrf.mxu0
      %v1329 = vadd.f32 0.0, %v1328
      %1330 = vmatmul.bf16.gmra.mxu0 %v1189
      %v1331 = vpop.f32.mrf.mxu0
      %v1332 = vadd.f32 0.0, %v1331
      %v1333 = vpop.f32.mrf.mxu0
      %v1334 = vadd.f32 0.0, %v1333
      %1335 = vmatmul.bf16.gmra.mxu0 %v1190
      %v1336 = vpop.f32.mrf.mxu0
      %v1337 = vadd.f32 0.0, %v1336
      %v1338 = vpop.f32.mrf.mxu0
      %v1339 = vadd.f32 0.0, %v1338
      %1340 = vmatmul.bf16.gmra.mxu0 %v1191
      %v1341 = vpop.f32.mrf.mxu0
      %v1342 = vadd.f32 0.0, %v1341
      %v1343 = vpop.f32.mrf.mxu0
      %v1344 = vadd.f32 0.0, %v1343
      %1345 = vdwg.mxu0
      %v1346 = vadd.f32 %v1112, %v1267
      %v1347 = vadd.f32 %v1113, %v1269
      %v1348 = vadd.f32 %v1114, %v1272
      %v1349 = vadd.f32 %v1115, %v1274
      %v1350 = vadd.f32 %v1116, %v1277
      %v1351 = vadd.f32 %v1117, %v1279
      %v1352 = vadd.f32 %v1118, %v1282
      %v1353 = vadd.f32 %v1119, %v1284
      %v1354 = vadd.f32 %v1120, %v1287
      %v1355 = vadd.f32 %v1121, %v1289
      %v1356 = vadd.f32 %v1122, %v1292
      %v1357 = vadd.f32 %v1123, %v1294
      %v1358 = vadd.f32 %v1124, %v1297
      %v1359 = vadd.f32 %v1125, %v1299
      %v1360 = vadd.f32 %v1126, %v1302
      %v1361 = vadd.f32 %v1127, %v1304
      %v1362 = vadd.f32 %v1128, %v1307
      %v1363 = vadd.f32 %v1129, %v1309
      %v1364 = vadd.f32 %v1130, %v1312
      %v1365 = vadd.f32 %v1131, %v1314
      %v1366 = vadd.f32 %v1132, %v1317
      %v1367 = vadd.f32 %v1133, %v1319
      %v1368 = vadd.f32 %v1134, %v1322
      %v1369 = vadd.f32 %v1135, %v1324
      %v1370 = vadd.f32 %v1136, %v1327
      %v1371 = vadd.f32 %v1137, %v1329
      %v1372 = vadd.f32 %v1138, %v1332
      %v1373 = vadd.f32 %v1139, %v1334
      %v1374 = vadd.f32 %v1140, %v1337
      %v1375 = vadd.f32 %v1141, %v1339
      %v1376 = vadd.f32 %v1142, %v1342
      %v1377 = vadd.f32 %v1143, %v1344
      %v1378 = vld [vmem:[%s474 + $0x1] sm:$0xff]
      %v1379 = vld [vmem:[%s474 + $0x9] sm:$0xff]
      %v1380 = vld [vmem:[%s474 + $0x19] sm:$0xff]
      %v1381 = vld [vmem:[%s474 + $0x21] sm:$0xff]
      %v1382 = vld [vmem:[%s474 + $0x31] sm:$0xff]
      %v1383 = vld [vmem:[%s474 + $0x39] sm:$0xff]
      %v1384 = vld [vmem:[%s474 + $0x49] sm:$0xff]
      %v1385 = vld [vmem:[%s474 + $0x51] sm:$0xff]
      %v1386 = vld [vmem:[%s474 + $0x61] sm:$0xff]
      %v1387 = vld [vmem:[%s474 + $0x69] sm:$0xff]
      %v1388 = vld [vmem:[%s474 + $0x79] sm:$0xff]
      %v1389 = vld [vmem:[%s474 + $0x81] sm:$0xff]
      %v1390 = vld [vmem:[%s474 + $0x91] sm:$0xff]
      %v1391 = vld [vmem:[%s474 + $0x99] sm:$0xff]
      %v1392 = vld [vmem:[%s474 + $0xa9] sm:$0xff]
      %v1393 = vld [vmem:[%s474 + $0xb1] sm:$0xff]
      %v1394 = vld [vmem:[%s474 + $0xc1] sm:$0xff]
      %v1395 = vld [vmem:[%s474 + $0xc9] sm:$0xff]
      %v1396 = vld [vmem:[%s474 + $0xd9] sm:$0xff]
      %v1397 = vld [vmem:[%s474 + $0xe1] sm:$0xff]
      %v1398 = vld [vmem:[%s474 + $0xf1] sm:$0xff]
      %v1399 = vld [vmem:[%s474 + $0xf9] sm:$0xff]
      %v1400 = vld [vmem:[%s474 + $0x109] sm:$0xff]
      %v1401 = vld [vmem:[%s474 + $0x111] sm:$0xff]
      %v1402 = vld [vmem:[%s474 + $0x121] sm:$0xff]
      %v1403 = vld [vmem:[%s474 + $0x129] sm:$0xff]
      %v1404 = vld [vmem:[%s474 + $0x139] sm:$0xff]
      %v1405 = vld [vmem:[%s474 + $0x141] sm:$0xff]
      %v1406 = vld [vmem:[%s474 + $0x151] sm:$0xff]
      %v1407 = vld [vmem:[%s474 + $0x159] sm:$0xff]
      %v1408 = vld [vmem:[%s474 + $0x169] sm:$0xff]
      %v1409 = vld [vmem:[%s474 + $0x171] sm:$0xff]
      %v1410 = vpack.c.bf16 %v1379, %v1378
      %v1411 = vpack.c.bf16 %v1381, %v1380
      %v1412 = vpack.c.bf16 %v1383, %v1382
      %v1413 = vpack.c.bf16 %v1385, %v1384
      %v1414 = vpack.c.bf16 %v1387, %v1386
      %v1415 = vpack.c.bf16 %v1389, %v1388
      %v1416 = vpack.c.bf16 %v1391, %v1390
      %v1417 = vpack.c.bf16 %v1393, %v1392
      %v1418 = vpack.c.bf16 %v1395, %v1394
      %v1419 = vpack.c.bf16 %v1397, %v1396
      %v1420 = vpack.c.bf16 %v1399, %v1398
      %v1421 = vpack.c.bf16 %v1401, %v1400
      %v1422 = vpack.c.bf16 %v1403, %v1402
      %v1423 = vpack.c.bf16 %v1405, %v1404
      %v1424 = vpack.c.bf16 %v1407, %v1406
      %v1425 = vpack.c.bf16 %v1409, %v1408
      %s1426 = scalar_lea.vmem %s3, 256
      %v1427 = vld [vmem:[%s1426] sm:$0xf]
      %v1428 = vld [vmem:[%s1426 + $0x4] sm:$0xf]
      %v1429 = vld [vmem:[%s1426 + $0x8] sm:$0xf]
      %v1430 = vld [vmem:[%s1426 + $0xc] sm:$0xf]
      %v1431 = vld [vmem:[%s1426 + $0x10] sm:$0xf]
      %v1432 = vld [vmem:[%s1426 + $0x14] sm:$0xf]
      %v1433 = vld [vmem:[%s1426 + $0x18] sm:$0xf]
      %v1434 = vld [vmem:[%s1426 + $0x1c] sm:$0xf]
      %v1435 = vld [vmem:[%s1426 + $0x20] sm:$0xf]
      %v1436 = vld [vmem:[%s1426 + $0x24] sm:$0xf]
      %v1437 = vld [vmem:[%s1426 + $0x28] sm:$0xf]
      %v1438 = vld [vmem:[%s1426 + $0x2c] sm:$0xf]
      %v1439 = vld [vmem:[%s1426 + $0x30] sm:$0xf]
      %v1440 = vld [vmem:[%s1426 + $0x34] sm:$0xf]
      %v1441 = vld [vmem:[%s1426 + $0x38] sm:$0xf]
      %v1442 = vld [vmem:[%s1426 + $0x3c] sm:$0xf]
      %v1459 = vunpack.c.l.b16 %v1427
      %v1460 = vunpack.c.l.b16 %v1428
      %v1461 = vunpack.c.l.b16 %v1429
      %v1462 = vunpack.c.l.b16 %v1430
      %v1463 = vunpack.c.l.b16 %v1431
      %v1464 = vunpack.c.l.b16 %v1432
      %v1465 = vunpack.c.l.b16 %v1433
      %v1466 = vunpack.c.l.b16 %v1434
      %v1467 = vunpack.c.l.b16 %v1435
      %v1468 = vunpack.c.l.b16 %v1436
      %v1469 = vunpack.c.l.b16 %v1437
      %v1470 = vunpack.c.l.b16 %v1438
      %v1471 = vunpack.c.l.b16 %v1439
      %v1472 = vunpack.c.l.b16 %v1440
      %v1473 = vunpack.c.l.b16 %v1441
      %v1474 = vunpack.c.l.b16 %v1442
      %v1475 = vpack.c.b16 %v1460, %v1459
      %v1476 = vpack.c.b16 %v1462, %v1461
      %v1477 = vpack.c.b16 %v1464, %v1463
      %v1478 = vpack.c.b16 %v1466, %v1465
      %v1479 = vpack.c.b16 %v1468, %v1467
      %v1480 = vpack.c.b16 %v1470, %v1469
      %v1481 = vpack.c.b16 %v1472, %v1471
      %v1482 = vpack.c.b16 %v1474, %v1473
      %1491 = vmatpush.bf16.msra.mxu0 %v1482
      %1492 = vmatpush.bf16.msra.mxu0 %v1481
      %1493 = vmatpush.bf16.msra.mxu0 %v1480
      %1494 = vmatpush.bf16.msra.mxu0 %v1479
      %1495 = vmatpush.bf16.msra.mxu0 %v1478
      %1496 = vmatpush.bf16.msra.mxu0 %v1477
      %1497 = vmatpush.bf16.msra.mxu0 %v1476
      %1498 = vmatpush.bf16.msra.mxu0 %v1475
      %1499 = vmatmul.bf16.gmra.mxu0 %v1410
      %v1500 = vpop.f32.mrf.mxu0
      %v1501 = vadd.f32 0.0, %v1500
      %v1502 = vpop.f32.mrf.mxu0
      %v1503 = vadd.f32 0.0, %v1502
      %1504 = vmatmul.bf16.gmra.mxu0 %v1411
      %v1505 = vpop.f32.mrf.mxu0
      %v1506 = vadd.f32 0.0, %v1505
      %v1507 = vpop.f32.mrf.mxu0
      %v1508 = vadd.f32 0.0, %v1507
      %1509 = vmatmul.bf16.gmra.mxu0 %v1412
      %v1510 = vpop.f32.mrf.mxu0
      %v1511 = vadd.f32 0.0, %v1510
      %v1512 = vpop.f32.mrf.mxu0
      %v1513 = vadd.f32 0.0, %v1512
      %1514 = vmatmul.bf16.gmra.mxu0 %v1413
      %v1515 = vpop.f32.mrf.mxu0
      %v1516 = vadd.f32 0.0, %v1515
      %v1517 = vpop.f32.mrf.mxu0
      %v1518 = vadd.f32 0.0, %v1517
      %1519 = vmatmul.bf16.gmra.mxu0 %v1414
      %v1520 = vpop.f32.mrf.mxu0
      %v1521 = vadd.f32 0.0, %v1520
      %v1522 = vpop.f32.mrf.mxu0
      %v1523 = vadd.f32 0.0, %v1522
      %1524 = vmatmul.bf16.gmra.mxu0 %v1415
      %v1525 = vpop.f32.mrf.mxu0
      %v1526 = vadd.f32 0.0, %v1525
      %v1527 = vpop.f32.mrf.mxu0
      %v1528 = vadd.f32 0.0, %v1527
      %1529 = vmatmul.bf16.gmra.mxu0 %v1416
      %v1530 = vpop.f32.mrf.mxu0
      %v1531 = vadd.f32 0.0, %v1530
      %v1532 = vpop.f32.mrf.mxu0
      %v1533 = vadd.f32 0.0, %v1532
      %1534 = vmatmul.bf16.gmra.mxu0 %v1417
      %v1535 = vpop.f32.mrf.mxu0
      %v1536 = vadd.f32 0.0, %v1535
      %v1537 = vpop.f32.mrf.mxu0
      %v1538 = vadd.f32 0.0, %v1537
      %1539 = vmatmul.bf16.gmra.mxu0 %v1418
      %v1540 = vpop.f32.mrf.mxu0
      %v1541 = vadd.f32 0.0, %v1540
      %v1542 = vpop.f32.mrf.mxu0
      %v1543 = vadd.f32 0.0, %v1542
      %1544 = vmatmul.bf16.gmra.mxu0 %v1419
      %v1545 = vpop.f32.mrf.mxu0
      %v1546 = vadd.f32 0.0, %v1545
      %v1547 = vpop.f32.mrf.mxu0
      %v1548 = vadd.f32 0.0, %v1547
      %1549 = vmatmul.bf16.gmra.mxu0 %v1420
      %v1550 = vpop.f32.mrf.mxu0
      %v1551 = vadd.f32 0.0, %v1550
      %v1552 = vpop.f32.mrf.mxu0
      %v1553 = vadd.f32 0.0, %v1552
      %1554 = vmatmul.bf16.gmra.mxu0 %v1421
      %v1555 = vpop.f32.mrf.mxu0
      %v1556 = vadd.f32 0.0, %v1555
      %v1557 = vpop.f32.mrf.mxu0
      %v1558 = vadd.f32 0.0, %v1557
      %1559 = vmatmul.bf16.gmra.mxu0 %v1422
      %v1560 = vpop.f32.mrf.mxu0
      %v1561 = vadd.f32 0.0, %v1560
      %v1562 = vpop.f32.mrf.mxu0
      %v1563 = vadd.f32 0.0, %v1562
      %1564 = vmatmul.bf16.gmra.mxu0 %v1423
      %v1565 = vpop.f32.mrf.mxu0
      %v1566 = vadd.f32 0.0, %v1565
      %v1567 = vpop.f32.mrf.mxu0
      %v1568 = vadd.f32 0.0, %v1567
      %1569 = vmatmul.bf16.gmra.mxu0 %v1424
      %v1570 = vpop.f32.mrf.mxu0
      %v1571 = vadd.f32 0.0, %v1570
      %v1572 = vpop.f32.mrf.mxu0
      %v1573 = vadd.f32 0.0, %v1572
      %1574 = vmatmul.bf16.gmra.mxu0 %v1425
      %v1575 = vpop.f32.mrf.mxu0
      %v1576 = vadd.f32 0.0, %v1575
      %v1577 = vpop.f32.mrf.mxu0
      %v1578 = vadd.f32 0.0, %v1577
      %1579 = vdwg.mxu0
      %v1580 = vadd.f32 %v1346, %v1501
      %v1581 = vadd.f32 %v1347, %v1503
      %v1582 = vadd.f32 %v1348, %v1506
      %v1583 = vadd.f32 %v1349, %v1508
      %v1584 = vadd.f32 %v1350, %v1511
      %v1585 = vadd.f32 %v1351, %v1513
      %v1586 = vadd.f32 %v1352, %v1516
      %v1587 = vadd.f32 %v1353, %v1518
      %v1588 = vadd.f32 %v1354, %v1521
      %v1589 = vadd.f32 %v1355, %v1523
      %v1590 = vadd.f32 %v1356, %v1526
      %v1591 = vadd.f32 %v1357, %v1528
      %v1592 = vadd.f32 %v1358, %v1531
      %v1593 = vadd.f32 %v1359, %v1533
      %v1594 = vadd.f32 %v1360, %v1536
      %v1595 = vadd.f32 %v1361, %v1538
      %v1596 = vadd.f32 %v1362, %v1541
      %v1597 = vadd.f32 %v1363, %v1543
      %v1598 = vadd.f32 %v1364, %v1546
      %v1599 = vadd.f32 %v1365, %v1548
      %v1600 = vadd.f32 %v1366, %v1551
      %v1601 = vadd.f32 %v1367, %v1553
      %v1602 = vadd.f32 %v1368, %v1556
      %v1603 = vadd.f32 %v1369, %v1558
      %v1604 = vadd.f32 %v1370, %v1561
      %v1605 = vadd.f32 %v1371, %v1563
      %v1606 = vadd.f32 %v1372, %v1566
      %v1607 = vadd.f32 %v1373, %v1568
      %v1608 = vadd.f32 %v1374, %v1571
      %v1609 = vadd.f32 %v1375, %v1573
      %v1610 = vadd.f32 %v1376, %v1576
      %v1611 = vadd.f32 %v1377, %v1578
      %v1612 = vld [vmem:[%s474 + $0x2] sm:$0xff]
      %v1613 = vld [vmem:[%s474 + $0xa] sm:$0xff]
      %v1614 = vld [vmem:[%s474 + $0x1a] sm:$0xff]
      %v1615 = vld [vmem:[%s474 + $0x22] sm:$0xff]
      %v1616 = vld [vmem:[%s474 + $0x32] sm:$0xff]
      %v1617 = vld [vmem:[%s474 + $0x3a] sm:$0xff]
      %v1618 = vld [vmem:[%s474 + $0x4a] sm:$0xff]
      %v1619 = vld [vmem:[%s474 + $0x52] sm:$0xff]
      %v1620 = vld [vmem:[%s474 + $0x62] sm:$0xff]
      %v1621 = vld [vmem:[%s474 + $0x6a] sm:$0xff]
      %v1622 = vld [vmem:[%s474 + $0x7a] sm:$0xff]
      %v1623 = vld [vmem:[%s474 + $0x82] sm:$0xff]
      %v1624 = vld [vmem:[%s474 + $0x92] sm:$0xff]
      %v1625 = vld [vmem:[%s474 + $0x9a] sm:$0xff]
      %v1626 = vld [vmem:[%s474 + $0xaa] sm:$0xff]
      %v1627 = vld [vmem:[%s474 + $0xb2] sm:$0xff]
      %v1628 = vld [vmem:[%s474 + $0xc2] sm:$0xff]
      %v1629 = vld [vmem:[%s474 + $0xca] sm:$0xff]
      %v1630 = vld [vmem:[%s474 + $0xda] sm:$0xff]
      %v1631 = vld [vmem:[%s474 + $0xe2] sm:$0xff]
      %v1632 = vld [vmem:[%s474 + $0xf2] sm:$0xff]
      %v1633 = vld [vmem:[%s474 + $0xfa] sm:$0xff]
      %v1634 = vld [vmem:[%s474 + $0x10a] sm:$0xff]
      %v1635 = vld [vmem:[%s474 + $0x112] sm:$0xff]
      %v1636 = vld [vmem:[%s474 + $0x122] sm:$0xff]
      %v1637 = vld [vmem:[%s474 + $0x12a] sm:$0xff]
      %v1638 = vld [vmem:[%s474 + $0x13a] sm:$0xff]
      %v1639 = vld [vmem:[%s474 + $0x142] sm:$0xff]
      %v1640 = vld [vmem:[%s474 + $0x152] sm:$0xff]
      %v1641 = vld [vmem:[%s474 + $0x15a] sm:$0xff]
      %v1642 = vld [vmem:[%s474 + $0x16a] sm:$0xff]
      %v1643 = vld [vmem:[%s474 + $0x172] sm:$0xff]
      %v1644 = vpack.c.bf16 %v1613, %v1612
      %v1645 = vpack.c.bf16 %v1615, %v1614
      %v1646 = vpack.c.bf16 %v1617, %v1616
      %v1647 = vpack.c.bf16 %v1619, %v1618
      %v1648 = vpack.c.bf16 %v1621, %v1620
      %v1649 = vpack.c.bf16 %v1623, %v1622
      %v1650 = vpack.c.bf16 %v1625, %v1624
      %v1651 = vpack.c.bf16 %v1627, %v1626
      %v1652 = vpack.c.bf16 %v1629, %v1628
      %v1653 = vpack.c.bf16 %v1631, %v1630
      %v1654 = vpack.c.bf16 %v1633, %v1632
      %v1655 = vpack.c.bf16 %v1635, %v1634
      %v1656 = vpack.c.bf16 %v1637, %v1636
      %v1657 = vpack.c.bf16 %v1639, %v1638
      %v1658 = vpack.c.bf16 %v1641, %v1640
      %v1659 = vpack.c.bf16 %v1643, %v1642
      %s1660 = scalar_lea.vmem %s3, 320
      %v1661 = vld [vmem:[%s1660] sm:$0xf]
      %v1662 = vld [vmem:[%s1660 + $0x4] sm:$0xf]
      %v1663 = vld [vmem:[%s1660 + $0x8] sm:$0xf]
      %v1664 = vld [vmem:[%s1660 + $0xc] sm:$0xf]
      %v1665 = vld [vmem:[%s1660 + $0x10] sm:$0xf]
      %v1666 = vld [vmem:[%s1660 + $0x14] sm:$0xf]
      %v1667 = vld [vmem:[%s1660 + $0x18] sm:$0xf]
      %v1668 = vld [vmem:[%s1660 + $0x1c] sm:$0xf]
      %v1669 = vld [vmem:[%s1660 + $0x20] sm:$0xf]
      %v1670 = vld [vmem:[%s1660 + $0x24] sm:$0xf]
      %v1671 = vld [vmem:[%s1660 + $0x28] sm:$0xf]
      %v1672 = vld [vmem:[%s1660 + $0x2c] sm:$0xf]
      %v1673 = vld [vmem:[%s1660 + $0x30] sm:$0xf]
      %v1674 = vld [vmem:[%s1660 + $0x34] sm:$0xf]
      %v1675 = vld [vmem:[%s1660 + $0x38] sm:$0xf]
      %v1676 = vld [vmem:[%s1660 + $0x3c] sm:$0xf]
      %v1693 = vunpack.c.l.b16 %v1661
      %v1694 = vunpack.c.l.b16 %v1662
      %v1695 = vunpack.c.l.b16 %v1663
      %v1696 = vunpack.c.l.b16 %v1664
      %v1697 = vunpack.c.l.b16 %v1665
      %v1698 = vunpack.c.l.b16 %v1666
      %v1699 = vunpack.c.l.b16 %v1667
      %v1700 = vunpack.c.l.b16 %v1668
      %v1701 = vunpack.c.l.b16 %v1669
      %v1702 = vunpack.c.l.b16 %v1670
      %v1703 = vunpack.c.l.b16 %v1671
      %v1704 = vunpack.c.l.b16 %v1672
      %v1705 = vunpack.c.l.b16 %v1673
      %v1706 = vunpack.c.l.b16 %v1674
      %v1707 = vunpack.c.l.b16 %v1675
      %v1708 = vunpack.c.l.b16 %v1676
      %v1709 = vpack.c.b16 %v1694, %v1693
      %v1710 = vpack.c.b16 %v1696, %v1695
      %v1711 = vpack.c.b16 %v1698, %v1697
      %v1712 = vpack.c.b16 %v1700, %v1699
      %v1713 = vpack.c.b16 %v1702, %v1701
      %v1714 = vpack.c.b16 %v1704, %v1703
      %v1715 = vpack.c.b16 %v1706, %v1705
      %v1716 = vpack.c.b16 %v1708, %v1707
      %1725 = vmatpush.bf16.msra.mxu0 %v1716
      %1726 = vmatpush.bf16.msra.mxu0 %v1715
      %1727 = vmatpush.bf16.msra.mxu0 %v1714
      %1728 = vmatpush.bf16.msra.mxu0 %v1713
      %1729 = vmatpush.bf16.msra.mxu0 %v1712
      %1730 = vmatpush.bf16.msra.mxu0 %v1711
      %1731 = vmatpush.bf16.msra.mxu0 %v1710
      %1732 = vmatpush.bf16.msra.mxu0 %v1709
      %1733 = vmatmul.bf16.gmra.mxu0 %v1644
      %v1734 = vpop.f32.mrf.mxu0
      %v1735 = vadd.f32 0.0, %v1734
      %v1736 = vpop.f32.mrf.mxu0
      %v1737 = vadd.f32 0.0, %v1736
      %1738 = vmatmul.bf16.gmra.mxu0 %v1645
      %v1739 = vpop.f32.mrf.mxu0
      %v1740 = vadd.f32 0.0, %v1739
      %v1741 = vpop.f32.mrf.mxu0
      %v1742 = vadd.f32 0.0, %v1741
      %1743 = vmatmul.bf16.gmra.mxu0 %v1646
      %v1744 = vpop.f32.mrf.mxu0
      %v1745 = vadd.f32 0.0, %v1744
      %v1746 = vpop.f32.mrf.mxu0
      %v1747 = vadd.f32 0.0, %v1746
      %1748 = vmatmul.bf16.gmra.mxu0 %v1647
      %v1749 = vpop.f32.mrf.mxu0
      %v1750 = vadd.f32 0.0, %v1749
      %v1751 = vpop.f32.mrf.mxu0
      %v1752 = vadd.f32 0.0, %v1751
      %1753 = vmatmul.bf16.gmra.mxu0 %v1648
      %v1754 = vpop.f32.mrf.mxu0
      %v1755 = vadd.f32 0.0, %v1754
      %v1756 = vpop.f32.mrf.mxu0
      %v1757 = vadd.f32 0.0, %v1756
      %1758 = vmatmul.bf16.gmra.mxu0 %v1649
      %v1759 = vpop.f32.mrf.mxu0
      %v1760 = vadd.f32 0.0, %v1759
      %v1761 = vpop.f32.mrf.mxu0
      %v1762 = vadd.f32 0.0, %v1761
      %1763 = vmatmul.bf16.gmra.mxu0 %v1650
      %v1764 = vpop.f32.mrf.mxu0
      %v1765 = vadd.f32 0.0, %v1764
      %v1766 = vpop.f32.mrf.mxu0
      %v1767 = vadd.f32 0.0, %v1766
      %1768 = vmatmul.bf16.gmra.mxu0 %v1651
      %v1769 = vpop.f32.mrf.mxu0
      %v1770 = vadd.f32 0.0, %v1769
      %v1771 = vpop.f32.mrf.mxu0
      %v1772 = vadd.f32 0.0, %v1771
      %1773 = vmatmul.bf16.gmra.mxu0 %v1652
      %v1774 = vpop.f32.mrf.mxu0
      %v1775 = vadd.f32 0.0, %v1774
      %v1776 = vpop.f32.mrf.mxu0
      %v1777 = vadd.f32 0.0, %v1776
      %1778 = vmatmul.bf16.gmra.mxu0 %v1653
      %v1779 = vpop.f32.mrf.mxu0
      %v1780 = vadd.f32 0.0, %v1779
      %v1781 = vpop.f32.mrf.mxu0
      %v1782 = vadd.f32 0.0, %v1781
      %1783 = vmatmul.bf16.gmra.mxu0 %v1654
      %v1784 = vpop.f32.mrf.mxu0
      %v1785 = vadd.f32 0.0, %v1784
      %v1786 = vpop.f32.mrf.mxu0
      %v1787 = vadd.f32 0.0, %v1786
      %1788 = vmatmul.bf16.gmra.mxu0 %v1655
      %v1789 = vpop.f32.mrf.mxu0
      %v1790 = vadd.f32 0.0, %v1789
      %v1791 = vpop.f32.mrf.mxu0
      %v1792 = vadd.f32 0.0, %v1791
      %1793 = vmatmul.bf16.gmra.mxu0 %v1656
      %v1794 = vpop.f32.mrf.mxu0
      %v1795 = vadd.f32 0.0, %v1794
      %v1796 = vpop.f32.mrf.mxu0
      %v1797 = vadd.f32 0.0, %v1796
      %1798 = vmatmul.bf16.gmra.mxu0 %v1657
      %v1799 = vpop.f32.mrf.mxu0
      %v1800 = vadd.f32 0.0, %v1799
      %v1801 = vpop.f32.mrf.mxu0
      %v1802 = vadd.f32 0.0, %v1801
      %1803 = vmatmul.bf16.gmra.mxu0 %v1658
      %v1804 = vpop.f32.mrf.mxu0
      %v1805 = vadd.f32 0.0, %v1804
      %v1806 = vpop.f32.mrf.mxu0
      %v1807 = vadd.f32 0.0, %v1806
      %1808 = vmatmul.bf16.gmra.mxu0 %v1659
      %v1809 = vpop.f32.mrf.mxu0
      %v1810 = vadd.f32 0.0, %v1809
      %v1811 = vpop.f32.mrf.mxu0
      %v1812 = vadd.f32 0.0, %v1811
      %1813 = vdwg.mxu0
      %v1814 = vadd.f32 %v1580, %v1735
      %v1815 = vadd.f32 %v1581, %v1737
      %v1816 = vadd.f32 %v1582, %v1740
      %v1817 = vadd.f32 %v1583, %v1742
      %v1818 = vadd.f32 %v1584, %v1745
      %v1819 = vadd.f32 %v1585, %v1747
      %v1820 = vadd.f32 %v1586, %v1750
      %v1821 = vadd.f32 %v1587, %v1752
      %v1822 = vadd.f32 %v1588, %v1755
      %v1823 = vadd.f32 %v1589, %v1757
      %v1824 = vadd.f32 %v1590, %v1760
      %v1825 = vadd.f32 %v1591, %v1762
      %v1826 = vadd.f32 %v1592, %v1765
      %v1827 = vadd.f32 %v1593, %v1767
      %v1828 = vadd.f32 %v1594, %v1770
      %v1829 = vadd.f32 %v1595, %v1772
      %v1830 = vadd.f32 %v1596, %v1775
      %v1831 = vadd.f32 %v1597, %v1777
      %v1832 = vadd.f32 %v1598, %v1780
      %v1833 = vadd.f32 %v1599, %v1782
      %v1834 = vadd.f32 %v1600, %v1785
      %v1835 = vadd.f32 %v1601, %v1787
      %v1836 = vadd.f32 %v1602, %v1790
      %v1837 = vadd.f32 %v1603, %v1792
      %v1838 = vadd.f32 %v1604, %v1795
      %v1839 = vadd.f32 %v1605, %v1797
      %v1840 = vadd.f32 %v1606, %v1800
      %v1841 = vadd.f32 %v1607, %v1802
      %v1842 = vadd.f32 %v1608, %v1805
      %v1843 = vadd.f32 %v1609, %v1807
      %v1844 = vadd.f32 %v1610, %v1810
      %v1845 = vadd.f32 %v1611, %v1812
      %s1846 = scalar_lea.vmem [#allocation2], 48
      %v1847 = vld [vmem:[%s1846] sm:$0xff]
      %v1848 = vld [vmem:[%s1846 + $0x8] sm:$0xff]
      %v1849 = vld [vmem:[%s1846 + $0x18] sm:$0xff]
      %v1850 = vld [vmem:[%s1846 + $0x20] sm:$0xff]
      %v1851 = vld [vmem:[%s1846 + $0x30] sm:$0xff]
      %v1852 = vld [vmem:[%s1846 + $0x38] sm:$0xff]
      %v1853 = vld [vmem:[%s1846 + $0x48] sm:$0xff]
      %v1854 = vld [vmem:[%s1846 + $0x50] sm:$0xff]
      %v1855 = vld [vmem:[%s1846 + $0x60] sm:$0xff]
      %v1856 = vld [vmem:[%s1846 + $0x68] sm:$0xff]
      %v1857 = vld [vmem:[%s1846 + $0x78] sm:$0xff]
      %v1858 = vld [vmem:[%s1846 + $0x80] sm:$0xff]
      %v1859 = vld [vmem:[%s1846 + $0x90] sm:$0xff]
      %v1860 = vld [vmem:[%s1846 + $0x98] sm:$0xff]
      %v1861 = vld [vmem:[%s1846 + $0xa8] sm:$0xff]
      %v1862 = vld [vmem:[%s1846 + $0xb0] sm:$0xff]
      %v1863 = vld [vmem:[%s1846 + $0xc0] sm:$0xff]
      %v1864 = vld [vmem:[%s1846 + $0xc8] sm:$0xff]
      %v1865 = vld [vmem:[%s1846 + $0xd8] sm:$0xff]
      %v1866 = vld [vmem:[%s1846 + $0xe0] sm:$0xff]
      %v1867 = vld [vmem:[%s1846 + $0xf0] sm:$0xff]
      %v1868 = vld [vmem:[%s1846 + $0xf8] sm:$0xff]
      %v1869 = vld [vmem:[%s1846 + $0x108] sm:$0xff]
      %v1870 = vld [vmem:[%s1846 + $0x110] sm:$0xff]
      %v1871 = vld [vmem:[%s1846 + $0x120] sm:$0xff]
      %v1872 = vld [vmem:[%s1846 + $0x128] sm:$0xff]
      %v1873 = vld [vmem:[%s1846 + $0x138] sm:$0xff]
      %v1874 = vld [vmem:[%s1846 + $0x140] sm:$0xff]
      %v1875 = vld [vmem:[%s1846 + $0x150] sm:$0xff]
      %v1876 = vld [vmem:[%s1846 + $0x158] sm:$0xff]
      %v1877 = vld [vmem:[%s1846 + $0x168] sm:$0xff]
      %v1878 = vld [vmem:[%s1846 + $0x170] sm:$0xff]
      %v1879 = vpack.c.bf16 %v1848, %v1847
      %v1880 = vpack.c.bf16 %v1850, %v1849
      %v1881 = vpack.c.bf16 %v1852, %v1851
      %v1882 = vpack.c.bf16 %v1854, %v1853
      %v1883 = vpack.c.bf16 %v1856, %v1855
      %v1884 = vpack.c.bf16 %v1858, %v1857
      %v1885 = vpack.c.bf16 %v1860, %v1859
      %v1886 = vpack.c.bf16 %v1862, %v1861
      %v1887 = vpack.c.bf16 %v1864, %v1863
      %v1888 = vpack.c.bf16 %v1866, %v1865
      %v1889 = vpack.c.bf16 %v1868, %v1867
      %v1890 = vpack.c.bf16 %v1870, %v1869
      %v1891 = vpack.c.bf16 %v1872, %v1871
      %v1892 = vpack.c.bf16 %v1874, %v1873
      %v1893 = vpack.c.bf16 %v1876, %v1875
      %v1894 = vpack.c.bf16 %v1878, %v1877
      %s1895 = scalar_lea.vmem %s3, 384
      %v1896 = vld [vmem:[%s1895] sm:$0xf]
      %v1897 = vld [vmem:[%s1895 + $0x4] sm:$0xf]
      %v1898 = vld [vmem:[%s1895 + $0x8] sm:$0xf]
      %v1899 = vld [vmem:[%s1895 + $0xc] sm:$0xf]
      %v1900 = vld [vmem:[%s1895 + $0x10] sm:$0xf]
      %v1901 = vld [vmem:[%s1895 + $0x14] sm:$0xf]
      %v1902 = vld [vmem:[%s1895 + $0x18] sm:$0xf]
      %v1903 = vld [vmem:[%s1895 + $0x1c] sm:$0xf]
      %v1904 = vld [vmem:[%s1895 + $0x20] sm:$0xf]
      %v1905 = vld [vmem:[%s1895 + $0x24] sm:$0xf]
      %v1906 = vld [vmem:[%s1895 + $0x28] sm:$0xf]
      %v1907 = vld [vmem:[%s1895 + $0x2c] sm:$0xf]
      %v1908 = vld [vmem:[%s1895 + $0x30] sm:$0xf]
      %v1909 = vld [vmem:[%s1895 + $0x34] sm:$0xf]
      %v1910 = vld [vmem:[%s1895 + $0x38] sm:$0xf]
      %v1911 = vld [vmem:[%s1895 + $0x3c] sm:$0xf]
      %v1928 = vunpack.c.l.b16 %v1896
      %v1929 = vunpack.c.l.b16 %v1897
      %v1930 = vunpack.c.l.b16 %v1898
      %v1931 = vunpack.c.l.b16 %v1899
      %v1932 = vunpack.c.l.b16 %v1900
      %v1933 = vunpack.c.l.b16 %v1901
      %v1934 = vunpack.c.l.b16 %v1902
      %v1935 = vunpack.c.l.b16 %v1903
      %v1936 = vunpack.c.l.b16 %v1904
      %v1937 = vunpack.c.l.b16 %v1905
      %v1938 = vunpack.c.l.b16 %v1906
      %v1939 = vunpack.c.l.b16 %v1907
      %v1940 = vunpack.c.l.b16 %v1908
      %v1941 = vunpack.c.l.b16 %v1909
      %v1942 = vunpack.c.l.b16 %v1910
      %v1943 = vunpack.c.l.b16 %v1911
      %v1944 = vpack.c.b16 %v1929, %v1928
      %v1945 = vpack.c.b16 %v1931, %v1930
      %v1946 = vpack.c.b16 %v1933, %v1932
      %v1947 = vpack.c.b16 %v1935, %v1934
      %v1948 = vpack.c.b16 %v1937, %v1936
      %v1949 = vpack.c.b16 %v1939, %v1938
      %v1950 = vpack.c.b16 %v1941, %v1940
      %v1951 = vpack.c.b16 %v1943, %v1942
      %1960 = vmatpush.bf16.msra.mxu0 %v1951
      %1961 = vmatpush.bf16.msra.mxu0 %v1950
      %1962 = vmatpush.bf16.msra.mxu0 %v1949
      %1963 = vmatpush.bf16.msra.mxu0 %v1948
      %1964 = vmatpush.bf16.msra.mxu0 %v1947
      %1965 = vmatpush.bf16.msra.mxu0 %v1946
      %1966 = vmatpush.bf16.msra.mxu0 %v1945
      %1967 = vmatpush.bf16.msra.mxu0 %v1944
      %1968 = vmatmul.bf16.gmra.mxu0 %v1879
      %v1969 = vpop.f32.mrf.mxu0
      %v1970 = vadd.f32 0.0, %v1969
      %v1971 = vpop.f32.mrf.mxu0
      %v1972 = vadd.f32 0.0, %v1971
      %1973 = vmatmul.bf16.gmra.mxu0 %v1880
      %v1974 = vpop.f32.mrf.mxu0
      %v1975 = vadd.f32 0.0, %v1974
      %v1976 = vpop.f32.mrf.mxu0
      %v1977 = vadd.f32 0.0, %v1976
      %1978 = vmatmul.bf16.gmra.mxu0 %v1881
      %v1979 = vpop.f32.mrf.mxu0
      %v1980 = vadd.f32 0.0, %v1979
      %v1981 = vpop.f32.mrf.mxu0
      %v1982 = vadd.f32 0.0, %v1981
      %1983 = vmatmul.bf16.gmra.mxu0 %v1882
      %v1984 = vpop.f32.mrf.mxu0
      %v1985 = vadd.f32 0.0, %v1984
      %v1986 = vpop.f32.mrf.mxu0
      %v1987 = vadd.f32 0.0, %v1986
      %1988 = vmatmul.bf16.gmra.mxu0 %v1883
      %v1989 = vpop.f32.mrf.mxu0
      %v1990 = vadd.f32 0.0, %v1989
      %v1991 = vpop.f32.mrf.mxu0
      %v1992 = vadd.f32 0.0, %v1991
      %1993 = vmatmul.bf16.gmra.mxu0 %v1884
      %v1994 = vpop.f32.mrf.mxu0
      %v1995 = vadd.f32 0.0, %v1994
      %v1996 = vpop.f32.mrf.mxu0
      %v1997 = vadd.f32 0.0, %v1996
      %1998 = vmatmul.bf16.gmra.mxu0 %v1885
      %v1999 = vpop.f32.mrf.mxu0
      %v2000 = vadd.f32 0.0, %v1999
      %v2001 = vpop.f32.mrf.mxu0
      %v2002 = vadd.f32 0.0, %v2001
      %2003 = vmatmul.bf16.gmra.mxu0 %v1886
      %v2004 = vpop.f32.mrf.mxu0
      %v2005 = vadd.f32 0.0, %v2004
      %v2006 = vpop.f32.mrf.mxu0
      %v2007 = vadd.f32 0.0, %v2006
      %2008 = vmatmul.bf16.gmra.mxu0 %v1887
      %v2009 = vpop.f32.mrf.mxu0
      %v2010 = vadd.f32 0.0, %v2009
      %v2011 = vpop.f32.mrf.mxu0
      %v2012 = vadd.f32 0.0, %v2011
      %2013 = vmatmul.bf16.gmra.mxu0 %v1888
      %v2014 = vpop.f32.mrf.mxu0
      %v2015 = vadd.f32 0.0, %v2014
      %v2016 = vpop.f32.mrf.mxu0
      %v2017 = vadd.f32 0.0, %v2016
      %2018 = vmatmul.bf16.gmra.mxu0 %v1889
      %v2019 = vpop.f32.mrf.mxu0
      %v2020 = vadd.f32 0.0, %v2019
      %v2021 = vpop.f32.mrf.mxu0
      %v2022 = vadd.f32 0.0, %v2021
      %2023 = vmatmul.bf16.gmra.mxu0 %v1890
      %v2024 = vpop.f32.mrf.mxu0
      %v2025 = vadd.f32 0.0, %v2024
      %v2026 = vpop.f32.mrf.mxu0
      %v2027 = vadd.f32 0.0, %v2026
      %2028 = vmatmul.bf16.gmra.mxu0 %v1891
      %v2029 = vpop.f32.mrf.mxu0
      %v2030 = vadd.f32 0.0, %v2029
      %v2031 = vpop.f32.mrf.mxu0
      %v2032 = vadd.f32 0.0, %v2031
      %2033 = vmatmul.bf16.gmra.mxu0 %v1892
      %v2034 = vpop.f32.mrf.mxu0
      %v2035 = vadd.f32 0.0, %v2034
      %v2036 = vpop.f32.mrf.mxu0
      %v2037 = vadd.f32 0.0, %v2036
      %2038 = vmatmul.bf16.gmra.mxu0 %v1893
      %v2039 = vpop.f32.mrf.mxu0
      %v2040 = vadd.f32 0.0, %v2039
      %v2041 = vpop.f32.mrf.mxu0
      %v2042 = vadd.f32 0.0, %v2041
      %2043 = vmatmul.bf16.gmra.mxu0 %v1894
      %v2044 = vpop.f32.mrf.mxu0
      %v2045 = vadd.f32 0.0, %v2044
      %v2046 = vpop.f32.mrf.mxu0
      %v2047 = vadd.f32 0.0, %v2046
      %2048 = vdwg.mxu0
      %v2049 = vadd.f32 %v1814, %v1970
      %v2050 = vadd.f32 %v1815, %v1972
      %v2051 = vadd.f32 %v1816, %v1975
      %v2052 = vadd.f32 %v1817, %v1977
      %v2053 = vadd.f32 %v1818, %v1980
      %v2054 = vadd.f32 %v1819, %v1982
      %v2055 = vadd.f32 %v1820, %v1985
      %v2056 = vadd.f32 %v1821, %v1987
      %v2057 = vadd.f32 %v1822, %v1990
      %v2058 = vadd.f32 %v1823, %v1992
      %v2059 = vadd.f32 %v1824, %v1995
      %v2060 = vadd.f32 %v1825, %v1997
      %v2061 = vadd.f32 %v1826, %v2000
      %v2062 = vadd.f32 %v1827, %v2002
      %v2063 = vadd.f32 %v1828, %v2005
      %v2064 = vadd.f32 %v1829, %v2007
      %v2065 = vadd.f32 %v1830, %v2010
      %v2066 = vadd.f32 %v1831, %v2012
      %v2067 = vadd.f32 %v1832, %v2015
      %v2068 = vadd.f32 %v1833, %v2017
      %v2069 = vadd.f32 %v1834, %v2020
      %v2070 = vadd.f32 %v1835, %v2022
      %v2071 = vadd.f32 %v1836, %v2025
      %v2072 = vadd.f32 %v1837, %v2027
      %v2073 = vadd.f32 %v1838, %v2030
      %v2074 = vadd.f32 %v1839, %v2032
      %v2075 = vadd.f32 %v1840, %v2035
      %v2076 = vadd.f32 %v1841, %v2037
      %v2077 = vadd.f32 %v1842, %v2040
      %v2078 = vadd.f32 %v1843, %v2042
      %v2079 = vadd.f32 %v1844, %v2045
      %v2080 = vadd.f32 %v1845, %v2047
      %v2081 = vld [vmem:[%s1846 + $0x1] sm:$0xff]
      %v2082 = vld [vmem:[%s1846 + $0x9] sm:$0xff]
      %v2083 = vld [vmem:[%s1846 + $0x19] sm:$0xff]
      %v2084 = vld [vmem:[%s1846 + $0x21] sm:$0xff]
      %v2085 = vld [vmem:[%s1846 + $0x31] sm:$0xff]
      %v2086 = vld [vmem:[%s1846 + $0x39] sm:$0xff]
      %v2087 = vld [vmem:[%s1846 + $0x49] sm:$0xff]
      %v2088 = vld [vmem:[%s1846 + $0x51] sm:$0xff]
      %v2089 = vld [vmem:[%s1846 + $0x61] sm:$0xff]
      %v2090 = vld [vmem:[%s1846 + $0x69] sm:$0xff]
      %v2091 = vld [vmem:[%s1846 + $0x79] sm:$0xff]
      %v2092 = vld [vmem:[%s1846 + $0x81] sm:$0xff]
      %v2093 = vld [vmem:[%s1846 + $0x91] sm:$0xff]
      %v2094 = vld [vmem:[%s1846 + $0x99] sm:$0xff]
      %v2095 = vld [vmem:[%s1846 + $0xa9] sm:$0xff]
      %v2096 = vld [vmem:[%s1846 + $0xb1] sm:$0xff]
      %v2097 = vld [vmem:[%s1846 + $0xc1] sm:$0xff]
      %v2098 = vld [vmem:[%s1846 + $0xc9] sm:$0xff]
      %v2099 = vld [vmem:[%s1846 + $0xd9] sm:$0xff]
      %v2100 = vld [vmem:[%s1846 + $0xe1] sm:$0xff]
      %v2101 = vld [vmem:[%s1846 + $0xf1] sm:$0xff]
      %v2102 = vld [vmem:[%s1846 + $0xf9] sm:$0xff]
      %v2103 = vld [vmem:[%s1846 + $0x109] sm:$0xff]
      %v2104 = vld [vmem:[%s1846 + $0x111] sm:$0xff]
      %v2105 = vld [vmem:[%s1846 + $0x121] sm:$0xff]
      %v2106 = vld [vmem:[%s1846 + $0x129] sm:$0xff]
      %v2107 = vld [vmem:[%s1846 + $0x139] sm:$0xff]
      %v2108 = vld [vmem:[%s1846 + $0x141] sm:$0xff]
      %v2109 = vld [vmem:[%s1846 + $0x151] sm:$0xff]
      %v2110 = vld [vmem:[%s1846 + $0x159] sm:$0xff]
      %v2111 = vld [vmem:[%s1846 + $0x169] sm:$0xff]
      %v2112 = vld [vmem:[%s1846 + $0x171] sm:$0xff]
      %v2113 = vpack.c.bf16 %v2082, %v2081
      %v2114 = vpack.c.bf16 %v2084, %v2083
      %v2115 = vpack.c.bf16 %v2086, %v2085
      %v2116 = vpack.c.bf16 %v2088, %v2087
      %v2117 = vpack.c.bf16 %v2090, %v2089
      %v2118 = vpack.c.bf16 %v2092, %v2091
      %v2119 = vpack.c.bf16 %v2094, %v2093
      %v2120 = vpack.c.bf16 %v2096, %v2095
      %v2121 = vpack.c.bf16 %v2098, %v2097
      %v2122 = vpack.c.bf16 %v2100, %v2099
      %v2123 = vpack.c.bf16 %v2102, %v2101
      %v2124 = vpack.c.bf16 %v2104, %v2103
      %v2125 = vpack.c.bf16 %v2106, %v2105
      %v2126 = vpack.c.bf16 %v2108, %v2107
      %v2127 = vpack.c.bf16 %v2110, %v2109
      %v2128 = vpack.c.bf16 %v2112, %v2111
      %s2129 = scalar_lea.vmem %s3, 448
      %v2130 = vld [vmem:[%s2129] sm:$0xf]
      %v2131 = vld [vmem:[%s2129 + $0x4] sm:$0xf]
      %v2132 = vld [vmem:[%s2129 + $0x8] sm:$0xf]
      %v2133 = vld [vmem:[%s2129 + $0xc] sm:$0xf]
      %v2134 = vld [vmem:[%s2129 + $0x10] sm:$0xf]
      %v2135 = vld [vmem:[%s2129 + $0x14] sm:$0xf]
      %v2136 = vld [vmem:[%s2129 + $0x18] sm:$0xf]
      %v2137 = vld [vmem:[%s2129 + $0x1c] sm:$0xf]
      %v2138 = vld [vmem:[%s2129 + $0x20] sm:$0xf]
      %v2139 = vld [vmem:[%s2129 + $0x24] sm:$0xf]
      %v2140 = vld [vmem:[%s2129 + $0x28] sm:$0xf]
      %v2141 = vld [vmem:[%s2129 + $0x2c] sm:$0xf]
      %v2142 = vld [vmem:[%s2129 + $0x30] sm:$0xf]
      %v2143 = vld [vmem:[%s2129 + $0x34] sm:$0xf]
      %v2144 = vld [vmem:[%s2129 + $0x38] sm:$0xf]
      %v2145 = vld [vmem:[%s2129 + $0x3c] sm:$0xf]
      %v2162 = vunpack.c.l.b16 %v2130
      %v2163 = vunpack.c.l.b16 %v2131
      %v2164 = vunpack.c.l.b16 %v2132
      %v2165 = vunpack.c.l.b16 %v2133
      %v2166 = vunpack.c.l.b16 %v2134
      %v2167 = vunpack.c.l.b16 %v2135
      %v2168 = vunpack.c.l.b16 %v2136
      %v2169 = vunpack.c.l.b16 %v2137
      %v2170 = vunpack.c.l.b16 %v2138
      %v2171 = vunpack.c.l.b16 %v2139
      %v2172 = vunpack.c.l.b16 %v2140
      %v2173 = vunpack.c.l.b16 %v2141
      %v2174 = vunpack.c.l.b16 %v2142
      %v2175 = vunpack.c.l.b16 %v2143
      %v2176 = vunpack.c.l.b16 %v2144
      %v2177 = vunpack.c.l.b16 %v2145
      %v2178 = vpack.c.b16 %v2163, %v2162
      %v2179 = vpack.c.b16 %v2165, %v2164
      %v2180 = vpack.c.b16 %v2167, %v2166
      %v2181 = vpack.c.b16 %v2169, %v2168
      %v2182 = vpack.c.b16 %v2171, %v2170
      %v2183 = vpack.c.b16 %v2173, %v2172
      %v2184 = vpack.c.b16 %v2175, %v2174
      %v2185 = vpack.c.b16 %v2177, %v2176
      %2194 = vmatpush.bf16.msra.mxu0 %v2185
      %2195 = vmatpush.bf16.msra.mxu0 %v2184
      %2196 = vmatpush.bf16.msra.mxu0 %v2183
      %2197 = vmatpush.bf16.msra.mxu0 %v2182
      %2198 = vmatpush.bf16.msra.mxu0 %v2181
      %2199 = vmatpush.bf16.msra.mxu0 %v2180
      %2200 = vmatpush.bf16.msra.mxu0 %v2179
      %2201 = vmatpush.bf16.msra.mxu0 %v2178
      %2202 = vmatmul.bf16.gmra.mxu0 %v2113
      %v2203 = vpop.f32.mrf.mxu0
      %v2204 = vadd.f32 0.0, %v2203
      %v2205 = vpop.f32.mrf.mxu0
      %v2206 = vadd.f32 0.0, %v2205
      %2207 = vmatmul.bf16.gmra.mxu0 %v2114
      %v2208 = vpop.f32.mrf.mxu0
      %v2209 = vadd.f32 0.0, %v2208
      %v2210 = vpop.f32.mrf.mxu0
      %v2211 = vadd.f32 0.0, %v2210
      %2212 = vmatmul.bf16.gmra.mxu0 %v2115
      %v2213 = vpop.f32.mrf.mxu0
      %v2214 = vadd.f32 0.0, %v2213
      %v2215 = vpop.f32.mrf.mxu0
      %v2216 = vadd.f32 0.0, %v2215
      %2217 = vmatmul.bf16.gmra.mxu0 %v2116
      %v2218 = vpop.f32.mrf.mxu0
      %v2219 = vadd.f32 0.0, %v2218
      %v2220 = vpop.f32.mrf.mxu0
      %v2221 = vadd.f32 0.0, %v2220
      %2222 = vmatmul.bf16.gmra.mxu0 %v2117
      %v2223 = vpop.f32.mrf.mxu0
      %v2224 = vadd.f32 0.0, %v2223
      %v2225 = vpop.f32.mrf.mxu0
      %v2226 = vadd.f32 0.0, %v2225
      %2227 = vmatmul.bf16.gmra.mxu0 %v2118
      %v2228 = vpop.f32.mrf.mxu0
      %v2229 = vadd.f32 0.0, %v2228
      %v2230 = vpop.f32.mrf.mxu0
      %v2231 = vadd.f32 0.0, %v2230
      %2232 = vmatmul.bf16.gmra.mxu0 %v2119
      %v2233 = vpop.f32.mrf.mxu0
      %v2234 = vadd.f32 0.0, %v2233
      %v2235 = vpop.f32.mrf.mxu0
      %v2236 = vadd.f32 0.0, %v2235
      %2237 = vmatmul.bf16.gmra.mxu0 %v2120
      %v2238 = vpop.f32.mrf.mxu0
      %v2239 = vadd.f32 0.0, %v2238
      %v2240 = vpop.f32.mrf.mxu0
      %v2241 = vadd.f32 0.0, %v2240
      %2242 = vmatmul.bf16.gmra.mxu0 %v2121
      %v2243 = vpop.f32.mrf.mxu0
      %v2244 = vadd.f32 0.0, %v2243
      %v2245 = vpop.f32.mrf.mxu0
      %v2246 = vadd.f32 0.0, %v2245
      %2247 = vmatmul.bf16.gmra.mxu0 %v2122
      %v2248 = vpop.f32.mrf.mxu0
      %v2249 = vadd.f32 0.0, %v2248
      %v2250 = vpop.f32.mrf.mxu0
      %v2251 = vadd.f32 0.0, %v2250
      %2252 = vmatmul.bf16.gmra.mxu0 %v2123
      %v2253 = vpop.f32.mrf.mxu0
      %v2254 = vadd.f32 0.0, %v2253
      %v2255 = vpop.f32.mrf.mxu0
      %v2256 = vadd.f32 0.0, %v2255
      %2257 = vmatmul.bf16.gmra.mxu0 %v2124
      %v2258 = vpop.f32.mrf.mxu0
      %v2259 = vadd.f32 0.0, %v2258
      %v2260 = vpop.f32.mrf.mxu0
      %v2261 = vadd.f32 0.0, %v2260
      %2262 = vmatmul.bf16.gmra.mxu0 %v2125
      %v2263 = vpop.f32.mrf.mxu0
      %v2264 = vadd.f32 0.0, %v2263
      %v2265 = vpop.f32.mrf.mxu0
      %v2266 = vadd.f32 0.0, %v2265
      %2267 = vmatmul.bf16.gmra.mxu0 %v2126
      %v2268 = vpop.f32.mrf.mxu0
      %v2269 = vadd.f32 0.0, %v2268
      %v2270 = vpop.f32.mrf.mxu0
      %v2271 = vadd.f32 0.0, %v2270
      %2272 = vmatmul.bf16.gmra.mxu0 %v2127
      %v2273 = vpop.f32.mrf.mxu0
      %v2274 = vadd.f32 0.0, %v2273
      %v2275 = vpop.f32.mrf.mxu0
      %v2276 = vadd.f32 0.0, %v2275
      %2277 = vmatmul.bf16.gmra.mxu0 %v2128
      %v2278 = vpop.f32.mrf.mxu0
      %v2279 = vadd.f32 0.0, %v2278
      %v2280 = vpop.f32.mrf.mxu0
      %v2281 = vadd.f32 0.0, %v2280
      %2282 = vdwg.mxu0
      %v2283 = vadd.f32 %v2049, %v2204
      %v2284 = vadd.f32 %v2050, %v2206
      %v2285 = vadd.f32 %v2051, %v2209
      %v2286 = vadd.f32 %v2052, %v2211
      %v2287 = vadd.f32 %v2053, %v2214
      %v2288 = vadd.f32 %v2054, %v2216
      %v2289 = vadd.f32 %v2055, %v2219
      %v2290 = vadd.f32 %v2056, %v2221
      %v2291 = vadd.f32 %v2057, %v2224
      %v2292 = vadd.f32 %v2058, %v2226
      %v2293 = vadd.f32 %v2059, %v2229
      %v2294 = vadd.f32 %v2060, %v2231
      %v2295 = vadd.f32 %v2061, %v2234
      %v2296 = vadd.f32 %v2062, %v2236
      %v2297 = vadd.f32 %v2063, %v2239
      %v2298 = vadd.f32 %v2064, %v2241
      %v2299 = vadd.f32 %v2065, %v2244
      %v2300 = vadd.f32 %v2066, %v2246
      %v2301 = vadd.f32 %v2067, %v2249
      %v2302 = vadd.f32 %v2068, %v2251
      %v2303 = vadd.f32 %v2069, %v2254
      %v2304 = vadd.f32 %v2070, %v2256
      %v2305 = vadd.f32 %v2071, %v2259
      %v2306 = vadd.f32 %v2072, %v2261
      %v2307 = vadd.f32 %v2073, %v2264
      %v2308 = vadd.f32 %v2074, %v2266
      %v2309 = vadd.f32 %v2075, %v2269
      %v2310 = vadd.f32 %v2076, %v2271
      %v2311 = vadd.f32 %v2077, %v2274
      %v2312 = vadd.f32 %v2078, %v2276
      %v2313 = vadd.f32 %v2079, %v2279
      %v2314 = vadd.f32 %v2080, %v2281
      %v2315 = vld [vmem:[%s1846 + $0x2] sm:$0xff]
      %v2316 = vld [vmem:[%s1846 + $0xa] sm:$0xff]
      %v2317 = vld [vmem:[%s1846 + $0x1a] sm:$0xff]
      %v2318 = vld [vmem:[%s1846 + $0x22] sm:$0xff]
      %v2319 = vld [vmem:[%s1846 + $0x32] sm:$0xff]
      %v2320 = vld [vmem:[%s1846 + $0x3a] sm:$0xff]
      %v2321 = vld [vmem:[%s1846 + $0x4a] sm:$0xff]
      %v2322 = vld [vmem:[%s1846 + $0x52] sm:$0xff]
      %v2323 = vld [vmem:[%s1846 + $0x62] sm:$0xff]
      %v2324 = vld [vmem:[%s1846 + $0x6a] sm:$0xff]
      %v2325 = vld [vmem:[%s1846 + $0x7a] sm:$0xff]
      %v2326 = vld [vmem:[%s1846 + $0x82] sm:$0xff]
      %v2327 = vld [vmem:[%s1846 + $0x92] sm:$0xff]
      %v2328 = vld [vmem:[%s1846 + $0x9a] sm:$0xff]
      %v2329 = vld [vmem:[%s1846 + $0xaa] sm:$0xff]
      %v2330 = vld [vmem:[%s1846 + $0xb2] sm:$0xff]
      %v2331 = vld [vmem:[%s1846 + $0xc2] sm:$0xff]
      %v2332 = vld [vmem:[%s1846 + $0xca] sm:$0xff]
      %v2333 = vld [vmem:[%s1846 + $0xda] sm:$0xff]
      %v2334 = vld [vmem:[%s1846 + $0xe2] sm:$0xff]
      %v2335 = vld [vmem:[%s1846 + $0xf2] sm:$0xff]
      %v2336 = vld [vmem:[%s1846 + $0xfa] sm:$0xff]
      %v2337 = vld [vmem:[%s1846 + $0x10a] sm:$0xff]
      %v2338 = vld [vmem:[%s1846 + $0x112] sm:$0xff]
      %v2339 = vld [vmem:[%s1846 + $0x122] sm:$0xff]
      %v2340 = vld [vmem:[%s1846 + $0x12a] sm:$0xff]
      %v2341 = vld [vmem:[%s1846 + $0x13a] sm:$0xff]
      %v2342 = vld [vmem:[%s1846 + $0x142] sm:$0xff]
      %v2343 = vld [vmem:[%s1846 + $0x152] sm:$0xff]
      %v2344 = vld [vmem:[%s1846 + $0x15a] sm:$0xff]
      %v2345 = vld [vmem:[%s1846 + $0x16a] sm:$0xff]
      %v2346 = vld [vmem:[%s1846 + $0x172] sm:$0xff]
      %v2347 = vpack.c.bf16 %v2316, %v2315
      %v2348 = vpack.c.bf16 %v2318, %v2317
      %v2349 = vpack.c.bf16 %v2320, %v2319
      %v2350 = vpack.c.bf16 %v2322, %v2321
      %v2351 = vpack.c.bf16 %v2324, %v2323
      %v2352 = vpack.c.bf16 %v2326, %v2325
      %v2353 = vpack.c.bf16 %v2328, %v2327
      %v2354 = vpack.c.bf16 %v2330, %v2329
      %v2355 = vpack.c.bf16 %v2332, %v2331
      %v2356 = vpack.c.bf16 %v2334, %v2333
      %v2357 = vpack.c.bf16 %v2336, %v2335
      %v2358 = vpack.c.bf16 %v2338, %v2337
      %v2359 = vpack.c.bf16 %v2340, %v2339
      %v2360 = vpack.c.bf16 %v2342, %v2341
      %v2361 = vpack.c.bf16 %v2344, %v2343
      %v2362 = vpack.c.bf16 %v2346, %v2345
      %s2363 = scalar_lea.vmem %s3, 512
      %v2364 = vld [vmem:[%s2363] sm:$0xf]
      %v2365 = vld [vmem:[%s2363 + $0x4] sm:$0xf]
      %v2366 = vld [vmem:[%s2363 + $0x8] sm:$0xf]
      %v2367 = vld [vmem:[%s2363 + $0xc] sm:$0xf]
      %v2368 = vld [vmem:[%s2363 + $0x10] sm:$0xf]
      %v2369 = vld [vmem:[%s2363 + $0x14] sm:$0xf]
      %v2370 = vld [vmem:[%s2363 + $0x18] sm:$0xf]
      %v2371 = vld [vmem:[%s2363 + $0x1c] sm:$0xf]
      %v2372 = vld [vmem:[%s2363 + $0x20] sm:$0xf]
      %v2373 = vld [vmem:[%s2363 + $0x24] sm:$0xf]
      %v2374 = vld [vmem:[%s2363 + $0x28] sm:$0xf]
      %v2375 = vld [vmem:[%s2363 + $0x2c] sm:$0xf]
      %v2376 = vld [vmem:[%s2363 + $0x30] sm:$0xf]
      %v2377 = vld [vmem:[%s2363 + $0x34] sm:$0xf]
      %v2378 = vld [vmem:[%s2363 + $0x38] sm:$0xf]
      %v2379 = vld [vmem:[%s2363 + $0x3c] sm:$0xf]
      %v2396 = vunpack.c.l.b16 %v2364
      %v2397 = vunpack.c.l.b16 %v2365
      %v2398 = vunpack.c.l.b16 %v2366
      %v2399 = vunpack.c.l.b16 %v2367
      %v2400 = vunpack.c.l.b16 %v2368
      %v2401 = vunpack.c.l.b16 %v2369
      %v2402 = vunpack.c.l.b16 %v2370
      %v2403 = vunpack.c.l.b16 %v2371
      %v2404 = vunpack.c.l.b16 %v2372
      %v2405 = vunpack.c.l.b16 %v2373
      %v2406 = vunpack.c.l.b16 %v2374
      %v2407 = vunpack.c.l.b16 %v2375
      %v2408 = vunpack.c.l.b16 %v2376
      %v2409 = vunpack.c.l.b16 %v2377
      %v2410 = vunpack.c.l.b16 %v2378
      %v2411 = vunpack.c.l.b16 %v2379
      %v2412 = vpack.c.b16 %v2397, %v2396
      %v2413 = vpack.c.b16 %v2399, %v2398
      %v2414 = vpack.c.b16 %v2401, %v2400
      %v2415 = vpack.c.b16 %v2403, %v2402
      %v2416 = vpack.c.b16 %v2405, %v2404
      %v2417 = vpack.c.b16 %v2407, %v2406
      %v2418 = vpack.c.b16 %v2409, %v2408
      %v2419 = vpack.c.b16 %v2411, %v2410
      %2428 = vmatpush.bf16.msra.mxu0 %v2419
      %2429 = vmatpush.bf16.msra.mxu0 %v2418
      %2430 = vmatpush.bf16.msra.mxu0 %v2417
      %2431 = vmatpush.bf16.msra.mxu0 %v2416
      %2432 = vmatpush.bf16.msra.mxu0 %v2415
      %2433 = vmatpush.bf16.msra.mxu0 %v2414
      %2434 = vmatpush.bf16.msra.mxu0 %v2413
      %2435 = vmatpush.bf16.msra.mxu0 %v2412
      %2436 = vmatmul.bf16.gmra.mxu0 %v2347
      %v2437 = vpop.f32.mrf.mxu0
      %v2438 = vadd.f32 0.0, %v2437
      %v2439 = vpop.f32.mrf.mxu0
      %v2440 = vadd.f32 0.0, %v2439
      %2441 = vmatmul.bf16.gmra.mxu0 %v2348
      %v2442 = vpop.f32.mrf.mxu0
      %v2443 = vadd.f32 0.0, %v2442
      %v2444 = vpop.f32.mrf.mxu0
      %v2445 = vadd.f32 0.0, %v2444
      %2446 = vmatmul.bf16.gmra.mxu0 %v2349
      %v2447 = vpop.f32.mrf.mxu0
      %v2448 = vadd.f32 0.0, %v2447
      %v2449 = vpop.f32.mrf.mxu0
      %v2450 = vadd.f32 0.0, %v2449
      %2451 = vmatmul.bf16.gmra.mxu0 %v2350
      %v2452 = vpop.f32.mrf.mxu0
      %v2453 = vadd.f32 0.0, %v2452
      %v2454 = vpop.f32.mrf.mxu0
      %v2455 = vadd.f32 0.0, %v2454
      %2456 = vmatmul.bf16.gmra.mxu0 %v2351
      %v2457 = vpop.f32.mrf.mxu0
      %v2458 = vadd.f32 0.0, %v2457
      %v2459 = vpop.f32.mrf.mxu0
      %v2460 = vadd.f32 0.0, %v2459
      %2461 = vmatmul.bf16.gmra.mxu0 %v2352
      %v2462 = vpop.f32.mrf.mxu0
      %v2463 = vadd.f32 0.0, %v2462
      %v2464 = vpop.f32.mrf.mxu0
      %v2465 = vadd.f32 0.0, %v2464
      %2466 = vmatmul.bf16.gmra.mxu0 %v2353
      %v2467 = vpop.f32.mrf.mxu0
      %v2468 = vadd.f32 0.0, %v2467
      %v2469 = vpop.f32.mrf.mxu0
      %v2470 = vadd.f32 0.0, %v2469
      %2471 = vmatmul.bf16.gmra.mxu0 %v2354
      %v2472 = vpop.f32.mrf.mxu0
      %v2473 = vadd.f32 0.0, %v2472
      %v2474 = vpop.f32.mrf.mxu0
      %v2475 = vadd.f32 0.0, %v2474
      %2476 = vmatmul.bf16.gmra.mxu0 %v2355
      %v2477 = vpop.f32.mrf.mxu0
      %v2478 = vadd.f32 0.0, %v2477
      %v2479 = vpop.f32.mrf.mxu0
      %v2480 = vadd.f32 0.0, %v2479
      %2481 = vmatmul.bf16.gmra.mxu0 %v2356
      %v2482 = vpop.f32.mrf.mxu0
      %v2483 = vadd.f32 0.0, %v2482
      %v2484 = vpop.f32.mrf.mxu0
      %v2485 = vadd.f32 0.0, %v2484
      %2486 = vmatmul.bf16.gmra.mxu0 %v2357
      %v2487 = vpop.f32.mrf.mxu0
      %v2488 = vadd.f32 0.0, %v2487
      %v2489 = vpop.f32.mrf.mxu0
      %v2490 = vadd.f32 0.0, %v2489
      %2491 = vmatmul.bf16.gmra.mxu0 %v2358
      %v2492 = vpop.f32.mrf.mxu0
      %v2493 = vadd.f32 0.0, %v2492
      %v2494 = vpop.f32.mrf.mxu0
      %v2495 = vadd.f32 0.0, %v2494
      %2496 = vmatmul.bf16.gmra.mxu0 %v2359
      %v2497 = vpop.f32.mrf.mxu0
      %v2498 = vadd.f32 0.0, %v2497
      %v2499 = vpop.f32.mrf.mxu0
      %v2500 = vadd.f32 0.0, %v2499
      %2501 = vmatmul.bf16.gmra.mxu0 %v2360
      %v2502 = vpop.f32.mrf.mxu0
      %v2503 = vadd.f32 0.0, %v2502
      %v2504 = vpop.f32.mrf.mxu0
      %v2505 = vadd.f32 0.0, %v2504
      %2506 = vmatmul.bf16.gmra.mxu0 %v2361
      %v2507 = vpop.f32.mrf.mxu0
      %v2508 = vadd.f32 0.0, %v2507
      %v2509 = vpop.f32.mrf.mxu0
      %v2510 = vadd.f32 0.0, %v2509
      %2511 = vmatmul.bf16.gmra.mxu0 %v2362
      %v2512 = vpop.f32.mrf.mxu0
      %v2513 = vadd.f32 0.0, %v2512
      %v2514 = vpop.f32.mrf.mxu0
      %v2515 = vadd.f32 0.0, %v2514
      %2516 = vdwg.mxu0
      %v2517 = vadd.f32 %v2283, %v2438
      %v2518 = vadd.f32 %v2284, %v2440
      %v2519 = vadd.f32 %v2285, %v2443
      %v2520 = vadd.f32 %v2286, %v2445
      %v2521 = vadd.f32 %v2287, %v2448
      %v2522 = vadd.f32 %v2288, %v2450
      %v2523 = vadd.f32 %v2289, %v2453
      %v2524 = vadd.f32 %v2290, %v2455
      %v2525 = vadd.f32 %v2291, %v2458
      %v2526 = vadd.f32 %v2292, %v2460
      %v2527 = vadd.f32 %v2293, %v2463
      %v2528 = vadd.f32 %v2294, %v2465
      %v2529 = vadd.f32 %v2295, %v2468
      %v2530 = vadd.f32 %v2296, %v2470
      %v2531 = vadd.f32 %v2297, %v2473
      %v2532 = vadd.f32 %v2298, %v2475
      %v2533 = vadd.f32 %v2299, %v2478
      %v2534 = vadd.f32 %v2300, %v2480
      %v2535 = vadd.f32 %v2301, %v2483
      %v2536 = vadd.f32 %v2302, %v2485
      %v2537 = vadd.f32 %v2303, %v2488
      %v2538 = vadd.f32 %v2304, %v2490
      %v2539 = vadd.f32 %v2305, %v2493
      %v2540 = vadd.f32 %v2306, %v2495
      %v2541 = vadd.f32 %v2307, %v2498
      %v2542 = vadd.f32 %v2308, %v2500
      %v2543 = vadd.f32 %v2309, %v2503
      %v2544 = vadd.f32 %v2310, %v2505
      %v2545 = vadd.f32 %v2311, %v2508
      %v2546 = vadd.f32 %v2312, %v2510
      %v2547 = vadd.f32 %v2313, %v2513
      %v2548 = vadd.f32 %v2314, %v2515
      %v2549 = vld [vmem:[%s4] sm:$0x1]
      %v2551 = vperm.slane %v2549, 0
      %v2553 = vadd.f32 %v2517, %v2551
      %v2554 = vadd.f32 %v2518, %v2551
      %v2555 = vadd.f32 %v2519, %v2551
      %v2556 = vadd.f32 %v2520, %v2551
      %v2557 = vadd.f32 %v2521, %v2551
      %v2558 = vadd.f32 %v2522, %v2551
      %v2559 = vadd.f32 %v2523, %v2551
      %v2560 = vadd.f32 %v2524, %v2551
      %v2561 = vadd.f32 %v2525, %v2551
      %v2562 = vadd.f32 %v2526, %v2551
      %v2563 = vadd.f32 %v2527, %v2551
      %v2564 = vadd.f32 %v2528, %v2551
      %v2565 = vadd.f32 %v2529, %v2551
      %v2566 = vadd.f32 %v2530, %v2551
      %v2567 = vadd.f32 %v2531, %v2551
      %v2568 = vadd.f32 %v2532, %v2551
      %v2569 = vadd.f32 %v2533, %v2551
      %v2570 = vadd.f32 %v2534, %v2551
      %v2571 = vadd.f32 %v2535, %v2551
      %v2572 = vadd.f32 %v2536, %v2551
      %v2573 = vadd.f32 %v2537, %v2551
      %v2574 = vadd.f32 %v2538, %v2551
      %v2575 = vadd.f32 %v2539, %v2551
      %v2576 = vadd.f32 %v2540, %v2551
      %v2577 = vadd.f32 %v2541, %v2551
      %v2578 = vadd.f32 %v2542, %v2551
      %v2579 = vadd.f32 %v2543, %v2551
      %v2580 = vadd.f32 %v2544, %v2551
      %v2581 = vadd.f32 %v2545, %v2551
      %v2582 = vadd.f32 %v2546, %v2551
      %v2583 = vadd.f32 %v2547, %v2551
      %v2584 = vadd.f32 %v2548, %v2551
      %v2585 = vadd.f32 %v2553, %v2554
      %v2586 = vadd.f32 %v2585, %v2555
      %v2587 = vadd.f32 %v2586, %v2556
      %v2588 = vadd.f32 %v2587, %v2557
      %v2589 = vadd.f32 %v2588, %v2558
      %v2590 = vadd.f32 %v2589, %v2559
      %v2591 = vadd.f32 %v2590, %v2560
      %v2592 = vadd.f32 %v2591, %v2561
      %v2593 = vadd.f32 %v2592, %v2562
      %v2594 = vadd.f32 %v2593, %v2563
      %v2595 = vadd.f32 %v2594, %v2564
      %v2596 = vadd.f32 %v2595, %v2565
      %v2597 = vadd.f32 %v2596, %v2566
      %v2598 = vadd.f32 %v2597, %v2567
      %v2599 = vadd.f32 %v2598, %v2568
      %v2600 = vadd.f32 %v2599, %v2569
      %v2601 = vadd.f32 %v2600, %v2570
      %v2602 = vadd.f32 %v2601, %v2571
      %v2603 = vadd.f32 %v2602, %v2572
      %v2604 = vadd.f32 %v2603, %v2573
      %v2605 = vadd.f32 %v2604, %v2574
      %v2606 = vadd.f32 %v2605, %v2575
      %v2607 = vadd.f32 %v2606, %v2576
      %v2608 = vadd.f32 %v2607, %v2577
      %v2609 = vadd.f32 %v2608, %v2578
      %v2610 = vadd.f32 %v2609, %v2579
      %v2611 = vadd.f32 %v2610, %v2580
      %v2612 = vadd.f32 %v2611, %v2581
      %v2613 = vadd.f32 %v2612, %v2582
      %v2614 = vadd.f32 %v2613, %v2583
      %v2615 = vadd.f32 %v2614, %v2584
      %v2616 = vrot.slane %v2615, 4
      %v2617 = vadd.f32 %v2615, %v2616
      %v2618 = vrot.slane %v2617, 2
      %v2619 = vadd.f32 %v2617, %v2618
      %v2620 = vrot.slane %v2619, 1
      %v2621 = vadd.f32 %v2619, %v2620
      %2622 = vst [vmem:[%s262] sm:$0x1] %v2621
      %v2623 = vmul.f32 %v2553, %v2553
      %v2624 = vmul.f32 %v2554, %v2554
      %v2625 = vmul.f32 %v2555, %v2555
      %v2626 = vmul.f32 %v2556, %v2556
      %v2627 = vmul.f32 %v2557, %v2557
      %v2628 = vmul.f32 %v2558, %v2558
      %v2629 = vmul.f32 %v2559, %v2559
      %v2630 = vmul.f32 %v2560, %v2560
      %v2631 = vmul.f32 %v2561, %v2561
      %v2632 = vmul.f32 %v2562, %v2562
      %v2633 = vmul.f32 %v2563, %v2563
      %v2634 = vmul.f32 %v2564, %v2564
      %v2635 = vmul.f32 %v2565, %v2565
      %v2636 = vmul.f32 %v2566, %v2566
      %v2637 = vmul.f32 %v2567, %v2567
      %v2638 = vmul.f32 %v2568, %v2568
      %v2639 = vmul.f32 %v2569, %v2569
      %v2640 = vmul.f32 %v2570, %v2570
      %v2641 = vmul.f32 %v2571, %v2571
      %v2642 = vmul.f32 %v2572, %v2572
      %v2643 = vmul.f32 %v2573, %v2573
      %v2644 = vmul.f32 %v2574, %v2574
      %v2645 = vmul.f32 %v2575, %v2575
      %v2646 = vmul.f32 %v2576, %v2576
      %v2647 = vmul.f32 %v2577, %v2577
      %v2648 = vmul.f32 %v2578, %v2578
      %v2649 = vmul.f32 %v2579, %v2579
      %v2650 = vmul.f32 %v2580, %v2580
      %v2651 = vmul.f32 %v2581, %v2581
      %v2652 = vmul.f32 %v2582, %v2582
      %v2653 = vmul.f32 %v2583, %v2583
      %v2654 = vmul.f32 %v2584, %v2584
      %v2655 = vadd.f32 %v2623, %v2624
      %v2656 = vadd.f32 %v2655, %v2625
      %v2657 = vadd.f32 %v2656, %v2626
      %v2658 = vadd.f32 %v2657, %v2627
      %v2659 = vadd.f32 %v2658, %v2628
      %v2660 = vadd.f32 %v2659, %v2629
      %v2661 = vadd.f32 %v2660, %v2630
      %v2662 = vadd.f32 %v2661, %v2631
      %v2663 = vadd.f32 %v2662, %v2632
      %v2664 = vadd.f32 %v2663, %v2633
      %v2665 = vadd.f32 %v2664, %v2634
      %v2666 = vadd.f32 %v2665, %v2635
      %v2667 = vadd.f32 %v2666, %v2636
      %v2668 = vadd.f32 %v2667, %v2637
      %v2669 = vadd.f32 %v2668, %v2638
      %v2670 = vadd.f32 %v2669, %v2639
      %v2671 = vadd.f32 %v2670, %v2640
      %v2672 = vadd.f32 %v2671, %v2641
      %v2673 = vadd.f32 %v2672, %v2642
      %v2674 = vadd.f32 %v2673, %v2643
      %v2675 = vadd.f32 %v2674, %v2644
      %v2676 = vadd.f32 %v2675, %v2645
      %v2677 = vadd.f32 %v2676, %v2646
      %v2678 = vadd.f32 %v2677, %v2647
      %v2679 = vadd.f32 %v2678, %v2648
      %v2680 = vadd.f32 %v2679, %v2649
      %v2681 = vadd.f32 %v2680, %v2650
      %v2682 = vadd.f32 %v2681, %v2651
      %v2683 = vadd.f32 %v2682, %v2652
      %v2684 = vadd.f32 %v2683, %v2653
      %v2685 = vadd.f32 %v2684, %v2654
      %v2686 = vrot.slane %v2685, 4
      %v2687 = vadd.f32 %v2685, %v2686
      %v2688 = vrot.slane %v2687, 2
      %v2689 = vadd.f32 %v2687, %v2688
      %v2690 = vrot.slane %v2689, 1
      %v2691 = vadd.f32 %v2689, %v2690
      %2692 = vst [vmem:[%s262 + $0x1] sm:$0x1] %v2691
      %2693 = vst [vmem:[%s258] sm:$0xff] %v2553
      %2694 = vst [vmem:[%s258 + $0x8] sm:$0xff] %v2554
      %2695 = vst [vmem:[%s258 + $0x10] sm:$0xff] %v2555
      %2696 = vst [vmem:[%s258 + $0x18] sm:$0xff] %v2556
      %2697 = vst [vmem:[%s258 + $0x20] sm:$0xff] %v2557
      %2698 = vst [vmem:[%s258 + $0x28] sm:$0xff] %v2558
      %2699 = vst [vmem:[%s258 + $0x30] sm:$0xff] %v2559
      %2700 = vst [vmem:[%s258 + $0x38] sm:$0xff] %v2560
      %2701 = vst [vmem:[%s258 + $0x40] sm:$0xff] %v2561
      %2702 = vst [vmem:[%s258 + $0x48] sm:$0xff] %v2562
      %2703 = vst [vmem:[%s258 + $0x50] sm:$0xff] %v2563
      %2704 = vst [vmem:[%s258 + $0x58] sm:$0xff] %v2564
      %2705 = vst [vmem:[%s258 + $0x60] sm:$0xff] %v2565
      %2706 = vst [vmem:[%s258 + $0x68] sm:$0xff] %v2566
      %2707 = vst [vmem:[%s258 + $0x70] sm:$0xff] %v2567
      %2708 = vst [vmem:[%s258 + $0x78] sm:$0xff] %v2568
      %2709 = vst [vmem:[%s258 + $0x80] sm:$0xff] %v2569
      %2710 = vst [vmem:[%s258 + $0x88] sm:$0xff] %v2570
      %2711 = vst [vmem:[%s258 + $0x90] sm:$0xff] %v2571
      %2712 = vst [vmem:[%s258 + $0x98] sm:$0xff] %v2572
      %2713 = vst [vmem:[%s258 + $0xa0] sm:$0xff] %v2573
      %2714 = vst [vmem:[%s258 + $0xa8] sm:$0xff] %v2574
      %2715 = vst [vmem:[%s258 + $0xb0] sm:$0xff] %v2575
      %2716 = vst [vmem:[%s258 + $0xb8] sm:$0xff] %v2576
      %2717 = vst [vmem:[%s258 + $0xc0] sm:$0xff] %v2577
      %2718 = vst [vmem:[%s258 + $0xc8] sm:$0xff] %v2578
      %2719 = vst [vmem:[%s258 + $0xd0] sm:$0xff] %v2579
      %2720 = vst [vmem:[%s258 + $0xd8] sm:$0xff] %v2580
      %2721 = vst [vmem:[%s258 + $0xe0] sm:$0xff] %v2581
      %2722 = vst [vmem:[%s258 + $0xe8] sm:$0xff] %v2582
      %2723 = vst [vmem:[%s258 + $0xf0] sm:$0xff] %v2583
      %2724 = vst [vmem:[%s258 + $0xf8] sm:$0xff] %v2584
      %p2725 = scmp.lt.s32.totalorder %s18, 1
      %s2726 = scalar_select %p2725, %s18, 1
      %s2727 = smul.addr %s2726, 32
      %s2728 = smul.addr %s2727, 8
      %s2729 = scalar_lea.vmem %s5, %s2728
      %p2730 = scmp.lt.s32.totalorder %s18, 1
      %s2731 = scalar_select %p2730, %s18, 1
      %s2732 = smul.addr %s2731, 2
      %s2733 = scalar_lea.vmem %s6, %s2732
      // Predicated region
      $region41: #{double_conv.4} parent=39 // pred_check
        %p2734 = pneg %p146
      $region42: #{double_conv.4} parent=39 // pred_check_branch
        %2736 = sbr.rel (%p2734) target = $region44
      $region43: #{double_conv.4} parent=39 // pred_region
        _
      $region44: #{double_conv.4} parent=39 // pred_fallthru
        _
      // Predicated region
      $region45: #{double_conv.4} parent=39 // pred_check
        %p2737 = pneg %p172
      $region46: #{double_conv.4} parent=39 // pred_check_branch
        %2739 = sbr.rel (%p2737) target = $region48
      $region47: #{double_conv.4} parent=39 // pred_region
        _
      $region48: #{double_conv.4} parent=39 // pred_fallthru
        _
    $region40: #{double_conv.4} parent=5 // pred_fallthru
      _
    %p2740 = scmp.le.s32.totalorder 2, %s13
    // Predicated region
    $region49: #{double_conv.4} parent=5 // pred_check
      %p2741 = pneg %p2740
    $region50: #{double_conv.4} parent=5 // pred_check_branch
      %2743 = sbr.rel (%p2741) target = $region52
    $region51: #{double_conv.4} parent=5 // pred_region
      %s2744 = ssub.s32 %s13, 2
      // Predicated region
      $region53: #{double_conv.4} parent=51 // pred_check
        %p2745 = pneg %p152
      $region54: #{double_conv.4} parent=51 // pred_check_branch
        %2747 = sbr.rel (%p2745) target = $region56
      $region55: #{double_conv.4} parent=51 // pred_region
        %p2748 = scmp.lt.s32.totalorder %s19, 1
        %s2749 = scalar_select %p2748, %s19, 1
        %s2750 = smul.addr %s2749, 32
        %s2751 = smul.addr %s2750, 8
        %s2752 = scalar_lea.vmem %s5, %s2751
      $region56: #{double_conv.4} parent=51 // pred_fallthru
        _
      // Predicated region
      $region57: #{double_conv.4} parent=51 // pred_check
        %p2753 = pneg %p178
      $region58: #{double_conv.4} parent=51 // pred_check_branch
        %2755 = sbr.rel (%p2753) target = $region60
      $region59: #{double_conv.4} parent=51 // pred_region
        %p2756 = scmp.lt.s32.totalorder %s19, 1
        %s2757 = scalar_select %p2756, %s19, 1
        %s2758 = smul.addr %s2757, 2
        %s2759 = scalar_lea.vmem %s6, %s2758
      $region60: #{double_conv.4} parent=51 // pred_fallthru
        _
    $region52: #{double_conv.4} parent=5 // pred_fallthru
      _
  $region6: #{double_conv.4} parent=0 // loop_footer
    %s17 = sadd.s32 1, %s13
  $region7: #{double_conv.4} parent=0 // loop_footer_branch
    %12 = sbr.rel target = $region3
  $region8: #{double_conv.4} parent=0 // loop_exit
    _

</llo_original>
